<compile_context>
chip_gen: v7x
topology: tpu7x:2x2x1
jax: 0.10.0
libtpu: 0.0.40
codegen_flags: <defaults>
</compile_context>

<pallas_src>
import math

import jax
import jax.numpy as jnp
from jax import lax
from jax.experimental import pallas as pl
from jax.experimental.pallas import tpu as pltpu

NUM_HEADS = 8           # TransformerEncoderLayer(nhead=8)
DIM_FEEDFORWARD = 2048  # PyTorch default dim_feedforward
NUM_LAYERS = 6          # TransformerEncoder(num_layers=6)
LN_EPS = 1e-5           # PyTorch default layer_norm_eps


# --------------------------------------------------------------------------
# In-kernel helpers
# --------------------------------------------------------------------------
def _layer_norm(y, gamma, beta):
    mu = jnp.mean(y, axis=-1, keepdims=True)
    d = y - mu
    var = jnp.mean(d * d, axis=-1, keepdims=True)
    return d * lax.rsqrt(var + LN_EPS) * gamma + beta


def _softmax_lastdim(s):
    s = s - jnp.max(s, axis=-1, keepdims=True)
    p = jnp.exp(s)
    denom = jnp.sum(p, axis=-1, keepdims=True)
    return p * pl.reciprocal(denom, approx=True)


def _split_heads(slab, base, hd):
    """(N, 3E) slab -> (H, N, hd) for the E-wide section starting at `base`."""
    return jnp.stack(
        [slab[:, base + h * hd: base + (h + 1) * hd] for h in range(NUM_HEADS)],
        axis=0)


# --------------------------------------------------------------------------
# Fused kernel: grid axis = transformer layer.  Layer 0 also runs the
# GCNConv+ReLU+concat+PositionalEncoding prologue; the last layer applies the
# final ReLU and writes the output.  Activations live in a VMEM scratch.
# --------------------------------------------------------------------------
def fused_layer_kernel(adj_ref, feats_ref, gcn_w_ref, gcn_b_ref, pe_ref,
                       wqkv_ref, bqkv_ref, wo_ref, bo_ref,
                       g1_ref, bt1_ref, w1_ref, b1_ref, w2t_ref, b2_ref,
                       g2_ref, bt2_ref, o_ref, x_ref):
    l = pl.program_id(0)

    # ---- Layer-0 prologue: per-step GCNConv + ReLU, concat, + pos-encoding.
    @pl.when(l == 0)
    def _():
        t_steps = adj_ref.shape[0]
        gcn_w = gcn_w_ref[...]                          # (F, D) bf16
        parts = []
        for t in range(t_steps):                        # tiny static loop (T=2)
            xw = jnp.dot(feats_ref[t].astype(jnp.bfloat16), gcn_w,
                         preferred_element_type=jnp.float32)
            h = jnp.dot(adj_ref[t].astype(jnp.bfloat16),
                        xw.astype(jnp.bfloat16),
                        preferred_element_type=jnp.float32) + gcn_b_ref[...]
            parts.append(jnp.maximum(h, 0.0))
        x0 = jnp.concatenate(parts, axis=-1) if t_steps > 1 else parts[0]
        x_ref[...] = x0 + pe_ref[...]                   # dropout = identity

    x = x_ref[...]                                      # (N, E) f32 carry
    n, e = x.shape
    hd = e // NUM_HEADS
    scale = 1.0 / math.sqrt(hd)

    # ---- Self-attention: fused in-projection, batched per-head core, -------
    # ---- concat-heads output projection. ------------------------------------
    qkv = jnp.dot(x.astype(jnp.bfloat16), wqkv_ref[0],
                  preferred_element_type=jnp.float32) + bqkv_ref[0]   # (N, 3E)
    q = _split_heads(qkv, 0, hd) * scale                # (H, N, hd)
    k = _split_heads(qkv, e, hd)                        # (H, N, hd)
    v = _split_heads(qkv, 2 * e, hd)                    # (H, N, hd)

    # Scores: (H,N,hd) x (H,N,hd) -> (H,N,N)  (NT contraction, flash-attn style)
    s = lax.dot_general(q.astype(jnp.bfloat16), k.astype(jnp.bfloat16),
                        (((2,), (2,)), ((0,), (0,))),
                        preferred_element_type=jnp.float32)
    p = _softmax_lastdim(s)
    ctx = lax.dot_general(p.astype(jnp.bfloat16), v.astype(jnp.bfloat16),
                          (((2,), (1,)), ((0,), (0,))),
                          preferred_element_type=jnp.float32)         # (H,N,hd)
    ctx = jnp.concatenate([ctx[h] for h in range(NUM_HEADS)], axis=-1)  # (N,E)
    attn = jnp.dot(ctx.astype(jnp.bfloat16), wo_ref[0],
                   preferred_element_type=jnp.float32) + bo_ref[0]

    # ---- Residual + LayerNorm 1 (post-norm, PyTorch default) ----------------
    y = _layer_norm(x + attn, g1_ref[0], bt1_ref[0])

    # ---- FFN: lin1 -> ReLU -> lin2 (bf16 weights, f32 accumulation) ---------
    h1 = jnp.dot(y.astype(jnp.bfloat16), w1_ref[0],
                 preferred_element_type=jnp.float32) + b1_ref[0]
    h1 = jnp.maximum(h1, 0.0)
    # linear2 weight kept lane-dense as (E, FF); contract on the FF axis.
    h2 = lax.dot_general(h1.astype(jnp.bfloat16), w2t_ref[0],
                         (((1,), (1,)), ((), ())),
                         preferred_element_type=jnp.float32) + b2_ref[0]

    # ---- Residual + LayerNorm 2; carry to next layer ------------------------
    x_new = _layer_norm(y + h2, g2_ref[0], bt2_ref[0])
    x_ref[...] = x_new

    # ---- Final ReLU + store on the last layer --------------------------------
    @pl.when(l == pl.num_programs(0) - 1)
    def _():
        o_ref[...] = jnp.maximum(x_new, 0.0)


# --------------------------------------------------------------------------
# Host-side glue (params, adjacency normalization, positional encoding)
# --------------------------------------------------------------------------
def _positional_encoding(max_len, d_model):
    position = jnp.arange(max_len, dtype=jnp.float32)[:, None]
    div_term = jnp.exp(jnp.arange(0, d_model, 2, dtype=jnp.float32)
                       * (-math.log(10000.0) / d_model))
    pe = jnp.zeros((max_len, d_model), jnp.float32)
    pe = pe.at[:, 0::2].set(jnp.sin(position * div_term))
    pe = pe.at[:, 1::2].set(jnp.cos(position * div_term))
    return pe


def _dense_norm_adj(edge_index, edge_weight, n):
    """Dense GCN normalization: D^-1/2 (A + I) D^-1/2, with A[dst, src] += w."""
    src, dst = edge_index[0], edge_index[1]
    a = jnp.zeros((n, n), jnp.float32).at[dst, src].add(edge_weight)
    a = a + jnp.eye(n, dtype=jnp.float32)               # add_self_loops (1.0)
    deg = jnp.sum(a, axis=1)
    dinv = jnp.where(deg > 0, lax.rsqrt(deg), 0.0)
    return dinv[:, None] * a * dinv[None, :]


def init_params(key, feats_per_node, d_model, num_hist_steps,
                dim_feedforward=DIM_FEEDFORWARD, num_layers=NUM_LAYERS,
                max_len=5000):
    """Weights stacked over layers; MXU-facing matrices stored in bfloat16.

    Mapping from PyTorch:
      wqkv[l] = self_attn.in_proj_weight.T           (fea, 3*fea)
      bqkv[l] = self_attn.in_proj_bias[None, :]      (1, 3*fea)
      wo[l]   = self_attn.out_proj.weight.T          (fea, fea)
      w1[l]   = linear1.weight.T                     (fea, dim_ff)
      w2t[l]  = linear2.weight (PyTorch (out,in) = (fea, dim_ff), lane-dense;
                 the kernel contracts on the dim_ff axis)
      gcn_w   = conv1.lin.weight.T                   (feats_per_node, d_model)
    """
    fea = num_hist_steps * d_model
    ks = jax.random.split(key, 5)

    def rnd(k, shape, s=0.1):
        return s * jax.random.normal(k, shape, jnp.float32)

    return {
        "gcn_w": rnd(ks[0], (feats_per_node, d_model)).astype(jnp.bfloat16),
        "gcn_b": jnp.zeros((1, d_model), jnp.float32),
        "pe": _positional_encoding(max_len, fea),
        "wqkv": rnd(ks[1], (num_layers, fea, 3 * fea)).astype(jnp.bfloat16),
        "bqkv": jnp.zeros((num_layers, 1, 3 * fea), jnp.float32),
        "wo": rnd(ks[2], (num_layers, fea, fea)).astype(jnp.bfloat16),
        "bo": jnp.zeros((num_layers, 1, fea), jnp.float32),
        "g1": jnp.ones((num_layers, 1, fea), jnp.float32),
        "bt1": jnp.zeros((num_layers, 1, fea), jnp.float32),
        "w1": rnd(ks[3], (num_layers, fea, dim_feedforward), 0.05).astype(jnp.bfloat16),
        "b1": jnp.zeros((num_layers, 1, dim_feedforward), jnp.float32),
        "w2t": rnd(ks[4], (num_layers, fea, dim_feedforward), 0.05).astype(jnp.bfloat16),
        "b2": jnp.zeros((num_layers, 1, fea), jnp.float32),
        "g2": jnp.ones((num_layers, 1, fea), jnp.float32),
        "bt2": jnp.zeros((num_layers, 1, fea), jnp.float32),
    }


def gcn_transformer_forward(edge_index_list, node_feats_list, edge_feats_list,
                            nodes_mask_list, params):
    del nodes_mask_list                       # unused in the reference forward
    n = node_feats_list[0].shape[0]
    t_steps = len(edge_index_list)
    d_model = params["gcn_w"].shape[1]
    fea = t_steps * d_model
    ff = params["w1"].shape[-1]
    num_layers = params["wqkv"].shape[0]

    # Dense normalized adjacency per step (T, N, N); node features (T, N, F).
    adj = jnp.stack([_dense_norm_adj(edge_index_list[t], edge_feats_list[t], n)
                     for t in range(t_steps)])
    feats = jnp.stack(node_feats_list)
    pe = params["pe"][:n]

    args = (adj, feats, params["gcn_w"], params["gcn_b"], pe,
            params["wqkv"], params["bqkv"], params["wo"], params["bo"],
            params["g1"], params["bt1"], params["w1"], params["b1"],
            params["w2t"], params["b2"], params["g2"], params["bt2"])

    # Prologue-only inputs: constant block index -> DMA'd once.
    # Per-layer weights: block (1, ...) indexed by the layer grid id
    #   -> double-buffered and pipelined behind the previous layer's compute.
    def constant(shape):
        return pl.BlockSpec(shape, lambda l, nd=len(shape): (0,) * nd)

    def per_layer(shape):
        return pl.BlockSpec((1,) + shape, lambda l: (l, 0, 0))

    in_specs = [
        constant(adj.shape), constant(feats.shape),
        constant(params["gcn_w"].shape), constant(params["gcn_b"].shape),
        constant(pe.shape),
        per_layer((fea, 3 * fea)), per_layer((1, 3 * fea)),   # wqkv, bqkv
        per_layer((fea, fea)), per_layer((1, fea)),           # wo, bo
        per_layer((1, fea)), per_layer((1, fea)),             # g1, bt1
        per_layer((fea, ff)), per_layer((1, ff)),             # w1, b1
        per_layer((fea, ff)), per_layer((1, fea)),            # w2t, b2
        per_layer((1, fea)), per_layer((1, fea)),             # g2, bt2
    ]
    out_shape = jax.ShapeDtypeStruct((n, fea), jnp.float32)
    out_specs = pl.BlockSpec((n, fea), lambda l: (0, 0))

    return pl.pallas_call(
        fused_layer_kernel,
        grid=(num_layers,),
        in_specs=in_specs,
        out_specs=out_specs,
        out_shape=out_shape,
        scratch_shapes=[pltpu.VMEM((n, fea), jnp.float32)],   # activation carry
        compiler_params=pltpu.CompilerParams(
            dimension_semantics=("arbitrary",),   # layer carry -> sequential
            vmem_limit_bytes=16 * 1024 * 1024,    # actual footprint ~2 MiB
        ),
    )(*args)


# --------------------------------------------------------------------------
if __name__ == "__main__":
    key = jax.random.PRNGKey(0)
    N, F, D, T, E_EDGES = 16, 8, 16, 2, 40  # nodes, feats/node, d_model, hist steps, edges

    k_param, k_data = jax.random.split(key)
    params = init_params(k_param, feats_per_node=F, d_model=D, num_hist_steps=T)

    edge_index_list, node_feats_list, edge_feats_list, mask_list = [], [], [], []
    for t in range(T):
        kt = jax.random.fold_in(k_data, t)
        kf, ks, kd, kw = jax.random.split(kt, 4)
        node_feats_list.append(jax.random.normal(kf, (N, F), jnp.float32))
        src = jax.random.randint(ks, (E_EDGES,), 0, N)
        dst = jax.random.randint(kd, (E_EDGES,), 0, N)
        edge_index_list.append(jnp.stack([src, dst]))
        edge_feats_list.append(jax.random.uniform(kw, (E_EDGES,), jnp.float32, 0.1, 1.0))
        mask_list.append(jnp.ones((N,), jnp.bool_))

    out = gcn_transformer_forward(edge_index_list, node_feats_list,
                                  edge_feats_list, mask_list, params)
    out = jax.block_until_ready(out)
    assert out.shape == (N, T * D)
    assert bool(jnp.all(jnp.isfinite(out)))
    print("KERNEL_OK")
</pallas_src>

<mosaic_0001>
module attributes {stable_mosaic.version = 11 : i64} {
  func.func @fused_layer_kernel(%arg0: i32, %arg1: memref<2x16x16xf32, #tpu.memory_space<vmem>>, %arg2: memref<2x16x8xf32, #tpu.memory_space<vmem>>, %arg3: memref<8x16xbf16, #tpu.memory_space<vmem>>, %arg4: memref<1x16xf32, #tpu.memory_space<vmem>>, %arg5: memref<16x32xf32, #tpu.memory_space<vmem>>, %arg6: memref<1x32x96xbf16, #tpu.memory_space<vmem>>, %arg7: memref<1x1x96xf32, #tpu.memory_space<vmem>>, %arg8: memref<1x32x32xbf16, #tpu.memory_space<vmem>>, %arg9: memref<1x1x32xf32, #tpu.memory_space<vmem>>, %arg10: memref<1x1x32xf32, #tpu.memory_space<vmem>>, %arg11: memref<1x1x32xf32, #tpu.memory_space<vmem>>, %arg12: memref<1x32x2048xbf16, #tpu.memory_space<vmem>>, %arg13: memref<1x1x2048xf32, #tpu.memory_space<vmem>>, %arg14: memref<1x32x2048xbf16, #tpu.memory_space<vmem>>, %arg15: memref<1x1x32xf32, #tpu.memory_space<vmem>>, %arg16: memref<1x1x32xf32, #tpu.memory_space<vmem>>, %arg17: memref<1x1x32xf32, #tpu.memory_space<vmem>>, %arg18: memref<16x32xf32, #tpu.memory_space<vmem>>, %arg19: memref<16x32xf32, #tpu.memory_space<vmem>>) attributes {dimension_semantics = [#tpu.dimension_semantics<arbitrary>], iteration_bounds = array<i64: 6>, scalar_prefetch = 0 : i64, scratch_operands = 1 : i64, tpu.core_type = #tpu.core_type<tc>, window_params = [{pipeline_mode = #tpu.pipeline_mode<synchronous>, transform_indices = @transform_0, window_bounds = array<i64: 2, 16, 16>}, {pipeline_mode = #tpu.pipeline_mode<synchronous>, transform_indices = @transform_1, window_bounds = array<i64: 2, 16, 8>}, {pipeline_mode = #tpu.pipeline_mode<synchronous>, transform_indices = @transform_2, window_bounds = array<i64: 8, 16>}, {pipeline_mode = #tpu.pipeline_mode<synchronous>, transform_indices = @transform_3, window_bounds = array<i64: 1, 16>}, {pipeline_mode = #tpu.pipeline_mode<synchronous>, transform_indices = @transform_4, window_bounds = array<i64: 16, 32>}, {transform_indices = @transform_5, window_bounds = array<i64: 1, 32, 96>}, {transform_indices = @transform_6, window_bounds = array<i64: 1, 1, 96>}, {transform_indices = @transform_7, window_bounds = array<i64: 1, 32, 32>}, {transform_indices = @transform_8, window_bounds = array<i64: 1, 1, 32>}, {transform_indices = @transform_9, window_bounds = array<i64: 1, 1, 32>}, {transform_indices = @transform_10, window_bounds = array<i64: 1, 1, 32>}, {transform_indices = @transform_11, window_bounds = array<i64: 1, 32, 2048>}, {transform_indices = @transform_12, window_bounds = array<i64: 1, 1, 2048>}, {transform_indices = @transform_13, window_bounds = array<i64: 1, 32, 2048>}, {transform_indices = @transform_14, window_bounds = array<i64: 1, 1, 32>}, {transform_indices = @transform_15, window_bounds = array<i64: 1, 1, 32>}, {transform_indices = @transform_16, window_bounds = array<i64: 1, 1, 32>}, {pipeline_mode = #tpu.pipeline_mode<synchronous>, transform_indices = @transform_17, window_bounds = array<i64: 16, 32>}]} {
    %c0_i32 = arith.constant 0 : i32
    %0 = arith.cmpi eq, %arg0, %c0_i32 : i32
    %1 = arith.extui %0 : i1 to i32
    %c0_i32_0 = arith.constant 0 : i32
    %2 = arith.cmpi ne, %1, %c0_i32_0 : i32
    scf.if %2 {
      %c0_60 = arith.constant 0 : index
      %c0_61 = arith.constant 0 : index
      %178 = vector.load %arg3[%c0_60, %c0_61] : memref<8x16xbf16, #tpu.memory_space<vmem>>, vector<8x16xbf16>
      %c0_62 = arith.constant 0 : index
      %c0_63 = arith.constant 0 : index
      %c0_64 = arith.constant 0 : index
      %179 = vector.load %arg2[%c0_62, %c0_63, %c0_64] : memref<2x16x8xf32, #tpu.memory_space<vmem>>, vector<1x16x8xf32>
      %180 = vector.shape_cast %179 : vector<1x16x8xf32> to vector<16x8xf32>
      %181 = arith.truncf %180 : vector<16x8xf32> to vector<16x8xbf16>
      %cst_65 = arith.constant dense<0.000000e+00> : vector<16x16xf32>
      %182 = tpu.matmul %181, %178, %cst_65 {dimension_numbers = #tpu.dot_dimension_numbers<[1], [0], [0], [1], [0, 0, 1, 1], [], []>} : vector<16x8xbf16>, vector<8x16xbf16>, vector<16x16xf32> -> vector<16x16xf32>
      %c0_66 = arith.constant 0 : index
      %c0_67 = arith.constant 0 : index
      %c0_68 = arith.constant 0 : index
      %183 = vector.load %arg1[%c0_66, %c0_67, %c0_68] : memref<2x16x16xf32, #tpu.memory_space<vmem>>, vector<1x16x16xf32>
      %184 = vector.shape_cast %183 : vector<1x16x16xf32> to vector<16x16xf32>
      %185 = arith.truncf %184 : vector<16x16xf32> to vector<16x16xbf16>
      %186 = arith.truncf %182 : vector<16x16xf32> to vector<16x16xbf16>
      %cst_69 = arith.constant dense<0.000000e+00> : vector<16x16xf32>
      %187 = tpu.matmul %185, %186, %cst_69 {dimension_numbers = #tpu.dot_dimension_numbers<[1], [0], [0], [1], [0, 0, 1, 1], [], []>} : vector<16x16xbf16>, vector<16x16xbf16>, vector<16x16xf32> -> vector<16x16xf32>
      %c0_70 = arith.constant 0 : index
      %c0_71 = arith.constant 0 : index
      %188 = vector.load %arg4[%c0_70, %c0_71] : memref<1x16xf32, #tpu.memory_space<vmem>>, vector<1x16xf32>
      %189 = vector.broadcast %188 : vector<1x16xf32> to vector<16x16xf32>
      %190 = arith.addf %187, %189 : vector<16x16xf32>
      %cst_72 = arith.constant 0.000000e+00 : f32
      %191 = vector.broadcast %cst_72 : f32 to vector<16x16xf32>
      %192 = arith.maximumf %190, %191 : vector<16x16xf32>
      %c1 = arith.constant 1 : index
      %c0_73 = arith.constant 0 : index
      %c0_74 = arith.constant 0 : index
      %193 = vector.load %arg2[%c1, %c0_73, %c0_74] : memref<2x16x8xf32, #tpu.memory_space<vmem>>, vector<1x16x8xf32>
      %194 = vector.shape_cast %193 : vector<1x16x8xf32> to vector<16x8xf32>
      %195 = arith.truncf %194 : vector<16x8xf32> to vector<16x8xbf16>
      %cst_75 = arith.constant dense<0.000000e+00> : vector<16x16xf32>
      %196 = tpu.matmul %195, %178, %cst_75 {dimension_numbers = #tpu.dot_dimension_numbers<[1], [0], [0], [1], [0, 0, 1, 1], [], []>} : vector<16x8xbf16>, vector<8x16xbf16>, vector<16x16xf32> -> vector<16x16xf32>
      %c1_76 = arith.constant 1 : index
      %c0_77 = arith.constant 0 : index
      %c0_78 = arith.constant 0 : index
      %197 = vector.load %arg1[%c1_76, %c0_77, %c0_78] : memref<2x16x16xf32, #tpu.memory_space<vmem>>, vector<1x16x16xf32>
      %198 = vector.shape_cast %197 : vector<1x16x16xf32> to vector<16x16xf32>
      %199 = arith.truncf %198 : vector<16x16xf32> to vector<16x16xbf16>
      %200 = arith.truncf %196 : vector<16x16xf32> to vector<16x16xbf16>
      %cst_79 = arith.constant dense<0.000000e+00> : vector<16x16xf32>
      %201 = tpu.matmul %199, %200, %cst_79 {dimension_numbers = #tpu.dot_dimension_numbers<[1], [0], [0], [1], [0, 0, 1, 1], [], []>} : vector<16x16xbf16>, vector<16x16xbf16>, vector<16x16xf32> -> vector<16x16xf32>
      %c0_80 = arith.constant 0 : index
      %c0_81 = arith.constant 0 : index
      %202 = vector.load %arg4[%c0_80, %c0_81] : memref<1x16xf32, #tpu.memory_space<vmem>>, vector<1x16xf32>
      %203 = vector.broadcast %202 : vector<1x16xf32> to vector<16x16xf32>
      %204 = arith.addf %201, %203 : vector<16x16xf32>
      %cst_82 = arith.constant 0.000000e+00 : f32
      %205 = vector.broadcast %cst_82 : f32 to vector<16x16xf32>
      %206 = arith.maximumf %204, %205 : vector<16x16xf32>
      %207 = tpu.concatenate %192, %206 in 1 : vector<16x16xf32>, vector<16x16xf32> -> vector<16x32xf32>
      %c0_83 = arith.constant 0 : index
      %c0_84 = arith.constant 0 : index
      %208 = vector.load %arg5[%c0_83, %c0_84] : memref<16x32xf32, #tpu.memory_space<vmem>>, vector<16x32xf32>
      %209 = arith.addf %207, %208 : vector<16x32xf32>
      %c0_85 = arith.constant 0 : index
      %c0_86 = arith.constant 0 : index
      %210 = vector.load %arg19[%c0_85, %c0_86] : memref<16x32xf32, #tpu.memory_space<vmem>>, vector<16x32xf32>
      tpu.vector_store %arg19[%c0_85, %c0_86], %209 {strides = array<i32>} : memref<16x32xf32, #tpu.memory_space<vmem>>, vector<16x32xf32>,
    } else {
    }
    %c0 = arith.constant 0 : index
    %c0_1 = arith.constant 0 : index
    %3 = vector.load %arg19[%c0, %c0_1] : memref<16x32xf32, #tpu.memory_space<vmem>>, vector<16x32xf32>
    %4 = arith.truncf %3 : vector<16x32xf32> to vector<16x32xbf16>
    %c0_2 = arith.constant 0 : index
    %c0_3 = arith.constant 0 : index
    %c0_4 = arith.constant 0 : index
    %5 = vector.load %arg6[%c0_2, %c0_3, %c0_4] : memref<1x32x96xbf16, #tpu.memory_space<vmem>>, vector<1x32x96xbf16>
    %6 = vector.shape_cast %5 : vector<1x32x96xbf16> to vector<32x96xbf16>
    %cst = arith.constant dense<0.000000e+00> : vector<16x96xf32>
    %7 = tpu.matmul %4, %6, %cst {dimension_numbers = #tpu.dot_dimension_numbers<[1], [0], [0], [1], [0, 0, 1, 1], [], []>} : vector<16x32xbf16>, vector<32x96xbf16>, vector<16x96xf32> -> vector<16x96xf32>
    %c0_5 = arith.constant 0 : index
    %c0_6 = arith.constant 0 : index
    %c0_7 = arith.constant 0 : index
    %8 = vector.load %arg7[%c0_5, %c0_6, %c0_7] : memref<1x1x96xf32, #tpu.memory_space<vmem>>, vector<1x1x96xf32>
    %9 = vector.shape_cast %8 : vector<1x1x96xf32> to vector<1x96xf32>
    %10 = vector.broadcast %9 : vector<1x96xf32> to vector<16x96xf32>
    %11 = arith.addf %7, %10 : vector<16x96xf32>
    %12 = vector.extract_strided_slice %11 {offsets = [0, 0], sizes = [16, 4], strides = [1, 1]} : vector<16x96xf32> to vector<16x4xf32>
    %13 = vector.extract_strided_slice %11 {offsets = [0, 4], sizes = [16, 4], strides = [1, 1]} : vector<16x96xf32> to vector<16x4xf32>
    %14 = vector.extract_strided_slice %11 {offsets = [0, 8], sizes = [16, 4], strides = [1, 1]} : vector<16x96xf32> to vector<16x4xf32>
    %15 = vector.extract_strided_slice %11 {offsets = [0, 12], sizes = [16, 4], strides = [1, 1]} : vector<16x96xf32> to vector<16x4xf32>
    %16 = vector.extract_strided_slice %11 {offsets = [0, 16], sizes = [16, 4], strides = [1, 1]} : vector<16x96xf32> to vector<16x4xf32>
    %17 = vector.extract_strided_slice %11 {offsets = [0, 20], sizes = [16, 4], strides = [1, 1]} : vector<16x96xf32> to vector<16x4xf32>
    %18 = vector.extract_strided_slice %11 {offsets = [0, 24], sizes = [16, 4], strides = [1, 1]} : vector<16x96xf32> to vector<16x4xf32>
    %19 = vector.extract_strided_slice %11 {offsets = [0, 28], sizes = [16, 4], strides = [1, 1]} : vector<16x96xf32> to vector<16x4xf32>
    %20 = vector.shape_cast %12 : vector<16x4xf32> to vector<1x16x4xf32>
    %21 = vector.shape_cast %13 : vector<16x4xf32> to vector<1x16x4xf32>
    %22 = vector.shape_cast %14 : vector<16x4xf32> to vector<1x16x4xf32>
    %23 = vector.shape_cast %15 : vector<16x4xf32> to vector<1x16x4xf32>
    %24 = vector.shape_cast %16 : vector<16x4xf32> to vector<1x16x4xf32>
    %25 = vector.shape_cast %17 : vector<16x4xf32> to vector<1x16x4xf32>
    %26 = vector.shape_cast %18 : vector<16x4xf32> to vector<1x16x4xf32>
    %27 = vector.shape_cast %19 : vector<16x4xf32> to vector<1x16x4xf32>
    %28 = tpu.concatenate %20, %21, %22, %23, %24, %25, %26, %27 in 0 : vector<1x16x4xf32>, vector<1x16x4xf32>, vector<1x16x4xf32>, vector<1x16x4xf32>, vector<1x16x4xf32>, vector<1x16x4xf32>, vector<1x16x4xf32>, vector<1x16x4xf32> -> vector<8x16x4xf32>
    %cst_8 = arith.constant 5.000000e-01 : f32
    %29 = vector.broadcast %cst_8 : f32 to vector<8x16x4xf32>
    %30 = arith.mulf %28, %29 : vector<8x16x4xf32>
    %31 = vector.extract_strided_slice %11 {offsets = [0, 32], sizes = [16, 4], strides = [1, 1]} : vector<16x96xf32> to vector<16x4xf32>
    %32 = vector.extract_strided_slice %11 {offsets = [0, 36], sizes = [16, 4], strides = [1, 1]} : vector<16x96xf32> to vector<16x4xf32>
    %33 = vector.extract_strided_slice %11 {offsets = [0, 40], sizes = [16, 4], strides = [1, 1]} : vector<16x96xf32> to vector<16x4xf32>
    %34 = vector.extract_strided_slice %11 {offsets = [0, 44], sizes = [16, 4], strides = [1, 1]} : vector<16x96xf32> to vector<16x4xf32>
    %35 = vector.extract_strided_slice %11 {offsets = [0, 48], sizes = [16, 4], strides = [1, 1]} : vector<16x96xf32> to vector<16x4xf32>
    %36 = vector.extract_strided_slice %11 {offsets = [0, 52], sizes = [16, 4], strides = [1, 1]} : vector<16x96xf32> to vector<16x4xf32>
    %37 = vector.extract_strided_slice %11 {offsets = [0, 56], sizes = [16, 4], strides = [1, 1]} : vector<16x96xf32> to vector<16x4xf32>
    %38 = vector.extract_strided_slice %11 {offsets = [0, 60], sizes = [16, 4], strides = [1, 1]} : vector<16x96xf32> to vector<16x4xf32>
    %39 = vector.shape_cast %31 : vector<16x4xf32> to vector<1x16x4xf32>
    %40 = vector.shape_cast %32 : vector<16x4xf32> to vector<1x16x4xf32>
    %41 = vector.shape_cast %33 : vector<16x4xf32> to vector<1x16x4xf32>
    %42 = vector.shape_cast %34 : vector<16x4xf32> to vector<1x16x4xf32>
    %43 = vector.shape_cast %35 : vector<16x4xf32> to vector<1x16x4xf32>
    %44 = vector.shape_cast %36 : vector<16x4xf32> to vector<1x16x4xf32>
    %45 = vector.shape_cast %37 : vector<16x4xf32> to vector<1x16x4xf32>
    %46 = vector.shape_cast %38 : vector<16x4xf32> to vector<1x16x4xf32>
    %47 = tpu.concatenate %39, %40, %41, %42, %43, %44, %45, %46 in 0 : vector<1x16x4xf32>, vector<1x16x4xf32>, vector<1x16x4xf32>, vector<1x16x4xf32>, vector<1x16x4xf32>, vector<1x16x4xf32>, vector<1x16x4xf32>, vector<1x16x4xf32> -> vector<8x16x4xf32>
    %48 = vector.extract_strided_slice %11 {offsets = [0, 64], sizes = [16, 4], strides = [1, 1]} : vector<16x96xf32> to vector<16x4xf32>
    %49 = vector.extract_strided_slice %11 {offsets = [0, 68], sizes = [16, 4], strides = [1, 1]} : vector<16x96xf32> to vector<16x4xf32>
    %50 = vector.extract_strided_slice %11 {offsets = [0, 72], sizes = [16, 4], strides = [1, 1]} : vector<16x96xf32> to vector<16x4xf32>
    %51 = vector.extract_strided_slice %11 {offsets = [0, 76], sizes = [16, 4], strides = [1, 1]} : vector<16x96xf32> to vector<16x4xf32>
    %52 = vector.extract_strided_slice %11 {offsets = [0, 80], sizes = [16, 4], strides = [1, 1]} : vector<16x96xf32> to vector<16x4xf32>
    %53 = vector.extract_strided_slice %11 {offsets = [0, 84], sizes = [16, 4], strides = [1, 1]} : vector<16x96xf32> to vector<16x4xf32>
    %54 = vector.extract_strided_slice %11 {offsets = [0, 88], sizes = [16, 4], strides = [1, 1]} : vector<16x96xf32> to vector<16x4xf32>
    %55 = vector.extract_strided_slice %11 {offsets = [0, 92], sizes = [16, 4], strides = [1, 1]} : vector<16x96xf32> to vector<16x4xf32>
    %56 = vector.shape_cast %48 : vector<16x4xf32> to vector<1x16x4xf32>
    %57 = vector.shape_cast %49 : vector<16x4xf32> to vector<1x16x4xf32>
    %58 = vector.shape_cast %50 : vector<16x4xf32> to vector<1x16x4xf32>
    %59 = vector.shape_cast %51 : vector<16x4xf32> to vector<1x16x4xf32>
    %60 = vector.shape_cast %52 : vector<16x4xf32> to vector<1x16x4xf32>
    %61 = vector.shape_cast %53 : vector<16x4xf32> to vector<1x16x4xf32>
    %62 = vector.shape_cast %54 : vector<16x4xf32> to vector<1x16x4xf32>
    %63 = vector.shape_cast %55 : vector<16x4xf32> to vector<1x16x4xf32>
    %64 = tpu.concatenate %56, %57, %58, %59, %60, %61, %62, %63 in 0 : vector<1x16x4xf32>, vector<1x16x4xf32>, vector<1x16x4xf32>, vector<1x16x4xf32>, vector<1x16x4xf32>, vector<1x16x4xf32>, vector<1x16x4xf32>, vector<1x16x4xf32> -> vector<8x16x4xf32>
    %65 = arith.truncf %30 : vector<8x16x4xf32> to vector<8x16x4xbf16>
    %66 = arith.truncf %47 : vector<8x16x4xf32> to vector<8x16x4xbf16>
    %cst_9 = arith.constant dense<0.000000e+00> : vector<8x16x16xf32>
    %67 = tpu.matmul %65, %66, %cst_9 {dimension_numbers = #tpu.dot_dimension_numbers<[2], [2], [1], [1], [0, 0, 0, 1, 1, 1], [0], [0]>} : vector<8x16x4xbf16>, vector<8x16x4xbf16>, vector<8x16x16xf32> -> vector<8x16x16xf32>
    %cst_10 = arith.constant dense<0xFF800000> : vector<8x16xf32>
    %68 = vector.multi_reduction <maximumf>, %67, %cst_10 [2] : vector<8x16x16xf32> to vector<8x16xf32>
    %69 = vector.shape_cast %68 : vector<8x16xf32> to vector<8x16x1xf32>
    %70 = vector.broadcast %69 : vector<8x16x1xf32> to vector<8x16x16xf32>
    %71 = arith.subf %67, %70 : vector<8x16x16xf32>
    %72 = math.exp %71 : vector<8x16x16xf32>
    %cst_11 = arith.constant dense<0.000000e+00> : vector<8x16xf32>
    %73 = vector.multi_reduction <add>, %72, %cst_11 [2] : vector<8x16x16xf32> to vector<8x16xf32>
    %74 = vector.shape_cast %73 : vector<8x16xf32> to vector<8x16x1xf32>
    %75 = tpu.reciprocal %74 {approx = true} : vector<8x16x1xf32> -> vector<8x16x1xf32>
    %76 = vector.broadcast %75 : vector<8x16x1xf32> to vector<8x16x16xf32>
    %77 = arith.mulf %72, %76 : vector<8x16x16xf32>
    %78 = arith.truncf %77 : vector<8x16x16xf32> to vector<8x16x16xbf16>
    %79 = arith.truncf %64 : vector<8x16x4xf32> to vector<8x16x4xbf16>
    %cst_12 = arith.constant dense<0.000000e+00> : vector<8x16x4xf32>
    %80 = tpu.matmul %78, %79, %cst_12 {dimension_numbers = #tpu.dot_dimension_numbers<[2], [1], [1], [2], [0, 0, 0, 1, 1, 2], [0], [0]>} : vector<8x16x16xbf16>, vector<8x16x4xbf16>, vector<8x16x4xf32> -> vector<8x16x4xf32>
    %81 = vector.extract_strided_slice %80 {offsets = [0, 0, 0], sizes = [1, 16, 4], strides = [1, 1, 1]} : vector<8x16x4xf32> to vector<1x16x4xf32>
    %82 = vector.shape_cast %81 : vector<1x16x4xf32> to vector<16x4xf32>
    %83 = vector.extract_strided_slice %80 {offsets = [1, 0, 0], sizes = [1, 16, 4], strides = [1, 1, 1]} : vector<8x16x4xf32> to vector<1x16x4xf32>
    %84 = vector.shape_cast %83 : vector<1x16x4xf32> to vector<16x4xf32>
    %85 = vector.extract_strided_slice %80 {offsets = [2, 0, 0], sizes = [1, 16, 4], strides = [1, 1, 1]} : vector<8x16x4xf32> to vector<1x16x4xf32>
    %86 = vector.shape_cast %85 : vector<1x16x4xf32> to vector<16x4xf32>
    %87 = vector.extract_strided_slice %80 {offsets = [3, 0, 0], sizes = [1, 16, 4], strides = [1, 1, 1]} : vector<8x16x4xf32> to vector<1x16x4xf32>
    %88 = vector.shape_cast %87 : vector<1x16x4xf32> to vector<16x4xf32>
    %89 = vector.extract_strided_slice %80 {offsets = [4, 0, 0], sizes = [1, 16, 4], strides = [1, 1, 1]} : vector<8x16x4xf32> to vector<1x16x4xf32>
    %90 = vector.shape_cast %89 : vector<1x16x4xf32> to vector<16x4xf32>
    %91 = vector.extract_strided_slice %80 {offsets = [5, 0, 0], sizes = [1, 16, 4], strides = [1, 1, 1]} : vector<8x16x4xf32> to vector<1x16x4xf32>
    %92 = vector.shape_cast %91 : vector<1x16x4xf32> to vector<16x4xf32>
    %93 = vector.extract_strided_slice %80 {offsets = [6, 0, 0], sizes = [1, 16, 4], strides = [1, 1, 1]} : vector<8x16x4xf32> to vector<1x16x4xf32>
    %94 = vector.shape_cast %93 : vector<1x16x4xf32> to vector<16x4xf32>
    %95 = vector.extract_strided_slice %80 {offsets = [7, 0, 0], sizes = [1, 16, 4], strides = [1, 1, 1]} : vector<8x16x4xf32> to vector<1x16x4xf32>
    %96 = vector.shape_cast %95 : vector<1x16x4xf32> to vector<16x4xf32>
    %97 = tpu.concatenate %82, %84, %86, %88, %90, %92, %94, %96 in 1 : vector<16x4xf32>, vector<16x4xf32>, vector<16x4xf32>, vector<16x4xf32>, vector<16x4xf32>, vector<16x4xf32>, vector<16x4xf32>, vector<16x4xf32> -> vector<16x32xf32>
    %98 = arith.truncf %97 : vector<16x32xf32> to vector<16x32xbf16>
    %c0_13 = arith.constant 0 : index
    %c0_14 = arith.constant 0 : index
    %c0_15 = arith.constant 0 : index
    %99 = vector.load %arg8[%c0_13, %c0_14, %c0_15] : memref<1x32x32xbf16, #tpu.memory_space<vmem>>, vector<1x32x32xbf16>
    %100 = vector.shape_cast %99 : vector<1x32x32xbf16> to vector<32x32xbf16>
    %cst_16 = arith.constant dense<0.000000e+00> : vector<16x32xf32>
    %101 = tpu.matmul %98, %100, %cst_16 {dimension_numbers = #tpu.dot_dimension_numbers<[1], [0], [0], [1], [0, 0, 1, 1], [], []>} : vector<16x32xbf16>, vector<32x32xbf16>, vector<16x32xf32> -> vector<16x32xf32>
    %c0_17 = arith.constant 0 : index
    %c0_18 = arith.constant 0 : index
    %c0_19 = arith.constant 0 : index
    %102 = vector.load %arg9[%c0_17, %c0_18, %c0_19] : memref<1x1x32xf32, #tpu.memory_space<vmem>>, vector<1x1x32xf32>
    %103 = vector.shape_cast %102 : vector<1x1x32xf32> to vector<1x32xf32>
    %104 = vector.broadcast %103 : vector<1x32xf32> to vector<16x32xf32>
    %105 = arith.addf %101, %104 : vector<16x32xf32>
    %106 = arith.addf %3, %105 : vector<16x32xf32>
    %c0_20 = arith.constant 0 : index
    %c0_21 = arith.constant 0 : index
    %c0_22 = arith.constant 0 : index
    %107 = vector.load %arg10[%c0_20, %c0_21, %c0_22] : memref<1x1x32xf32, #tpu.memory_space<vmem>>, vector<1x1x32xf32>
    %108 = vector.shape_cast %107 : vector<1x1x32xf32> to vector<1x32xf32>
    %c0_23 = arith.constant 0 : index
    %c0_24 = arith.constant 0 : index
    %c0_25 = arith.constant 0 : index
    %109 = vector.load %arg11[%c0_23, %c0_24, %c0_25] : memref<1x1x32xf32, #tpu.memory_space<vmem>>, vector<1x1x32xf32>
    %110 = vector.shape_cast %109 : vector<1x1x32xf32> to vector<1x32xf32>
    %cst_26 = arith.constant dense<0.000000e+00> : vector<16xf32>
    %111 = vector.multi_reduction <add>, %106, %cst_26 [1] : vector<16x32xf32> to vector<16xf32>
    %112 = vector.shape_cast %111 : vector<16xf32> to vector<16x1xf32>
    %cst_27 = arith.constant 3.200000e+01 : f32
    %113 = vector.broadcast %cst_27 : f32 to vector<16x1xf32>
    %114 = arith.divf %112, %113 : vector<16x1xf32>
    %115 = vector.broadcast %114 : vector<16x1xf32> to vector<16x32xf32>
    %116 = arith.subf %106, %115 : vector<16x32xf32>
    %117 = arith.mulf %116, %116 : vector<16x32xf32>
    %cst_28 = arith.constant dense<0.000000e+00> : vector<16xf32>
    %118 = vector.multi_reduction <add>, %117, %cst_28 [1] : vector<16x32xf32> to vector<16xf32>
    %119 = vector.shape_cast %118 : vector<16xf32> to vector<16x1xf32>
    %cst_29 = arith.constant 3.200000e+01 : f32
    %120 = vector.broadcast %cst_29 : f32 to vector<16x1xf32>
    %121 = arith.divf %119, %120 : vector<16x1xf32>
    %cst_30 = arith.constant 9.99999974E-6 : f32
    %122 = vector.broadcast %cst_30 : f32 to vector<16x1xf32>
    %123 = arith.addf %121, %122 : vector<16x1xf32>
    %124 = math.rsqrt %123 : vector<16x1xf32>
    %125 = vector.broadcast %124 : vector<16x1xf32> to vector<16x32xf32>
    %126 = arith.mulf %116, %125 : vector<16x32xf32>
    %127 = vector.broadcast %108 : vector<1x32xf32> to vector<16x32xf32>
    %128 = arith.mulf %126, %127 : vector<16x32xf32>
    %129 = vector.broadcast %110 : vector<1x32xf32> to vector<16x32xf32>
    %130 = arith.addf %128, %129 : vector<16x32xf32>
    %131 = arith.truncf %130 : vector<16x32xf32> to vector<16x32xbf16>
    %c0_31 = arith.constant 0 : index
    %c0_32 = arith.constant 0 : index
    %c0_33 = arith.constant 0 : index
    %132 = vector.load %arg12[%c0_31, %c0_32, %c0_33] : memref<1x32x2048xbf16, #tpu.memory_space<vmem>>, vector<1x32x2048xbf16>
    %133 = vector.shape_cast %132 : vector<1x32x2048xbf16> to vector<32x2048xbf16>
    %cst_34 = arith.constant dense<0.000000e+00> : vector<16x2048xf32>
    %134 = tpu.matmul %131, %133, %cst_34 {dimension_numbers = #tpu.dot_dimension_numbers<[1], [0], [0], [1], [0, 0, 1, 1], [], []>} : vector<16x32xbf16>, vector<32x2048xbf16>, vector<16x2048xf32> -> vector<16x2048xf32>
    %c0_35 = arith.constant 0 : index
    %c0_36 = arith.constant 0 : index
    %c0_37 = arith.constant 0 : index
    %135 = vector.load %arg13[%c0_35, %c0_36, %c0_37] : memref<1x1x2048xf32, #tpu.memory_space<vmem>>, vector<1x1x2048xf32>
    %136 = vector.shape_cast %135 : vector<1x1x2048xf32> to vector<1x2048xf32>
    %137 = vector.broadcast %136 : vector<1x2048xf32> to vector<16x2048xf32>
    %138 = arith.addf %134, %137 : vector<16x2048xf32>
    %cst_38 = arith.constant 0.000000e+00 : f32
    %139 = vector.broadcast %cst_38 : f32 to vector<16x2048xf32>
    %140 = arith.maximumf %138, %139 : vector<16x2048xf32>
    %141 = arith.truncf %140 : vector<16x2048xf32> to vector<16x2048xbf16>
    %c0_39 = arith.constant 0 : index
    %c0_40 = arith.constant 0 : index
    %c0_41 = arith.constant 0 : index
    %142 = vector.load %arg14[%c0_39, %c0_40, %c0_41] : memref<1x32x2048xbf16, #tpu.memory_space<vmem>>, vector<1x32x2048xbf16>
    %143 = vector.shape_cast %142 : vector<1x32x2048xbf16> to vector<32x2048xbf16>
    %cst_42 = arith.constant dense<0.000000e+00> : vector<16x32xf32>
    %144 = tpu.matmul %141, %143, %cst_42 {dimension_numbers = #tpu.dot_dimension_numbers<[1], [1], [0], [0], [0, 0, 1, 0], [], []>} : vector<16x2048xbf16>, vector<32x2048xbf16>, vector<16x32xf32> -> vector<16x32xf32>
    %c0_43 = arith.constant 0 : index
    %c0_44 = arith.constant 0 : index
    %c0_45 = arith.constant 0 : index
    %145 = vector.load %arg15[%c0_43, %c0_44, %c0_45] : memref<1x1x32xf32, #tpu.memory_space<vmem>>, vector<1x1x32xf32>
    %146 = vector.shape_cast %145 : vector<1x1x32xf32> to vector<1x32xf32>
    %147 = vector.broadcast %146 : vector<1x32xf32> to vector<16x32xf32>
    %148 = arith.addf %144, %147 : vector<16x32xf32>
    %149 = arith.addf %130, %148 : vector<16x32xf32>
    %c0_46 = arith.constant 0 : index
    %c0_47 = arith.constant 0 : index
    %c0_48 = arith.constant 0 : index
    %150 = vector.load %arg16[%c0_46, %c0_47, %c0_48] : memref<1x1x32xf32, #tpu.memory_space<vmem>>, vector<1x1x32xf32>
    %151 = vector.shape_cast %150 : vector<1x1x32xf32> to vector<1x32xf32>
    %c0_49 = arith.constant 0 : index
    %c0_50 = arith.constant 0 : index
    %c0_51 = arith.constant 0 : index
    %152 = vector.load %arg17[%c0_49, %c0_50, %c0_51] : memref<1x1x32xf32, #tpu.memory_space<vmem>>, vector<1x1x32xf32>
    %153 = vector.shape_cast %152 : vector<1x1x32xf32> to vector<1x32xf32>
    %cst_52 = arith.constant dense<0.000000e+00> : vector<16xf32>
    %154 = vector.multi_reduction <add>, %149, %cst_52 [1] : vector<16x32xf32> to vector<16xf32>
    %155 = vector.shape_cast %154 : vector<16xf32> to vector<16x1xf32>
    %cst_53 = arith.constant 3.200000e+01 : f32
    %156 = vector.broadcast %cst_53 : f32 to vector<16x1xf32>
    %157 = arith.divf %155, %156 : vector<16x1xf32>
    %158 = vector.broadcast %157 : vector<16x1xf32> to vector<16x32xf32>
    %159 = arith.subf %149, %158 : vector<16x32xf32>
    %160 = arith.mulf %159, %159 : vector<16x32xf32>
    %cst_54 = arith.constant dense<0.000000e+00> : vector<16xf32>
    %161 = vector.multi_reduction <add>, %160, %cst_54 [1] : vector<16x32xf32> to vector<16xf32>
    %162 = vector.shape_cast %161 : vector<16xf32> to vector<16x1xf32>
    %cst_55 = arith.constant 3.200000e+01 : f32
    %163 = vector.broadcast %cst_55 : f32 to vector<16x1xf32>
    %164 = arith.divf %162, %163 : vector<16x1xf32>
    %cst_56 = arith.constant 9.99999974E-6 : f32
    %165 = vector.broadcast %cst_56 : f32 to vector<16x1xf32>
    %166 = arith.addf %164, %165 : vector<16x1xf32>
    %167 = math.rsqrt %166 : vector<16x1xf32>
    %168 = vector.broadcast %167 : vector<16x1xf32> to vector<16x32xf32>
    %169 = arith.mulf %159, %168 : vector<16x32xf32>
    %170 = vector.broadcast %151 : vector<1x32xf32> to vector<16x32xf32>
    %171 = arith.mulf %169, %170 : vector<16x32xf32>
    %172 = vector.broadcast %153 : vector<1x32xf32> to vector<16x32xf32>
    %173 = arith.addf %171, %172 : vector<16x32xf32>
    %c0_57 = arith.constant 0 : index
    %c0_58 = arith.constant 0 : index
    %174 = vector.load %arg19[%c0_57, %c0_58] : memref<16x32xf32, #tpu.memory_space<vmem>>, vector<16x32xf32>
    tpu.vector_store %arg19[%c0_57, %c0_58], %173 {strides = array<i32>} : memref<16x32xf32, #tpu.memory_space<vmem>>, vector<16x32xf32>,
    %c5_i32 = arith.constant 5 : i32
    %175 = arith.cmpi eq, %arg0, %c5_i32 : i32
    %176 = arith.extui %175 : i1 to i32
    %c0_i32_59 = arith.constant 0 : i32
    %177 = arith.cmpi ne, %176, %c0_i32_59 : i32
    scf.if %177 {
      %cst_60 = arith.constant 0.000000e+00 : f32
      %178 = vector.broadcast %cst_60 : f32 to vector<16x32xf32>
      %179 = arith.maximumf %173, %178 : vector<16x32xf32>
      %c0_61 = arith.constant 0 : index
      %c0_62 = arith.constant 0 : index
      %180 = vector.load %arg18[%c0_61, %c0_62] : memref<16x32xf32, #tpu.memory_space<vmem>>, vector<16x32xf32>
      tpu.vector_store %arg18[%c0_61, %c0_62], %179 {strides = array<i32>} : memref<16x32xf32, #tpu.memory_space<vmem>>, vector<16x32xf32>,
    } else {
    }
    return
  }
  func.func @transform_0(%arg0: i32) -> (i32, i32, i32) {
    %c0_i32 = arith.constant 0 : i32
    %c0_i32_0 = arith.constant 0 : i32
    %c0_i32_1 = arith.constant 0 : i32
    %c0_i32_2 = arith.constant 0 : i32
    return %c0_i32, %c0_i32_0, %c0_i32_1 : i32, i32, i32
  }
  func.func @transform_1(%arg0: i32) -> (i32, i32, i32) {
    %c0_i32 = arith.constant 0 : i32
    %c0_i32_0 = arith.constant 0 : i32
    %c0_i32_1 = arith.constant 0 : i32
    %c0_i32_2 = arith.constant 0 : i32
    return %c0_i32, %c0_i32_0, %c0_i32_1 : i32, i32, i32
  }
  func.func @transform_2(%arg0: i32) -> (i32, i32) {
    %c0_i32 = arith.constant 0 : i32
    %c0_i32_0 = arith.constant 0 : i32
    %c0_i32_1 = arith.constant 0 : i32
    return %c0_i32, %c0_i32_0 : i32, i32
  }
  func.func @transform_3(%arg0: i32) -> (i32, i32) {
    %c0_i32 = arith.constant 0 : i32
    %c0_i32_0 = arith.constant 0 : i32
    %c0_i32_1 = arith.constant 0 : i32
    return %c0_i32, %c0_i32_0 : i32, i32
  }
  func.func @transform_4(%arg0: i32) -> (i32, i32) {
    %c0_i32 = arith.constant 0 : i32
    %c0_i32_0 = arith.constant 0 : i32
    %c0_i32_1 = arith.constant 0 : i32
    return %c0_i32, %c0_i32_0 : i32, i32
  }
  func.func @transform_5(%arg0: i32) -> (i32, i32, i32) {
    %c0_i32 = arith.constant 0 : i32
    %c0_i32_0 = arith.constant 0 : i32
    %c0_i32_1 = arith.constant 0 : i32
    return %arg0, %c0_i32, %c0_i32_0 : i32, i32, i32
  }
  func.func @transform_6(%arg0: i32) -> (i32, i32, i32) {
    %c0_i32 = arith.constant 0 : i32
    %c0_i32_0 = arith.constant 0 : i32
    %c0_i32_1 = arith.constant 0 : i32
    return %arg0, %c0_i32, %c0_i32_0 : i32, i32, i32
  }
  func.func @transform_7(%arg0: i32) -> (i32, i32, i32) {
    %c0_i32 = arith.constant 0 : i32
    %c0_i32_0 = arith.constant 0 : i32
    %c0_i32_1 = arith.constant 0 : i32
    return %arg0, %c0_i32, %c0_i32_0 : i32, i32, i32
  }
  func.func @transform_8(%arg0: i32) -> (i32, i32, i32) {
    %c0_i32 = arith.constant 0 : i32
    %c0_i32_0 = arith.constant 0 : i32
    %c0_i32_1 = arith.constant 0 : i32
    return %arg0, %c0_i32, %c0_i32_0 : i32, i32, i32
  }
  func.func @transform_9(%arg0: i32) -> (i32, i32, i32) {
    %c0_i32 = arith.constant 0 : i32
    %c0_i32_0 = arith.constant 0 : i32
    %c0_i32_1 = arith.constant 0 : i32
    return %arg0, %c0_i32, %c0_i32_0 : i32, i32, i32
  }
  func.func @transform_10(%arg0: i32) -> (i32, i32, i32) {
    %c0_i32 = arith.constant 0 : i32
    %c0_i32_0 = arith.constant 0 : i32
    %c0_i32_1 = arith.constant 0 : i32
    return %arg0, %c0_i32, %c0_i32_0 : i32, i32, i32
  }
  func.func @transform_11(%arg0: i32) -> (i32, i32, i32) {
    %c0_i32 = arith.constant 0 : i32
    %c0_i32_0 = arith.constant 0 : i32
    %c0_i32_1 = arith.constant 0 : i32
    return %arg0, %c0_i32, %c0_i32_0 : i32, i32, i32
  }
  func.func @transform_12(%arg0: i32) -> (i32, i32, i32) {
    %c0_i32 = arith.constant 0 : i32
    %c0_i32_0 = arith.constant 0 : i32
    %c0_i32_1 = arith.constant 0 : i32
    return %arg0, %c0_i32, %c0_i32_0 : i32, i32, i32
  }
  func.func @transform_13(%arg0: i32) -> (i32, i32, i32) {
    %c0_i32 = arith.constant 0 : i32
    %c0_i32_0 = arith.constant 0 : i32
    %c0_i32_1 = arith.constant 0 : i32
    return %arg0, %c0_i32, %c0_i32_0 : i32, i32, i32
  }
  func.func @transform_14(%arg0: i32) -> (i32, i32, i32) {
    %c0_i32 = arith.constant 0 : i32
    %c0_i32_0 = arith.constant 0 : i32
    %c0_i32_1 = arith.constant 0 : i32
    return %arg0, %c0_i32, %c0_i32_0 : i32, i32, i32
  }
  func.func @transform_15(%arg0: i32) -> (i32, i32, i32) {
    %c0_i32 = arith.constant 0 : i32
    %c0_i32_0 = arith.constant 0 : i32
    %c0_i32_1 = arith.constant 0 : i32
    return %arg0, %c0_i32, %c0_i32_0 : i32, i32, i32
  }
  func.func @transform_16(%arg0: i32) -> (i32, i32, i32) {
    %c0_i32 = arith.constant 0 : i32
    %c0_i32_0 = arith.constant 0 : i32
    %c0_i32_1 = arith.constant 0 : i32
    return %arg0, %c0_i32, %c0_i32_0 : i32, i32, i32
  }
  func.func @transform_17(%arg0: i32) -> (i32, i32) {
    %c0_i32 = arith.constant 0 : i32
    %c0_i32_0 = arith.constant 0 : i32
    %c0_i32_1 = arith.constant 0 : i32
    return %c0_i32, %c0_i32_0 : i32, i32
  }
}

</mosaic_0001>

<llo_original>
// kernel: tpu_custom_call.1
$region0: #{tpu_custom_call.1}
  #allocation0 [shape = 'u32[]', space=smem, size = 0x4, offset = 0x4, fixed_abs, tag = 'smem constant byte address 0x4 - core index']
  #allocation1 [shape = 'u32[144,128]{1,0:T(1,128)}', space=vmem, size = 0x12000, scoped, tag = 'internal scratch']
  #allocation2 [shape = 'f32[16,32]{1,0:T(8,128)}', space=vmem, size = 0x2000, scoped, tag = 'scratch operand']
  %s0 = inlined_call_operand.vmem [shape: f32[2,16,16], index: 0, kind: input, shape index: {}]
  %s1 = inlined_call_operand.vmem [shape: f32[2,16,8], index: 1, kind: input, shape index: {}]
  %s2 = inlined_call_operand.hbm [shape: bf16[8,16], index: 2, kind: input, shape index: {}]
  %s3 = inlined_call_operand.hbm [shape: f32[1,16], index: 3, kind: input, shape index: {}]
  %s4 = inlined_call_operand.vmem [shape: f32[16,32], index: 4, kind: input, shape index: {}]
  %s5 = inlined_call_operand.hbm [shape: bf16[6,32,96], index: 5, kind: input, shape index: {}]
  %s6 = inlined_call_operand.vmem [shape: f32[6,1,96], index: 6, kind: input, shape index: {}]
  %s7 = inlined_call_operand.hbm [shape: bf16[6,32,32], index: 7, kind: input, shape index: {}]
  %s8 = inlined_call_operand.vmem [shape: f32[6,1,32], index: 8, kind: input, shape index: {}]
  %s9 = inlined_call_operand.vmem [shape: f32[6,1,32], index: 9, kind: input, shape index: {}]
  %s10 = inlined_call_operand.vmem [shape: f32[6,1,32], index: 10, kind: input, shape index: {}]
  %s11 = inlined_call_operand.hbm [shape: bf16[6,32,2048], index: 11, kind: input, shape index: {}]
  %s12 = inlined_call_operand.hbm [shape: f32[6,1,2048], index: 12, kind: input, shape index: {}]
  %s13 = inlined_call_operand.hbm [shape: bf16[6,32,2048], index: 13, kind: input, shape index: {}]
  %s14 = inlined_call_operand.vmem [shape: f32[6,1,32], index: 14, kind: input, shape index: {}]
  %s15 = inlined_call_operand.vmem [shape: f32[6,1,32], index: 15, kind: input, shape index: {}]
  %s16 = inlined_call_operand.vmem [shape: f32[6,1,32], index: 16, kind: input, shape index: {}]
  %s17 = inlined_call_operand.hbm [shape: f32[16,32], index: 17, kind: output, shape index: {}]
  %s18 = sld [smem:[#allocation0]]
  $region137: #{tpu_custom_call.1} parent=0
    _
  %s20 = ssub.s32 1, %s18
  %s21 = scalar_select 0, %s20, %s18
  $region1: #{tpu_custom_call.1} parent=0
    #allocation3 [shape = 'u8[2048]{0}', space=vmem, size = 0x800, scoped, tag = 'input window, operand 2, single buffered']
    #allocation4 [shape = 's32[2]{0}', space=sflag, size = 0x8, scoped, tag = 'scoped memory for tpu_custom_call.1']
    #allocation5 [shape = 's32[2]{0}', space=sflag, size = 0x8, scoped, tag = 'scoped memory for tpu_custom_call.1']
    #allocation6 [shape = 'u8[512]{0}', space=vmem, size = 0x400, scoped, tag = 'input window, operand 3, single buffered']
    #allocation7 [shape = 's32[1]{0}', space=sflag, size = 0x4, scoped, tag = 'scoped memory for tpu_custom_call.1']
    #allocation8 [shape = 'u8[16384]{0}', space=vmem, size = 0x4000, scoped, tag = 'input window, operand 5']
    #allocation9 [shape = 'u8[16384]{0}', space=vmem, size = 0x4000, scoped, tag = 'input window, operand 7']
    #allocation10 [shape = 'u8[262144]{0}', space=vmem, size = 0x40000, scoped, tag = 'input window, operand 11']
    #allocation11 [shape = 'u8[16384]{0}', space=vmem, size = 0x4000, scoped, tag = 'input window, operand 12']
    #allocation12 [shape = 'u8[262144]{0}', space=vmem, size = 0x40000, scoped, tag = 'input window, operand 13']
    #allocation13 [shape = 'u8[8192]{0}', space=vmem, size = 0x2000, scoped, tag = 'output window, operand 0, single buffered']
    %22 = vsyncpa [#allocation4], 0
    %23 = vsyncpa [#allocation7], 0
    %24 = vsyncpa [#allocation5], 0
    loop: start=0, step=1, limit=8
    $region2: #{tpu_custom_call.1} parent=1 // loop_pre_header
      _
    $region3: #{tpu_custom_call.1} parent=1 // loop_header
      %s26 = sphi 0, %s30
      %p27 = scmp.ge.s32.totalorder %s26, 8
      %s34 = sphi 0, %s34
      %s36 = sphi 0, %s34
      %s37 = sphi 0, %s36
      %s51 = sphi 0, %s37
      %s55 = sphi 0, %s55
      %s57 = sphi 0, %s55
      %s58 = sphi 0, %s57
      %s72 = sphi 0, %s58
      %s76 = sphi 0, %s76
      %s78 = sphi 0, %s76
      %s79 = sphi 0, %s78
      %s93 = sphi 0, %s79
      %s97 = sphi 0, %s97
      %s99 = sphi 0, %s97
      %s100 = sphi 0, %s99
      %s114 = sphi 0, %s100
      %s118 = sphi 0, %s118
      %s120 = sphi 0, %s118
      %s121 = sphi 0, %s120
      %s135 = sphi 0, %s121
      %s141 = sphi 0, %s143
      %s144 = sphi 0, %s141
      %s145 = sphi 0, %s144
      %s161 = sphi 0, %s145
      %s167 = sphi 0, %s169
      %s170 = sphi 0, %s167
      %s171 = sphi 0, %s170
      %s187 = sphi 0, %s171
      %s193 = sphi 0, %s195
      %s196 = sphi 0, %s193
      %s197 = sphi 0, %s196
      %s213 = sphi 0, %s197
      %s219 = sphi 0, %s221
      %s222 = sphi 0, %s219
      %s223 = sphi 0, %s222
      %s239 = sphi 0, %s223
      %s245 = sphi 0, %s247
      %s248 = sphi 0, %s245
      %s249 = sphi 0, %s248
      %s265 = sphi 0, %s249
      %s271 = sphi 0, %s273
      %s274 = sphi 0, %s271
      %s275 = sphi 0, %s274
      %s291 = sphi 0, %s275
      %s297 = sphi 0, %s299
      %s300 = sphi 0, %s297
      %s301 = sphi 0, %s300
      %s317 = sphi 0, %s301
      %s323 = sphi 0, %s325
      %s326 = sphi 0, %s323
      %s327 = sphi 0, %s326
      %s343 = sphi 0, %s327
      %s349 = sphi 0, %s351
      %s352 = sphi 0, %s349
      %s353 = sphi 0, %s352
      %s369 = sphi 0, %s353
      %s375 = sphi 0, %s377
      %s378 = sphi 0, %s375
      %s379 = sphi 0, %s378
      %s395 = sphi 0, %s379
      %s401 = sphi 0, %s403
      %s404 = sphi 0, %s401
      %s405 = sphi 0, %s404
      %s421 = sphi 0, %s405
      %s427 = sphi 0, %s429
      %s430 = sphi 0, %s427
      %s431 = sphi 0, %s430
      %s447 = sphi 0, %s431
      %s451 = sphi 0, %s451
      %s453 = sphi 0, %s451
      %s454 = sphi 0, %s453
      %s468 = sphi 0, %s454
    $region4: #{tpu_custom_call.1} parent=1 // loop_header_branch
      %29 = sbr.rel (%p27) target = $region8
    $region5: #{tpu_custom_call.1} parent=1 // loop_body
      %s31 = ssub.s32 %s26, 1
      %s32 = ssub.s32 %s26, 2
      %s33 = sadd.s32 %s26, 1
      %s35 = sadd.s32 %s34, 1
      %p38 = scmp.eq.s32.totalorder %s26, 5
      %p39 = scmp.ne.s32.totalorder %s34, %s36
      %p40 = scmp.eq.s32.totalorder %s26, 0
      %p41 = por %p39, %p40
      %p42 = scmp.ne.s32.totalorder %s34, %s36
      %p43 = scmp.eq.s32.totalorder %s31, 5
      %p44 = por %p42, %p43
      %p45 = scmp.ne.s32.totalorder %s36, %s37
      %p46 = scmp.eq.s32.totalorder %s31, 0
      %p47 = por %p45, %p46
      %p48 = scmp.ne.s32.totalorder %s36, %s37
      %p49 = scmp.eq.s32.totalorder %s32, 5
      %p50 = por %p48, %p49
      %p52 = scmp.ne.s32.totalorder %s37, %s51
      %p53 = scmp.eq.s32.totalorder %s32, 0
      %p54 = por %p52, %p53
      %s56 = sadd.s32 %s55, 1
      %p59 = scmp.eq.s32.totalorder %s26, 5
      %p60 = scmp.ne.s32.totalorder %s55, %s57
      %p61 = scmp.eq.s32.totalorder %s26, 0
      %p62 = por %p60, %p61
      %p63 = scmp.ne.s32.totalorder %s55, %s57
      %p64 = scmp.eq.s32.totalorder %s31, 5
      %p65 = por %p63, %p64
      %p66 = scmp.ne.s32.totalorder %s57, %s58
      %p67 = scmp.eq.s32.totalorder %s31, 0
      %p68 = por %p66, %p67
      %p69 = scmp.ne.s32.totalorder %s57, %s58
      %p70 = scmp.eq.s32.totalorder %s32, 5
      %p71 = por %p69, %p70
      %p73 = scmp.ne.s32.totalorder %s58, %s72
      %p74 = scmp.eq.s32.totalorder %s32, 0
      %p75 = por %p73, %p74
      %s77 = sadd.s32 %s76, 1
      %p80 = scmp.eq.s32.totalorder %s26, 5
      %p81 = scmp.ne.s32.totalorder %s76, %s78
      %p82 = scmp.eq.s32.totalorder %s26, 0
      %p83 = por %p81, %p82
      %p84 = scmp.ne.s32.totalorder %s76, %s78
      %p85 = scmp.eq.s32.totalorder %s31, 5
      %p86 = por %p84, %p85
      %p87 = scmp.ne.s32.totalorder %s78, %s79
      %p88 = scmp.eq.s32.totalorder %s31, 0
      %p89 = por %p87, %p88
      %p90 = scmp.ne.s32.totalorder %s78, %s79
      %p91 = scmp.eq.s32.totalorder %s32, 5
      %p92 = por %p90, %p91
      %p94 = scmp.ne.s32.totalorder %s79, %s93
      %p95 = scmp.eq.s32.totalorder %s32, 0
      %p96 = por %p94, %p95
      %s98 = sadd.s32 %s97, 1
      %p101 = scmp.eq.s32.totalorder %s26, 5
      %p102 = scmp.ne.s32.totalorder %s97, %s99
      %p103 = scmp.eq.s32.totalorder %s26, 0
      %p104 = por %p102, %p103
      %p105 = scmp.ne.s32.totalorder %s97, %s99
      %p106 = scmp.eq.s32.totalorder %s31, 5
      %p107 = por %p105, %p106
      %p108 = scmp.ne.s32.totalorder %s99, %s100
      %p109 = scmp.eq.s32.totalorder %s31, 0
      %p110 = por %p108, %p109
      %p111 = scmp.ne.s32.totalorder %s99, %s100
      %p112 = scmp.eq.s32.totalorder %s32, 5
      %p113 = por %p111, %p112
      %p115 = scmp.ne.s32.totalorder %s100, %s114
      %p116 = scmp.eq.s32.totalorder %s32, 0
      %p117 = por %p115, %p116
      %s119 = sadd.s32 %s118, 1
      %p122 = scmp.eq.s32.totalorder %s26, 5
      %p123 = scmp.ne.s32.totalorder %s118, %s120
      %p124 = scmp.eq.s32.totalorder %s26, 0
      %p125 = por %p123, %p124
      %p126 = scmp.ne.s32.totalorder %s118, %s120
      %p127 = scmp.eq.s32.totalorder %s31, 5
      %p128 = por %p126, %p127
      %p129 = scmp.ne.s32.totalorder %s120, %s121
      %p130 = scmp.eq.s32.totalorder %s31, 0
      %p131 = por %p129, %p130
      %p132 = scmp.ne.s32.totalorder %s120, %s121
      %p133 = scmp.eq.s32.totalorder %s32, 5
      %p134 = por %p132, %p133
      %p136 = scmp.ne.s32.totalorder %s121, %s135
      %p137 = scmp.eq.s32.totalorder %s32, 0
      %p138 = por %p136, %p137
      %s139 = ssub.s32 %s26, %s33
      %p140 = scmp.eq.s32.totalorder %s139, 0
      %s142 = sadd.s32 %s141, 1
      %s143 = scalar_select %p140, %s141, %s142
      %p146 = pneg %p140
      %p147 = scmp.eq.s32.totalorder %s26, 5
      %p148 = por %p146, %p147
      %p149 = scmp.ne.s32.totalorder %s141, %s144
      %p150 = scmp.eq.s32.totalorder %s26, 0
      %p151 = por %p149, %p150
      %p152 = scmp.ne.s32.totalorder %s141, %s144
      %p153 = scmp.eq.s32.totalorder %s31, 5
      %p154 = por %p152, %p153
      %p155 = scmp.ne.s32.totalorder %s144, %s145
      %p156 = scmp.eq.s32.totalorder %s31, 0
      %p157 = por %p155, %p156
      %p158 = scmp.ne.s32.totalorder %s144, %s145
      %p159 = scmp.eq.s32.totalorder %s32, 5
      %p160 = por %p158, %p159
      %p162 = scmp.ne.s32.totalorder %s145, %s161
      %p163 = scmp.eq.s32.totalorder %s32, 0
      %p164 = por %p162, %p163
      %s165 = ssub.s32 %s26, %s33
      %p166 = scmp.eq.s32.totalorder %s165, 0
      %s168 = sadd.s32 %s167, 1
      %s169 = scalar_select %p166, %s167, %s168
      %p172 = pneg %p166
      %p173 = scmp.eq.s32.totalorder %s26, 5
      %p174 = por %p172, %p173
      %p175 = scmp.ne.s32.totalorder %s167, %s170
      %p176 = scmp.eq.s32.totalorder %s26, 0
      %p177 = por %p175, %p176
      %p178 = scmp.ne.s32.totalorder %s167, %s170
      %p179 = scmp.eq.s32.totalorder %s31, 5
      %p180 = por %p178, %p179
      %p181 = scmp.ne.s32.totalorder %s170, %s171
      %p182 = scmp.eq.s32.totalorder %s31, 0
      %p183 = por %p181, %p182
      %p184 = scmp.ne.s32.totalorder %s170, %s171
      %p185 = scmp.eq.s32.totalorder %s32, 5
      %p186 = por %p184, %p185
      %p188 = scmp.ne.s32.totalorder %s171, %s187
      %p189 = scmp.eq.s32.totalorder %s32, 0
      %p190 = por %p188, %p189
      %s191 = ssub.s32 %s26, %s33
      %p192 = scmp.eq.s32.totalorder %s191, 0
      %s194 = sadd.s32 %s193, 1
      %s195 = scalar_select %p192, %s193, %s194
      %p198 = pneg %p192
      %p199 = scmp.eq.s32.totalorder %s26, 5
      %p200 = por %p198, %p199
      %p201 = scmp.ne.s32.totalorder %s193, %s196
      %p202 = scmp.eq.s32.totalorder %s26, 0
      %p203 = por %p201, %p202
      %p204 = scmp.ne.s32.totalorder %s193, %s196
      %p205 = scmp.eq.s32.totalorder %s31, 5
      %p206 = por %p204, %p205
      %p207 = scmp.ne.s32.totalorder %s196, %s197
      %p208 = scmp.eq.s32.totalorder %s31, 0
      %p209 = por %p207, %p208
      %p210 = scmp.ne.s32.totalorder %s196, %s197
      %p211 = scmp.eq.s32.totalorder %s32, 5
      %p212 = por %p210, %p211
      %p214 = scmp.ne.s32.totalorder %s197, %s213
      %p215 = scmp.eq.s32.totalorder %s32, 0
      %p216 = por %p214, %p215
      %s217 = ssub.s32 %s26, %s33
      %p218 = scmp.eq.s32.totalorder %s217, 0
      %s220 = sadd.s32 %s219, 1
      %s221 = scalar_select %p218, %s219, %s220
      %p224 = pneg %p218
      %p225 = scmp.eq.s32.totalorder %s26, 5
      %p226 = por %p224, %p225
      %p227 = scmp.ne.s32.totalorder %s219, %s222
      %p228 = scmp.eq.s32.totalorder %s26, 0
      %p229 = por %p227, %p228
      %p230 = scmp.ne.s32.totalorder %s219, %s222
      %p231 = scmp.eq.s32.totalorder %s31, 5
      %p232 = por %p230, %p231
      %p233 = scmp.ne.s32.totalorder %s222, %s223
      %p234 = scmp.eq.s32.totalorder %s31, 0
      %p235 = por %p233, %p234
      %p236 = scmp.ne.s32.totalorder %s222, %s223
      %p237 = scmp.eq.s32.totalorder %s32, 5
      %p238 = por %p236, %p237
      %p240 = scmp.ne.s32.totalorder %s223, %s239
      %p241 = scmp.eq.s32.totalorder %s32, 0
      %p242 = por %p240, %p241
      %s243 = ssub.s32 %s26, %s33
      %p244 = scmp.eq.s32.totalorder %s243, 0
      %s246 = sadd.s32 %s245, 1
      %s247 = scalar_select %p244, %s245, %s246
      %p250 = pneg %p244
      %p251 = scmp.eq.s32.totalorder %s26, 5
      %p252 = por %p250, %p251
      %p253 = scmp.ne.s32.totalorder %s245, %s248
      %p254 = scmp.eq.s32.totalorder %s26, 0
      %p255 = por %p253, %p254
      %p256 = scmp.ne.s32.totalorder %s245, %s248
      %p257 = scmp.eq.s32.totalorder %s31, 5
      %p258 = por %p256, %p257
      %p259 = scmp.ne.s32.totalorder %s248, %s249
      %p260 = scmp.eq.s32.totalorder %s31, 0
      %p261 = por %p259, %p260
      %p262 = scmp.ne.s32.totalorder %s248, %s249
      %p263 = scmp.eq.s32.totalorder %s32, 5
      %p264 = por %p262, %p263
      %p266 = scmp.ne.s32.totalorder %s249, %s265
      %p267 = scmp.eq.s32.totalorder %s32, 0
      %p268 = por %p266, %p267
      %s269 = ssub.s32 %s26, %s33
      %p270 = scmp.eq.s32.totalorder %s269, 0
      %s272 = sadd.s32 %s271, 1
      %s273 = scalar_select %p270, %s271, %s272
      %p276 = pneg %p270
      %p277 = scmp.eq.s32.totalorder %s26, 5
      %p278 = por %p276, %p277
      %p279 = scmp.ne.s32.totalorder %s271, %s274
      %p280 = scmp.eq.s32.totalorder %s26, 0
      %p281 = por %p279, %p280
      %p282 = scmp.ne.s32.totalorder %s271, %s274
      %p283 = scmp.eq.s32.totalorder %s31, 5
      %p284 = por %p282, %p283
      %p285 = scmp.ne.s32.totalorder %s274, %s275
      %p286 = scmp.eq.s32.totalorder %s31, 0
      %p287 = por %p285, %p286
      %p288 = scmp.ne.s32.totalorder %s274, %s275
      %p289 = scmp.eq.s32.totalorder %s32, 5
      %p290 = por %p288, %p289
      %p292 = scmp.ne.s32.totalorder %s275, %s291
      %p293 = scmp.eq.s32.totalorder %s32, 0
      %p294 = por %p292, %p293
      %s295 = ssub.s32 %s26, %s33
      %p296 = scmp.eq.s32.totalorder %s295, 0
      %s298 = sadd.s32 %s297, 1
      %s299 = scalar_select %p296, %s297, %s298
      %p302 = pneg %p296
      %p303 = scmp.eq.s32.totalorder %s26, 5
      %p304 = por %p302, %p303
      %p305 = scmp.ne.s32.totalorder %s297, %s300
      %p306 = scmp.eq.s32.totalorder %s26, 0
      %p307 = por %p305, %p306
      %p308 = scmp.ne.s32.totalorder %s297, %s300
      %p309 = scmp.eq.s32.totalorder %s31, 5
      %p310 = por %p308, %p309
      %p311 = scmp.ne.s32.totalorder %s300, %s301
      %p312 = scmp.eq.s32.totalorder %s31, 0
      %p313 = por %p311, %p312
      %p314 = scmp.ne.s32.totalorder %s300, %s301
      %p315 = scmp.eq.s32.totalorder %s32, 5
      %p316 = por %p314, %p315
      %p318 = scmp.ne.s32.totalorder %s301, %s317
      %p319 = scmp.eq.s32.totalorder %s32, 0
      %p320 = por %p318, %p319
      %s321 = ssub.s32 %s26, %s33
      %p322 = scmp.eq.s32.totalorder %s321, 0
      %s324 = sadd.s32 %s323, 1
      %s325 = scalar_select %p322, %s323, %s324
      %p328 = pneg %p322
      %p329 = scmp.eq.s32.totalorder %s26, 5
      %p330 = por %p328, %p329
      %p331 = scmp.ne.s32.totalorder %s323, %s326
      %p332 = scmp.eq.s32.totalorder %s26, 0
      %p333 = por %p331, %p332
      %p334 = scmp.ne.s32.totalorder %s323, %s326
      %p335 = scmp.eq.s32.totalorder %s31, 5
      %p336 = por %p334, %p335
      %p337 = scmp.ne.s32.totalorder %s326, %s327
      %p338 = scmp.eq.s32.totalorder %s31, 0
      %p339 = por %p337, %p338
      %p340 = scmp.ne.s32.totalorder %s326, %s327
      %p341 = scmp.eq.s32.totalorder %s32, 5
      %p342 = por %p340, %p341
      %p344 = scmp.ne.s32.totalorder %s327, %s343
      %p345 = scmp.eq.s32.totalorder %s32, 0
      %p346 = por %p344, %p345
      %s347 = ssub.s32 %s26, %s33
      %p348 = scmp.eq.s32.totalorder %s347, 0
      %s350 = sadd.s32 %s349, 1
      %s351 = scalar_select %p348, %s349, %s350
      %p354 = pneg %p348
      %p355 = scmp.eq.s32.totalorder %s26, 5
      %p356 = por %p354, %p355
      %p357 = scmp.ne.s32.totalorder %s349, %s352
      %p358 = scmp.eq.s32.totalorder %s26, 0
      %p359 = por %p357, %p358
      %p360 = scmp.ne.s32.totalorder %s349, %s352
      %p361 = scmp.eq.s32.totalorder %s31, 5
      %p362 = por %p360, %p361
      %p363 = scmp.ne.s32.totalorder %s352, %s353
      %p364 = scmp.eq.s32.totalorder %s31, 0
      %p365 = por %p363, %p364
      %p366 = scmp.ne.s32.totalorder %s352, %s353
      %p367 = scmp.eq.s32.totalorder %s32, 5
      %p368 = por %p366, %p367
      %p370 = scmp.ne.s32.totalorder %s353, %s369
      %p371 = scmp.eq.s32.totalorder %s32, 0
      %p372 = por %p370, %p371
      %s373 = ssub.s32 %s26, %s33
      %p374 = scmp.eq.s32.totalorder %s373, 0
      %s376 = sadd.s32 %s375, 1
      %s377 = scalar_select %p374, %s375, %s376
      %p380 = pneg %p374
      %p381 = scmp.eq.s32.totalorder %s26, 5
      %p382 = por %p380, %p381
      %p383 = scmp.ne.s32.totalorder %s375, %s378
      %p384 = scmp.eq.s32.totalorder %s26, 0
      %p385 = por %p383, %p384
      %p386 = scmp.ne.s32.totalorder %s375, %s378
      %p387 = scmp.eq.s32.totalorder %s31, 5
      %p388 = por %p386, %p387
      %p389 = scmp.ne.s32.totalorder %s378, %s379
      %p390 = scmp.eq.s32.totalorder %s31, 0
      %p391 = por %p389, %p390
      %p392 = scmp.ne.s32.totalorder %s378, %s379
      %p393 = scmp.eq.s32.totalorder %s32, 5
      %p394 = por %p392, %p393
      %p396 = scmp.ne.s32.totalorder %s379, %s395
      %p397 = scmp.eq.s32.totalorder %s32, 0
      %p398 = por %p396, %p397
      %s399 = ssub.s32 %s26, %s33
      %p400 = scmp.eq.s32.totalorder %s399, 0
      %s402 = sadd.s32 %s401, 1
      %s403 = scalar_select %p400, %s401, %s402
      %p406 = pneg %p400
      %p407 = scmp.eq.s32.totalorder %s26, 5
      %p408 = por %p406, %p407
      %p409 = scmp.ne.s32.totalorder %s401, %s404
      %p410 = scmp.eq.s32.totalorder %s26, 0
      %p411 = por %p409, %p410
      %p412 = scmp.ne.s32.totalorder %s401, %s404
      %p413 = scmp.eq.s32.totalorder %s31, 5
      %p414 = por %p412, %p413
      %p415 = scmp.ne.s32.totalorder %s404, %s405
      %p416 = scmp.eq.s32.totalorder %s31, 0
      %p417 = por %p415, %p416
      %p418 = scmp.ne.s32.totalorder %s404, %s405
      %p419 = scmp.eq.s32.totalorder %s32, 5
      %p420 = por %p418, %p419
      %p422 = scmp.ne.s32.totalorder %s405, %s421
      %p423 = scmp.eq.s32.totalorder %s32, 0
      %p424 = por %p422, %p423
      %s425 = ssub.s32 %s26, %s33
      %p426 = scmp.eq.s32.totalorder %s425, 0
      %s428 = sadd.s32 %s427, 1
      %s429 = scalar_select %p426, %s427, %s428
      %p432 = pneg %p426
      %p433 = scmp.eq.s32.totalorder %s26, 5
      %p434 = por %p432, %p433
      %p435 = scmp.ne.s32.totalorder %s427, %s430
      %p436 = scmp.eq.s32.totalorder %s26, 0
      %p437 = por %p435, %p436
      %p438 = scmp.ne.s32.totalorder %s427, %s430
      %p439 = scmp.eq.s32.totalorder %s31, 5
      %p440 = por %p438, %p439
      %p441 = scmp.ne.s32.totalorder %s430, %s431
      %p442 = scmp.eq.s32.totalorder %s31, 0
      %p443 = por %p441, %p442
      %p444 = scmp.ne.s32.totalorder %s430, %s431
      %p445 = scmp.eq.s32.totalorder %s32, 5
      %p446 = por %p444, %p445
      %p448 = scmp.ne.s32.totalorder %s431, %s447
      %p449 = scmp.eq.s32.totalorder %s32, 0
      %p450 = por %p448, %p449
      %s452 = sadd.s32 %s451, 1
      %p455 = scmp.eq.s32.totalorder %s26, 5
      %p456 = scmp.ne.s32.totalorder %s451, %s453
      %p457 = scmp.eq.s32.totalorder %s26, 0
      %p458 = por %p456, %p457
      %p459 = scmp.ne.s32.totalorder %s451, %s453
      %p460 = scmp.eq.s32.totalorder %s31, 5
      %p461 = por %p459, %p460
      %p462 = scmp.ne.s32.totalorder %s453, %s454
      %p463 = scmp.eq.s32.totalorder %s31, 0
      %p464 = por %p462, %p463
      %p465 = scmp.ne.s32.totalorder %s453, %s454
      %p466 = scmp.eq.s32.totalorder %s32, 5
      %p467 = por %p465, %p466
      %p469 = scmp.ne.s32.totalorder %s454, %s468
      %p470 = scmp.eq.s32.totalorder %s32, 0
      %p471 = por %p469, %p470
      %p472 = scmp.le.s32.totalorder 1, %s26
      %p473 = scmp.lt.s32.totalorder %s26, 7
      %p474 = pnand %p472, %p473
      %p475 = pneg %p474
      // Predicated region
      $region9: #{tpu_custom_call.1} parent=5 // pred_check
        _
      $region10: #{tpu_custom_call.1} parent=5 // pred_check_branch
        %477 = sbr.rel (%p474) target = $region12
      $region11: #{tpu_custom_call.1} parent=5 // pred_region
        %s478 = ssub.s32 %s26, 1
        // Predicated region
        $region13: #{tpu_custom_call.1} parent=11 // pred_check
          %p479 = pneg %p47
        $region14: #{tpu_custom_call.1} parent=11 // pred_check_branch
          %481 = sbr.rel (%p479) target = $region16
        $region15: #{tpu_custom_call.1} parent=11 // pred_region
          _
        $region16: #{tpu_custom_call.1} parent=11 // pred_fallthru
          _
        // Predicated region
        $region17: #{tpu_custom_call.1} parent=11 // pred_check
          %p482 = pneg %p68
        $region18: #{tpu_custom_call.1} parent=11 // pred_check_branch
          %484 = sbr.rel (%p482) target = $region20
        $region19: #{tpu_custom_call.1} parent=11 // pred_region
          _
        $region20: #{tpu_custom_call.1} parent=11 // pred_fallthru
          _
        // Predicated region
        $region21: #{tpu_custom_call.1} parent=11 // pred_check
          %p485 = pneg %p89
        $region22: #{tpu_custom_call.1} parent=11 // pred_check_branch
          %487 = sbr.rel (%p485) target = $region24
        $region23: #{tpu_custom_call.1} parent=11 // pred_region
          %s489 = ssub.s32 64, 64
          %490 = vsyncadd [#allocation4], %s489
          %s492 = sshll.u32 [#allocation3], 4
          %s493 = int_to_ptr.vmem [resolvable:$true] %s492
          %495 = dma.hbm_to_vmem [thread:$0]  %s2, 64, %s493, [#allocation4]
        $region24: #{tpu_custom_call.1} parent=11 // pred_fallthru
          _
        // Predicated region
        $region25: #{tpu_custom_call.1} parent=11 // pred_check
          %p496 = pneg %p110
        $region26: #{tpu_custom_call.1} parent=11 // pred_check_branch
          %498 = sbr.rel (%p496) target = $region28
        $region27: #{tpu_custom_call.1} parent=11 // pred_region
          %s500 = ssub.s32 16, 16
          %501 = vsyncadd [#allocation7], %s500
          %s503 = sshll.u32 [#allocation6], 4
          %s504 = int_to_ptr.vmem [resolvable:$true] %s503
          %506 = dma.hbm_to_vmem [thread:$0]  %s3, 16, %s504, [#allocation7]
        $region28: #{tpu_custom_call.1} parent=11 // pred_fallthru
          _
        // Predicated region
        $region29: #{tpu_custom_call.1} parent=11 // pred_check
          %p507 = pneg %p131
        $region30: #{tpu_custom_call.1} parent=11 // pred_check_branch
          %509 = sbr.rel (%p507) target = $region32
        $region31: #{tpu_custom_call.1} parent=11 // pred_region
          _
        $region32: #{tpu_custom_call.1} parent=11 // pred_fallthru
          _
      $region12: #{tpu_custom_call.1} parent=5 // pred_fallthru
        _
      %p510 = scmp.lt.s32.totalorder %s26, 6
      // Predicated region
      $region33: #{tpu_custom_call.1} parent=5 // pred_check
        %p511 = pneg %p510
      $region34: #{tpu_custom_call.1} parent=5 // pred_check_branch
        %513 = sbr.rel (%p511) target = $region36
      $region35: #{tpu_custom_call.1} parent=5 // pred_region
        // Predicated region
        $region37: #{tpu_custom_call.1} parent=35 // pred_check
          %p514 = pneg %p151
        $region38: #{tpu_custom_call.1} parent=35 // pred_check_branch
          %516 = sbr.rel (%p514) target = $region40
        $region39: #{tpu_custom_call.1} parent=35 // pred_region
          %s517 = sand.u32 %s26, 1
          %s518 = scalar_lea.sflag [#allocation4], %s517
          %s519 = sand.u32 %s141, 1
          %s520 = smul.addr %s519, 16
          %s521 = scalar_lea.vmem [#allocation8], %s520
          %s523 = ssub.s32 256, 256
          %524 = vsyncadd %s518, %s523
          %s525 = smul.addr %s26, 4
          %s526 = smul.addr %s525, 64
          %s527 = scalar_lea.hbm %s5, %s526
          %s528 = sshll.u32 %s521, 4
          %s529 = int_to_ptr.vmem [resolvable:$true] %s528
          %534 = dma.hbm_to_vmem [thread:$0]  %s527, 256, %s529, %s518, 64, 64, 4
        $region40: #{tpu_custom_call.1} parent=35 // pred_fallthru
          _
        // Predicated region
        $region41: #{tpu_custom_call.1} parent=35 // pred_check
          %p535 = pneg %p177
        $region42: #{tpu_custom_call.1} parent=35 // pred_check_branch
          %537 = sbr.rel (%p535) target = $region44
        $region43: #{tpu_custom_call.1} parent=35 // pred_region
          %p538 = scmp.lt.s32.totalorder %s26, 5
          %s539 = scalar_select %p538, %s26, 5
          %s540 = scalar_lea.vmem %s6, %s539
        $region44: #{tpu_custom_call.1} parent=35 // pred_fallthru
          _
        // Predicated region
        $region45: #{tpu_custom_call.1} parent=35 // pred_check
          %p541 = pneg %p203
        $region46: #{tpu_custom_call.1} parent=35 // pred_check_branch
          %543 = sbr.rel (%p541) target = $region48
        $region47: #{tpu_custom_call.1} parent=35 // pred_region
          %s544 = sand.u32 %s26, 1
          %s545 = scalar_lea.sflag [#allocation4], %s544
          %s546 = sand.u32 %s193, 1
          %s547 = smul.addr %s546, 16
          %s548 = scalar_lea.vmem [#allocation9], %s547
          %s550 = ssub.s32 256, 256
          %551 = vsyncadd %s545, %s550
          %s552 = smul.addr %s26, 4
          %s553 = smul.addr %s552, 64
          %s554 = scalar_lea.hbm %s7, %s553
          %s555 = sshll.u32 %s548, 4
          %s556 = int_to_ptr.vmem [resolvable:$true] %s555
          %561 = dma.hbm_to_vmem [thread:$0]  %s554, 256, %s556, %s545, 64, 64, 4
        $region48: #{tpu_custom_call.1} parent=35 // pred_fallthru
          _
        // Predicated region
        $region49: #{tpu_custom_call.1} parent=35 // pred_check
          %p562 = pneg %p229
        $region50: #{tpu_custom_call.1} parent=35 // pred_check_branch
          %564 = sbr.rel (%p562) target = $region52
        $region51: #{tpu_custom_call.1} parent=35 // pred_region
          %p565 = scmp.lt.s32.totalorder %s26, 5
          %s566 = scalar_select %p565, %s26, 5
          %s567 = scalar_lea.vmem %s8, %s566
        $region52: #{tpu_custom_call.1} parent=35 // pred_fallthru
          _
        // Predicated region
        $region53: #{tpu_custom_call.1} parent=35 // pred_check
          %p568 = pneg %p255
        $region54: #{tpu_custom_call.1} parent=35 // pred_check_branch
          %570 = sbr.rel (%p568) target = $region56
        $region55: #{tpu_custom_call.1} parent=35 // pred_region
          %p571 = scmp.lt.s32.totalorder %s26, 5
          %s572 = scalar_select %p571, %s26, 5
          %s573 = scalar_lea.vmem %s9, %s572
        $region56: #{tpu_custom_call.1} parent=35 // pred_fallthru
          _
        // Predicated region
        $region57: #{tpu_custom_call.1} parent=35 // pred_check
          %p574 = pneg %p281
        $region58: #{tpu_custom_call.1} parent=35 // pred_check_branch
          %576 = sbr.rel (%p574) target = $region60
        $region59: #{tpu_custom_call.1} parent=35 // pred_region
          %p577 = scmp.lt.s32.totalorder %s26, 5
          %s578 = scalar_select %p577, %s26, 5
          %s579 = scalar_lea.vmem %s10, %s578
        $region60: #{tpu_custom_call.1} parent=35 // pred_fallthru
          _
        // Predicated region
        $region61: #{tpu_custom_call.1} parent=35 // pred_check
          %p580 = pneg %p307
        $region62: #{tpu_custom_call.1} parent=35 // pred_check_branch
          %582 = sbr.rel (%p580) target = $region64
        $region63: #{tpu_custom_call.1} parent=35 // pred_region
          %s583 = sand.u32 %s26, 1
          %s584 = scalar_lea.sflag [#allocation4], %s583
          %s585 = sand.u32 %s297, 1
          %s586 = smul.addr %s585, 256
          %s587 = scalar_lea.vmem [#allocation10], %s586
          %s589 = ssub.s32 4096, 4096
          %590 = vsyncadd %s584, %s589
          %s591 = smul.addr %s26, 64
          %s592 = smul.addr %s591, 64
          %s593 = scalar_lea.hbm %s11, %s592
          %s594 = sshll.u32 %s587, 4
          %s595 = int_to_ptr.vmem [resolvable:$true] %s594
          %600 = dma.hbm_to_vmem [thread:$0]  %s593, 4096, %s595, %s584, 1024, 1024, 64
        $region64: #{tpu_custom_call.1} parent=35 // pred_fallthru
          _
        // Predicated region
        $region65: #{tpu_custom_call.1} parent=35 // pred_check
          %p601 = pneg %p333
        $region66: #{tpu_custom_call.1} parent=35 // pred_check_branch
          %603 = sbr.rel (%p601) target = $region68
        $region67: #{tpu_custom_call.1} parent=35 // pred_region
          %s604 = sand.u32 %s26, 1
          %s605 = scalar_lea.sflag [#allocation4], %s604
          %s606 = sand.u32 %s323, 1
          %s607 = smul.addr %s606, 16
          %s608 = scalar_lea.vmem [#allocation11], %s607
          %s610 = ssub.s32 256, 256
          %611 = vsyncadd %s605, %s610
          %s612 = smul.addr %s26, 16
          %s613 = smul.addr %s612, 16
          %s614 = scalar_lea.hbm %s12, %s613
          %s616 = sshll.u32 %s608, 4
          %s617 = int_to_ptr.vmem [resolvable:$true] %s616
          %619 = dma.hbm_to_vmem [thread:$0]  %s614, 256, %s617, %s605
        $region68: #{tpu_custom_call.1} parent=35 // pred_fallthru
          _
        // Predicated region
        $region69: #{tpu_custom_call.1} parent=35 // pred_check
          %p620 = pneg %p359
        $region70: #{tpu_custom_call.1} parent=35 // pred_check_branch
          %622 = sbr.rel (%p620) target = $region72
        $region71: #{tpu_custom_call.1} parent=35 // pred_region
          %s623 = sand.u32 %s26, 1
          %s624 = scalar_lea.sflag [#allocation4], %s623
          %s625 = sand.u32 %s349, 1
          %s626 = smul.addr %s625, 256
          %s627 = scalar_lea.vmem [#allocation12], %s626
          %s629 = ssub.s32 4096, 4096
          %630 = vsyncadd %s624, %s629
          %s631 = smul.addr %s26, 64
          %s632 = smul.addr %s631, 64
          %s633 = scalar_lea.hbm %s13, %s632
          %s634 = sshll.u32 %s627, 4
          %s635 = int_to_ptr.vmem [resolvable:$true] %s634
          %640 = dma.hbm_to_vmem [thread:$0]  %s633, 4096, %s635, %s624, 1024, 1024, 64
        $region72: #{tpu_custom_call.1} parent=35 // pred_fallthru
          _
        // Predicated region
        $region73: #{tpu_custom_call.1} parent=35 // pred_check
          %p641 = pneg %p385
        $region74: #{tpu_custom_call.1} parent=35 // pred_check_branch
          %643 = sbr.rel (%p641) target = $region76
        $region75: #{tpu_custom_call.1} parent=35 // pred_region
          %p644 = scmp.lt.s32.totalorder %s26, 5
          %s645 = scalar_select %p644, %s26, 5
          %s646 = scalar_lea.vmem %s14, %s645
        $region76: #{tpu_custom_call.1} parent=35 // pred_fallthru
          _
        // Predicated region
        $region77: #{tpu_custom_call.1} parent=35 // pred_check
          %p647 = pneg %p411
        $region78: #{tpu_custom_call.1} parent=35 // pred_check_branch
          %649 = sbr.rel (%p647) target = $region80
        $region79: #{tpu_custom_call.1} parent=35 // pred_region
          %p650 = scmp.lt.s32.totalorder %s26, 5
          %s651 = scalar_select %p650, %s26, 5
          %s652 = scalar_lea.vmem %s15, %s651
        $region80: #{tpu_custom_call.1} parent=35 // pred_fallthru
          _
        // Predicated region
        $region81: #{tpu_custom_call.1} parent=35 // pred_check
          %p653 = pneg %p437
        $region82: #{tpu_custom_call.1} parent=35 // pred_check_branch
          %655 = sbr.rel (%p653) target = $region84
        $region83: #{tpu_custom_call.1} parent=35 // pred_region
          %p656 = scmp.lt.s32.totalorder %s26, 5
          %s657 = scalar_select %p656, %s26, 5
          %s658 = scalar_lea.vmem %s16, %s657
        $region84: #{tpu_custom_call.1} parent=35 // pred_fallthru
          _
      $region36: #{tpu_custom_call.1} parent=5 // pred_fallthru
        _
      %p659 = scmp.le.s32.totalorder 1, %s26
      %p660 = scmp.lt.s32.totalorder %s26, 7
      %p661 = pnand %p659, %p660
      %p662 = pneg %p661
      // Predicated region
      $region85: #{tpu_custom_call.1} parent=5 // pred_check
        _
      $region86: #{tpu_custom_call.1} parent=5 // pred_check_branch
        %664 = sbr.rel (%p661) target = $region88
      $region87: #{tpu_custom_call.1} parent=5 // pred_region
        %s665 = ssub.s32 %s26, 1
        // Predicated region
        $region89: #{tpu_custom_call.1} parent=87 // pred_check
          %p666 = pneg %p89
        $region90: #{tpu_custom_call.1} parent=87 // pred_check_branch
          %668 = sbr.rel (%p666) target = $region92
        $region91: #{tpu_custom_call.1} parent=87 // pred_region
          %669 = dma.done [#allocation4], 64
        $region92: #{tpu_custom_call.1} parent=87 // pred_fallthru
          _
        // Predicated region
        $region93: #{tpu_custom_call.1} parent=87 // pred_check
          %p670 = pneg %p110
        $region94: #{tpu_custom_call.1} parent=87 // pred_check_branch
          %672 = sbr.rel (%p670) target = $region96
        $region95: #{tpu_custom_call.1} parent=87 // pred_region
          %673 = dma.done [#allocation7], 16
        $region96: #{tpu_custom_call.1} parent=87 // pred_fallthru
          _
        %s674 = sand.u32 %s31, 1
        %s675 = scalar_lea.sflag [#allocation4], %s674
        %s676 = sand.u32 %s144, 1
        %s677 = smul.addr %s676, 16
        %s678 = scalar_lea.vmem [#allocation8], %s677
        // Predicated region
        $region97: #{tpu_custom_call.1} parent=87 // pred_check
          %p679 = pneg %p157
        $region98: #{tpu_custom_call.1} parent=87 // pred_check_branch
          %681 = sbr.rel (%p679) target = $region100
        $region99: #{tpu_custom_call.1} parent=87 // pred_region
          %682 = dma.done %s675, 256
        $region100: #{tpu_custom_call.1} parent=87 // pred_fallthru
          _
        %s683 = sand.u32 %s31, 1
        %s684 = scalar_lea.sflag [#allocation4], %s683
        %s685 = sand.u32 %s196, 1
        %s686 = smul.addr %s685, 16
        %s687 = scalar_lea.vmem [#allocation9], %s686
        // Predicated region
        $region101: #{tpu_custom_call.1} parent=87 // pred_check
          %p688 = pneg %p209
        $region102: #{tpu_custom_call.1} parent=87 // pred_check_branch
          %690 = sbr.rel (%p688) target = $region104
        $region103: #{tpu_custom_call.1} parent=87 // pred_region
          %691 = dma.done %s684, 256
        $region104: #{tpu_custom_call.1} parent=87 // pred_fallthru
          _
        %s692 = sand.u32 %s31, 1
        %s693 = scalar_lea.sflag [#allocation4], %s692
        %s694 = sand.u32 %s300, 1
        %s695 = smul.addr %s694, 256
        %s696 = scalar_lea.vmem [#allocation10], %s695
        // Predicated region
        $region105: #{tpu_custom_call.1} parent=87 // pred_check
          %p697 = pneg %p313
        $region106: #{tpu_custom_call.1} parent=87 // pred_check_branch
          %699 = sbr.rel (%p697) target = $region108
        $region107: #{tpu_custom_call.1} parent=87 // pred_region
          %700 = dma.done %s693, 4096
        $region108: #{tpu_custom_call.1} parent=87 // pred_fallthru
          _
        %s701 = sand.u32 %s31, 1
        %s702 = scalar_lea.sflag [#allocation4], %s701
        %s703 = sand.u32 %s326, 1
        %s704 = smul.addr %s703, 16
        %s705 = scalar_lea.vmem [#allocation11], %s704
        // Predicated region
        $region109: #{tpu_custom_call.1} parent=87 // pred_check
          %p706 = pneg %p339
        $region110: #{tpu_custom_call.1} parent=87 // pred_check_branch
          %708 = sbr.rel (%p706) target = $region112
        $region111: #{tpu_custom_call.1} parent=87 // pred_region
          %709 = dma.done %s702, 256
        $region112: #{tpu_custom_call.1} parent=87 // pred_fallthru
          _
        %s710 = sand.u32 %s31, 1
        %s711 = scalar_lea.sflag [#allocation4], %s710
        %s712 = sand.u32 %s352, 1
        %s713 = smul.addr %s712, 256
        %s714 = scalar_lea.vmem [#allocation12], %s713
        // Predicated region
        $region113: #{tpu_custom_call.1} parent=87 // pred_check
          %p715 = pneg %p365
        $region114: #{tpu_custom_call.1} parent=87 // pred_check_branch
          %717 = sbr.rel (%p715) target = $region116
        $region115: #{tpu_custom_call.1} parent=87 // pred_region
          %718 = dma.done %s711, 4096
        $region116: #{tpu_custom_call.1} parent=87 // pred_fallthru
          _
        %p719 = pneg %p47
        %p720 = pneg %p44
        %p721 = pneg %p68
        %p722 = pneg %p65
        %p723 = pneg %p89
        %p724 = pneg %p86
        %p725 = pneg %p110
        %p726 = pneg %p107
        %p727 = pneg %p131
        %p728 = pneg %p128
        %s729 = sand.u32 %s31, 1
        %s730 = scalar_lea.sflag [#allocation4], %s729
        %s731 = sand.u32 %s144, 1
        %s732 = smul.addr %s731, 16
        %s733 = scalar_lea.vmem [#allocation8], %s732
        %p734 = pneg %p157
        %p735 = pneg %p154
        %p736 = scmp.lt.s32.totalorder %s31, 5
        %s737 = scalar_select %p736, %s31, 5
        %s738 = scalar_lea.vmem %s6, %s737
        %p739 = pneg %p183
        %p740 = pneg %p180
        %s741 = sand.u32 %s31, 1
        %s742 = scalar_lea.sflag [#allocation4], %s741
        %s743 = sand.u32 %s196, 1
        %s744 = smul.addr %s743, 16
        %s745 = scalar_lea.vmem [#allocation9], %s744
        %p746 = pneg %p209
        %p747 = pneg %p206
        %p748 = scmp.lt.s32.totalorder %s31, 5
        %s749 = scalar_select %p748, %s31, 5
        %s750 = scalar_lea.vmem %s8, %s749
        %p751 = pneg %p235
        %p752 = pneg %p232
        %p753 = scmp.lt.s32.totalorder %s31, 5
        %s754 = scalar_select %p753, %s31, 5
        %s755 = scalar_lea.vmem %s9, %s754
        %p756 = pneg %p261
        %p757 = pneg %p258
        %p758 = scmp.lt.s32.totalorder %s31, 5
        %s759 = scalar_select %p758, %s31, 5
        %s760 = scalar_lea.vmem %s10, %s759
        %p761 = pneg %p287
        %p762 = pneg %p284
        %s763 = sand.u32 %s31, 1
        %s764 = scalar_lea.sflag [#allocation4], %s763
        %s765 = sand.u32 %s300, 1
        %s766 = smul.addr %s765, 256
        %s767 = scalar_lea.vmem [#allocation10], %s766
        %p768 = pneg %p313
        %p769 = pneg %p310
        %s770 = sand.u32 %s31, 1
        %s771 = scalar_lea.sflag [#allocation4], %s770
        %s772 = sand.u32 %s326, 1
        %s773 = smul.addr %s772, 16
        %s774 = scalar_lea.vmem [#allocation11], %s773
        %p775 = pneg %p339
        %p776 = pneg %p336
        %s777 = sand.u32 %s31, 1
        %s778 = scalar_lea.sflag [#allocation4], %s777
        %s779 = sand.u32 %s352, 1
        %s780 = smul.addr %s779, 256
        %s781 = scalar_lea.vmem [#allocation12], %s780
        %p782 = pneg %p365
        %p783 = pneg %p362
        %p784 = scmp.lt.s32.totalorder %s31, 5
        %s785 = scalar_select %p784, %s31, 5
        %s786 = scalar_lea.vmem %s14, %s785
        %p787 = pneg %p391
        %p788 = pneg %p388
        %p789 = scmp.lt.s32.totalorder %s31, 5
        %s790 = scalar_select %p789, %s31, 5
        %s791 = scalar_lea.vmem %s15, %s790
        %p792 = pneg %p417
        %p793 = pneg %p414
        %p794 = scmp.lt.s32.totalorder %s31, 5
        %s795 = scalar_select %p794, %s31, 5
        %s796 = scalar_lea.vmem %s16, %s795
        %p797 = pneg %p443
        %p798 = pneg %p440
        %p799 = pneg %p464
        %p800 = pneg %p461
        %p801 = scmp.lt.s32.totalorder %s31, 5
        %s802 = scalar_select %p801, %s31, 5
        %s803 = scalar_lea.vmem %s6, %s802
        %p804 = scmp.lt.s32.totalorder %s31, 5
        %s805 = scalar_select %p804, %s31, 5
        %s806 = scalar_lea.vmem %s8, %s805
        %p807 = scmp.lt.s32.totalorder %s31, 5
        %s808 = scalar_select %p807, %s31, 5
        %s809 = scalar_lea.vmem %s9, %s808
        %p810 = scmp.lt.s32.totalorder %s31, 5
        %s811 = scalar_select %p810, %s31, 5
        %s812 = scalar_lea.vmem %s10, %s811
        %p813 = scmp.lt.s32.totalorder %s31, 5
        %s814 = scalar_select %p813, %s31, 5
        %s815 = scalar_lea.vmem %s14, %s814
        %p816 = scmp.lt.s32.totalorder %s31, 5
        %s817 = scalar_select %p816, %s31, 5
        %s818 = scalar_lea.vmem %s15, %s817
        %p819 = scmp.lt.s32.totalorder %s31, 5
        %s820 = scalar_select %p819, %s31, 5
        %s821 = scalar_lea.vmem %s16, %s820
        %p823 = scmp.eq.s32.totalorder %s31, 0
        // Predicated region
        $region117: #{tpu_custom_call.1} parent=87 // pred_check
          %p824 = pneg %p823
        $region118: #{tpu_custom_call.1} parent=87 // pred_check_branch
          %826 = sbr.rel (%p824) target = $region120
        $region119: #{tpu_custom_call.1} parent=87 // pred_region
          %v827 = vld [vmem:[#allocation3] sm:$0xf]
          %v828 = vld [vmem:[%s1] sm:$0xff]
          %v829 = vld [vmem:[%s1 + $0x8] sm:$0xff]
          %v830 = vpack.c.bf16 %v829, %v828
          %vm831 = vcmask 64512
          %v833 = vsel %vm831, %v830, 0
          %vm835 = vcmask 1043456
          %v837 = vsel %vm835, %v827, 0
          %839 = vmatprep.subr.bf16.mxu0 0
          %840 = vmatpush1.bf16.msra.mxu0 %v837
          %841 = vmatprep.subr.bf16.mxu0 0
          %842 = vmatpush1.bf16.msra.mxu0 0
          %843 = vmatprep.subr.bf16.mxu0 0
          %844 = vmatpush1.bf16.msra.mxu0 0
          %845 = vmatprep.subr.bf16.mxu0 0
          %846 = vmatpush1.bf16.msra.mxu0 0
          %847 = vmatprep.subr.bf16.mxu0 0
          %848 = vmatpush1.bf16.msra.mxu0 0
          %849 = vmatprep.subr.bf16.mxu0 0
          %850 = vmatpush1.bf16.msra.mxu0 0
          %851 = vmatprep.subr.bf16.mxu0 0
          %852 = vmatpush1.bf16.msra.mxu0 0
          %853 = vmatprep.subr.bf16.mxu0 0
          %854 = vmatpush1.bf16.msra.mxu0 0
          %855 = vmatprep.subr.bf16.mxu0 0
          %856 = vmatpush1.bf16.msra.mxu0 0
          %857 = vmatprep.subr.bf16.mxu0 0
          %858 = vmatpush1.bf16.msra.mxu0 0
          %859 = vmatprep.subr.bf16.mxu0 0
          %860 = vmatpush1.bf16.msra.mxu0 0
          %861 = vmatprep.subr.bf16.mxu0 0
          %862 = vmatpush1.bf16.msra.mxu0 0
          %863 = vmatprep.subr.bf16.mxu0 0
          %864 = vmatpush1.bf16.msra.mxu0 0
          %865 = vmatprep.subr.bf16.mxu0 0
          %866 = vmatpush1.bf16.msra.mxu0 0
          %867 = vmatprep.subr.bf16.mxu0 0
          %868 = vmatpush1.bf16.msra.mxu0 0
          %869 = vmatprep.subr.bf16.mxu0 0
          %870 = vmatpush1.bf16.msra.mxu0 0
          %871 = vmatprep.mubr.bf16.mxu0 0
          %872 = vmatmul.mubr.bf16.gmra.mrb[0].mxu0 %v833
          %v873 = vpop.f32.mrb[0].mxu0
          %v874 = vadd.f32 0.0, %v873
          %v875 = vpop.f32.mrb[0].mxu0
          %v876 = vpop.f32.mrb[0].mxu0
          %v877 = vadd.f32 0.0, %v876
          %v878 = vpop.f32.mrb[0].mxu0
          %879 = vdwg.mxu0
          %v880 = vld [vmem:[%s0] sm:$0xff]
          %v881 = vld [vmem:[%s0 + $0x8] sm:$0xff]
          %v882 = vpack.c.bf16 %v881, %v880
          %v883 = vpack.c.bf16 %v877, %v874
          %v884 = vld [vmem:[#allocation6] sm:$0x1]
          %v886 = vlaneseq
          %v887 = vshrl.u32 %v886, 7
          %v888 = vsub.s32 0, %v887
          %v889 = vrot.slane %v884, %v888
          %vm891 = vcmask 130048
          %v893 = vsel %vm891, %v882, 0
          %895 = vmatprep.subr.bf16.mxu0 0
          %896 = vmatpush1.bf16.msra.mxu0 %v883
          %897 = vmatprep.subr.bf16.mxu0 0
          %898 = vmatpush1.bf16.msra.mxu0 0
          %899 = vmatprep.subr.bf16.mxu0 0
          %900 = vmatpush1.bf16.msra.mxu0 0
          %901 = vmatprep.subr.bf16.mxu0 0
          %902 = vmatpush1.bf16.msra.mxu0 0
          %903 = vmatprep.subr.bf16.mxu0 0
          %904 = vmatpush1.bf16.msra.mxu0 0
          %905 = vmatprep.subr.bf16.mxu0 0
          %906 = vmatpush1.bf16.msra.mxu0 0
          %907 = vmatprep.subr.bf16.mxu0 0
          %908 = vmatpush1.bf16.msra.mxu0 0
          %909 = vmatprep.subr.bf16.mxu0 0
          %910 = vmatpush1.bf16.msra.mxu0 0
          %911 = vmatprep.subr.bf16.mxu0 0
          %912 = vmatpush1.bf16.msra.mxu0 0
          %913 = vmatprep.subr.bf16.mxu0 0
          %914 = vmatpush1.bf16.msra.mxu0 0
          %915 = vmatprep.subr.bf16.mxu0 0
          %916 = vmatpush1.bf16.msra.mxu0 0
          %917 = vmatprep.subr.bf16.mxu0 0
          %918 = vmatpush1.bf16.msra.mxu0 0
          %919 = vmatprep.subr.bf16.mxu0 0
          %920 = vmatpush1.bf16.msra.mxu0 0
          %921 = vmatprep.subr.bf16.mxu0 0
          %922 = vmatpush1.bf16.msra.mxu0 0
          %923 = vmatprep.subr.bf16.mxu0 0
          %924 = vmatpush1.bf16.msra.mxu0 0
          %925 = vmatprep.subr.bf16.mxu0 0
          %926 = vmatpush1.bf16.msra.mxu0 0
          %927 = vmatprep.mubr.bf16.mxu0 0
          %928 = vmatmul.mubr.bf16.gmra.mrb[0].mxu0 %v893
          %v929 = vpop.f32.mrb[0].mxu0
          %v930 = vadd.f32 %v889, %v929
          %v931 = vpop.f32.mrb[0].mxu0
          %v932 = vpop.f32.mrb[0].mxu0
          %v933 = vadd.f32 %v889, %v932
          %v934 = vpop.f32.mrb[0].mxu0
          %935 = vdwg.mxu0
          %v936 = vmax.f32 %v930, 0.0
          %v937 = vmax.f32 %v933, 0.0
          %s938 = scalar_lea.vmem %s1, 16
          %v939 = vld [vmem:[%s938] sm:$0xff]
          %v940 = vld [vmem:[%s938 + $0x8] sm:$0xff]
          %v941 = vpack.c.bf16 %v940, %v939
          %v943 = vsel %vm831, %v941, 0
          %945 = vmatprep.subr.bf16.mxu0 0
          %946 = vmatpush1.bf16.msra.mxu0 %v837
          %947 = vmatprep.subr.bf16.mxu0 0
          %948 = vmatpush1.bf16.msra.mxu0 0
          %949 = vmatprep.subr.bf16.mxu0 0
          %950 = vmatpush1.bf16.msra.mxu0 0
          %951 = vmatprep.subr.bf16.mxu0 0
          %952 = vmatpush1.bf16.msra.mxu0 0
          %953 = vmatprep.subr.bf16.mxu0 0
          %954 = vmatpush1.bf16.msra.mxu0 0
          %955 = vmatprep.subr.bf16.mxu0 0
          %956 = vmatpush1.bf16.msra.mxu0 0
          %957 = vmatprep.subr.bf16.mxu0 0
          %958 = vmatpush1.bf16.msra.mxu0 0
          %959 = vmatprep.subr.bf16.mxu0 0
          %960 = vmatpush1.bf16.msra.mxu0 0
          %961 = vmatprep.subr.bf16.mxu0 0
          %962 = vmatpush1.bf16.msra.mxu0 0
          %963 = vmatprep.subr.bf16.mxu0 0
          %964 = vmatpush1.bf16.msra.mxu0 0
          %965 = vmatprep.subr.bf16.mxu0 0
          %966 = vmatpush1.bf16.msra.mxu0 0
          %967 = vmatprep.subr.bf16.mxu0 0
          %968 = vmatpush1.bf16.msra.mxu0 0
          %969 = vmatprep.subr.bf16.mxu0 0
          %970 = vmatpush1.bf16.msra.mxu0 0
          %971 = vmatprep.subr.bf16.mxu0 0
          %972 = vmatpush1.bf16.msra.mxu0 0
          %973 = vmatprep.subr.bf16.mxu0 0
          %974 = vmatpush1.bf16.msra.mxu0 0
          %975 = vmatprep.subr.bf16.mxu0 0
          %976 = vmatpush1.bf16.msra.mxu0 0
          %977 = vmatprep.mubr.bf16.mxu0 0
          %978 = vmatmul.mubr.bf16.gmra.mrb[0].mxu0 %v943
          %v979 = vpop.f32.mrb[0].mxu0
          %v980 = vadd.f32 0.0, %v979
          %v981 = vpop.f32.mrb[0].mxu0
          %v982 = vpop.f32.mrb[0].mxu0
          %v983 = vadd.f32 0.0, %v982
          %v984 = vpop.f32.mrb[0].mxu0
          %985 = vdwg.mxu0
          %s986 = scalar_lea.vmem %s0, 16
          %v987 = vld [vmem:[%s986] sm:$0xff]
          %v988 = vld [vmem:[%s986 + $0x8] sm:$0xff]
          %v989 = vpack.c.bf16 %v988, %v987
          %v990 = vpack.c.bf16 %v983, %v980
          %v992 = vsel %vm891, %v989, 0
          %994 = vmatprep.subr.bf16.mxu0 0
          %995 = vmatpush1.bf16.msra.mxu0 %v990
          %996 = vmatprep.subr.bf16.mxu0 0
          %997 = vmatpush1.bf16.msra.mxu0 0
          %998 = vmatprep.subr.bf16.mxu0 0
          %999 = vmatpush1.bf16.msra.mxu0 0
          %1000 = vmatprep.subr.bf16.mxu0 0
          %1001 = vmatpush1.bf16.msra.mxu0 0
          %1002 = vmatprep.subr.bf16.mxu0 0
          %1003 = vmatpush1.bf16.msra.mxu0 0
          %1004 = vmatprep.subr.bf16.mxu0 0
          %1005 = vmatpush1.bf16.msra.mxu0 0
          %1006 = vmatprep.subr.bf16.mxu0 0
          %1007 = vmatpush1.bf16.msra.mxu0 0
          %1008 = vmatprep.subr.bf16.mxu0 0
          %1009 = vmatpush1.bf16.msra.mxu0 0
          %1010 = vmatprep.subr.bf16.mxu0 0
          %1011 = vmatpush1.bf16.msra.mxu0 0
          %1012 = vmatprep.subr.bf16.mxu0 0
          %1013 = vmatpush1.bf16.msra.mxu0 0
          %1014 = vmatprep.subr.bf16.mxu0 0
          %1015 = vmatpush1.bf16.msra.mxu0 0
          %1016 = vmatprep.subr.bf16.mxu0 0
          %1017 = vmatpush1.bf16.msra.mxu0 0
          %1018 = vmatprep.subr.bf16.mxu0 0
          %1019 = vmatpush1.bf16.msra.mxu0 0
          %1020 = vmatprep.subr.bf16.mxu0 0
          %1021 = vmatpush1.bf16.msra.mxu0 0
          %1022 = vmatprep.subr.bf16.mxu0 0
          %1023 = vmatpush1.bf16.msra.mxu0 0
          %1024 = vmatprep.subr.bf16.mxu0 0
          %1025 = vmatpush1.bf16.msra.mxu0 0
          %1026 = vmatprep.mubr.bf16.mxu0 0
          %1027 = vmatmul.mubr.bf16.gmra.mrb[0].mxu0 %v992
          %v1028 = vpop.f32.mrb[0].mxu0
          %v1029 = vadd.f32 %v889, %v1028
          %v1030 = vpop.f32.mrb[0].mxu0
          %v1031 = vpop.f32.mrb[0].mxu0
          %v1032 = vadd.f32 %v889, %v1031
          %v1033 = vpop.f32.mrb[0].mxu0
          %1034 = vdwg.mxu0
          %v1035 = vmax.f32 %v1029, 0.0
          %v1036 = vmax.f32 %v1032, 0.0
          %1039 = vrot.lane.b32.xlu0 %v1035, 16
          %v1040 = vpop.permute.xlu0 %1039
          %1041 = vrot.lane.b32.xlu0 %v1036, 16
          %v1042 = vpop.permute.xlu0 %1041
          %v1045 = vsel %vm891, %v936, %v1040
          %v1046 = vsel %vm891, %v937, %v1042
          %v1047 = vld [vmem:[%s4] sm:$0xff]
          %v1048 = vld [vmem:[%s4 + $0x8] sm:$0xff]
          %v1049 = vadd.f32 %v1045, %v1047
          %v1050 = vadd.f32 %v1046, %v1048
          %vm1051 = vcmask 261120
          %1052 = vst.msk [vmem:[#allocation2] sm:$0xff] %vm1051, %v1049
          %1053 = vst.msk [vmem:[#allocation2 + $0x8] sm:$0xff] %vm1051, %v1050
        $region120: #{tpu_custom_call.1} parent=87 // pred_fallthru
          _
        %v1054 = vld [vmem:[#allocation2] sm:$0xff]
        %v1055 = vld [vmem:[#allocation2 + $0x8] sm:$0xff]
        %v1056 = vpack.c.bf16 %v1055, %v1054
        %v1057 = vld [vmem:[%s678] sm:$0xf]
        %v1058 = vld [vmem:[%s678 + $0x4] sm:$0xf]
        %v1059 = vld [vmem:[%s678 + $0x8] sm:$0xf]
        %v1060 = vld [vmem:[%s678 + $0xc] sm:$0xf]
        %v1061 = vld [vmem:[%s803] sm:$0x1]
        %v1063 = vlaneseq
        %v1064 = vshrl.u32 %v1063, 7
        %v1065 = vsub.s32 0, %v1064
        %v1066 = vrot.slane %v1061, %v1065
        %v1072 = vunpack.c.l.b16 %v1057
        %v1073 = vunpack.c.l.b16 %v1058
        %v1074 = vunpack.c.l.b16 %v1059
        %v1075 = vunpack.c.l.b16 %v1060
        %v1076 = vpack.c.b16 %v1073, %v1072
        %v1077 = vpack.c.b16 %v1075, %v1074
        %vm1080 = vcmask 261120
        %v1082 = vsel %vm1080, %v1056, 0
        %1084 = vmatprep.subr.bf16.mxu0 0
        %1085 = vmatpush1.bf16.msra.mxu0 %v1076
        %1086 = vmatprep.subr.bf16.mxu0 0
        %1087 = vmatpush1.bf16.msra.mxu0 %v1077
        %1088 = vmatprep.subr.bf16.mxu0 0
        %1089 = vmatpush1.bf16.msra.mxu0 0
        %1090 = vmatprep.subr.bf16.mxu0 0
        %1091 = vmatpush1.bf16.msra.mxu0 0
        %1092 = vmatprep.subr.bf16.mxu0 0
        %1093 = vmatpush1.bf16.msra.mxu0 0
        %1094 = vmatprep.subr.bf16.mxu0 0
        %1095 = vmatpush1.bf16.msra.mxu0 0
        %1096 = vmatprep.subr.bf16.mxu0 0
        %1097 = vmatpush1.bf16.msra.mxu0 0
        %1098 = vmatprep.subr.bf16.mxu0 0
        %1099 = vmatpush1.bf16.msra.mxu0 0
        %1100 = vmatprep.subr.bf16.mxu0 0
        %1101 = vmatpush1.bf16.msra.mxu0 0
        %1102 = vmatprep.subr.bf16.mxu0 0
        %1103 = vmatpush1.bf16.msra.mxu0 0
        %1104 = vmatprep.subr.bf16.mxu0 0
        %1105 = vmatpush1.bf16.msra.mxu0 0
        %1106 = vmatprep.subr.bf16.mxu0 0
        %1107 = vmatpush1.bf16.msra.mxu0 0
        %1108 = vmatprep.subr.bf16.mxu0 0
        %1109 = vmatpush1.bf16.msra.mxu0 0
        %1110 = vmatprep.subr.bf16.mxu0 0
        %1111 = vmatpush1.bf16.msra.mxu0 0
        %1112 = vmatprep.subr.bf16.mxu0 0
        %1113 = vmatpush1.bf16.msra.mxu0 0
        %1114 = vmatprep.subr.bf16.mxu0 0
        %1115 = vmatpush1.bf16.msra.mxu0 0
        %1116 = vmatprep.mubr.bf16.mxu0 0
        %1117 = vmatmul.mubr.bf16.gmra.mrb[0].mxu0 %v1082
        %v1118 = vpop.f32.mrb[0].mxu0
        %v1119 = vadd.f32 %v1066, %v1118
        %v1120 = vpop.f32.mrb[0].mxu0
        %v1121 = vpop.f32.mrb[0].mxu0
        %v1122 = vadd.f32 %v1066, %v1121
        %v1123 = vpop.f32.mrb[0].mxu0
        %1124 = vdwg.mxu0
        %1127 = vrot.lane.b32.xlu0 %v1119, 124
        %v1128 = vpop.permute.xlu0 %1127
        %1129 = vrot.lane.b32.xlu0 %v1122, 124
        %v1130 = vpop.permute.xlu0 %1129
        %1133 = vrot.lane.b32.xlu0 %v1119, 120
        %v1134 = vpop.permute.xlu0 %1133
        %1135 = vrot.lane.b32.xlu0 %v1122, 120
        %v1136 = vpop.permute.xlu0 %1135
        %1139 = vrot.lane.b32.xlu0 %v1119, 116
        %v1140 = vpop.permute.xlu0 %1139
        %1141 = vrot.lane.b32.xlu0 %v1122, 116
        %v1142 = vpop.permute.xlu0 %1141
        %1145 = vrot.lane.b32.xlu0 %v1119, 112
        %v1146 = vpop.permute.xlu0 %1145
        %1147 = vrot.lane.b32.xlu0 %v1122, 112
        %v1148 = vpop.permute.xlu0 %1147
        %1151 = vrot.lane.b32.xlu0 %v1119, 108
        %v1152 = vpop.permute.xlu0 %1151
        %1153 = vrot.lane.b32.xlu0 %v1122, 108
        %v1154 = vpop.permute.xlu0 %1153
        %1157 = vrot.lane.b32.xlu0 %v1119, 104
        %v1158 = vpop.permute.xlu0 %1157
        %1159 = vrot.lane.b32.xlu0 %v1122, 104
        %v1160 = vpop.permute.xlu0 %1159
        %1163 = vrot.lane.b32.xlu0 %v1119, 100
        %v1164 = vpop.permute.xlu0 %1163
        %1165 = vrot.lane.b32.xlu0 %v1122, 100
        %v1166 = vpop.permute.xlu0 %1165
        %v1169 = vmul.f32 %v1119, 0.5
        %v1170 = vmul.f32 %v1122, 0.5
        %v1171 = vmul.f32 %v1128, 0.5
        %v1172 = vmul.f32 %v1130, 0.5
        %v1173 = vmul.f32 %v1134, 0.5
        %v1174 = vmul.f32 %v1136, 0.5
        %v1175 = vmul.f32 %v1140, 0.5
        %v1176 = vmul.f32 %v1142, 0.5
        %v1177 = vmul.f32 %v1146, 0.5
        %v1178 = vmul.f32 %v1148, 0.5
        %v1179 = vmul.f32 %v1152, 0.5
        %v1180 = vmul.f32 %v1154, 0.5
        %v1181 = vmul.f32 %v1158, 0.5
        %v1182 = vmul.f32 %v1160, 0.5
        %v1183 = vmul.f32 %v1164, 0.5
        %v1184 = vmul.f32 %v1166, 0.5
        %v1185 = vpack.c.bf16 %v1170, %v1169
        %v1186 = vpack.c.bf16 %v1172, %v1171
        %v1187 = vpack.c.bf16 %v1174, %v1173
        %v1188 = vpack.c.bf16 %v1176, %v1175
        %v1189 = vpack.c.bf16 %v1178, %v1177
        %v1190 = vpack.c.bf16 %v1180, %v1179
        %v1191 = vpack.c.bf16 %v1182, %v1181
        %v1192 = vpack.c.bf16 %v1184, %v1183
        %v1193 = vpack.c.bf16 %v1122, %v1119
        %v1194 = vpack.c.bf16 %v1130, %v1128
        %v1195 = vpack.c.bf16 %v1136, %v1134
        %v1196 = vpack.c.bf16 %v1142, %v1140
        %v1197 = vpack.c.bf16 %v1148, %v1146
        %v1198 = vpack.c.bf16 %v1154, %v1152
        %v1199 = vpack.c.bf16 %v1160, %v1158
        %v1200 = vpack.c.bf16 %v1166, %v1164
        %1202 = vrot.lane.b32.xlu0 %v1193, 96
        %v1203 = vpop.permute.xlu0 %1202
        %vm1204 = vcmask 31744
        %v1206 = vsel %vm1204, %v1185, 0
        %v1209 = vsel %vm1204, %v1203, 0
        %1211 = vmatprep.subr.bf16.mxu0 0
        %1212 = vmatpush1.bf16.xpose.msra.mxu0 %v1209
        %1213 = vmatprep.subr.bf16.mxu0 0
        %1214 = vmatpush1.bf16.xpose.msra.mxu0 0
        %1215 = vmatprep.subr.bf16.mxu0 0
        %1216 = vmatpush1.bf16.xpose.msra.mxu0 0
        %1217 = vmatprep.subr.bf16.mxu0 0
        %1218 = vmatpush1.bf16.xpose.msra.mxu0 0
        %1219 = vmatprep.subr.bf16.mxu0 0
        %1220 = vmatpush1.bf16.xpose.msra.mxu0 0
        %1221 = vmatprep.subr.bf16.mxu0 0
        %1222 = vmatpush1.bf16.xpose.msra.mxu0 0
        %1223 = vmatprep.subr.bf16.mxu0 0
        %1224 = vmatpush1.bf16.xpose.msra.mxu0 0
        %1225 = vmatprep.subr.bf16.mxu0 0
        %1226 = vmatpush1.bf16.xpose.msra.mxu0 0
        %1227 = vmatprep.subr.bf16.mxu0 0
        %1228 = vmatpush1.bf16.xpose.msra.mxu0 0
        %1229 = vmatprep.subr.bf16.mxu0 0
        %1230 = vmatpush1.bf16.xpose.msra.mxu0 0
        %1231 = vmatprep.subr.bf16.mxu0 0
        %1232 = vmatpush1.bf16.xpose.msra.mxu0 0
        %1233 = vmatprep.subr.bf16.mxu0 0
        %1234 = vmatpush1.bf16.xpose.msra.mxu0 0
        %1235 = vmatprep.subr.bf16.mxu0 0
        %1236 = vmatpush1.bf16.xpose.msra.mxu0 0
        %1237 = vmatprep.subr.bf16.mxu0 0
        %1238 = vmatpush1.bf16.xpose.msra.mxu0 0
        %1239 = vmatprep.subr.bf16.mxu0 0
        %1240 = vmatpush1.bf16.xpose.msra.mxu0 0
        %1241 = vmatprep.subr.bf16.mxu0 0
        %1242 = vmatpush1.bf16.xpose.msra.mxu0 0
        %1243 = vmatprep.mubr.bf16.mxu0 0
        %1244 = vmatmul.mubr.bf16.gmra.mrb[0].mxu0 %v1206
        %v1245 = vpop.f32.mrb[0].mxu0
        %v1246 = vadd.f32 0.0, %v1245
        %v1247 = vpop.f32.mrb[0].mxu0
        %v1248 = vpop.f32.mrb[0].mxu0
        %v1249 = vadd.f32 0.0, %v1248
        %v1250 = vpop.f32.mrb[0].mxu0
        %1251 = vdwg.mxu0
        %1253 = vrot.lane.b32.xlu0 %v1194, 96
        %v1254 = vpop.permute.xlu0 %1253
        %v1256 = vsel %vm1204, %v1186, 0
        %v1259 = vsel %vm1204, %v1254, 0
        %1261 = vmatprep.subr.bf16.mxu0 0
        %1262 = vmatpush1.bf16.xpose.msra.mxu0 %v1259
        %1263 = vmatprep.subr.bf16.mxu0 0
        %1264 = vmatpush1.bf16.xpose.msra.mxu0 0
        %1265 = vmatprep.subr.bf16.mxu0 0
        %1266 = vmatpush1.bf16.xpose.msra.mxu0 0
        %1267 = vmatprep.subr.bf16.mxu0 0
        %1268 = vmatpush1.bf16.xpose.msra.mxu0 0
        %1269 = vmatprep.subr.bf16.mxu0 0
        %1270 = vmatpush1.bf16.xpose.msra.mxu0 0
        %1271 = vmatprep.subr.bf16.mxu0 0
        %1272 = vmatpush1.bf16.xpose.msra.mxu0 0
        %1273 = vmatprep.subr.bf16.mxu0 0
        %1274 = vmatpush1.bf16.xpose.msra.mxu0 0
        %1275 = vmatprep.subr.bf16.mxu0 0
        %1276 = vmatpush1.bf16.xpose.msra.mxu0 0
        %1277 = vmatprep.subr.bf16.mxu0 0
        %1278 = vmatpush1.bf16.xpose.msra.mxu0 0
        %1279 = vmatprep.subr.bf16.mxu0 0
        %1280 = vmatpush1.bf16.xpose.msra.mxu0 0
        %1281 = vmatprep.subr.bf16.mxu0 0
        %1282 = vmatpush1.bf16.xpose.msra.mxu0 0
        %1283 = vmatprep.subr.bf16.mxu0 0
        %1284 = vmatpush1.bf16.xpose.msra.mxu0 0
        %1285 = vmatprep.subr.bf16.mxu0 0
        %1286 = vmatpush1.bf16.xpose.msra.mxu0 0
        %1287 = vmatprep.subr.bf16.mxu0 0
        %1288 = vmatpush1.bf16.xpose.msra.mxu0 0
        %1289 = vmatprep.subr.bf16.mxu0 0
        %1290 = vmatpush1.bf16.xpose.msra.mxu0 0
        %1291 = vmatprep.subr.bf16.mxu0 0
        %1292 = vmatpush1.bf16.xpose.msra.mxu0 0
        %1293 = vmatprep.mubr.bf16.mxu0 0
        %1294 = vmatmul.mubr.bf16.gmra.mrb[0].mxu0 %v1256
        %v1295 = vpop.f32.mrb[0].mxu0
        %v1296 = vadd.f32 0.0, %v1295
        %v1297 = vpop.f32.mrb[0].mxu0
        %v1298 = vpop.f32.mrb[0].mxu0
        %v1299 = vadd.f32 0.0, %v1298
        %v1300 = vpop.f32.mrb[0].mxu0
        %1301 = vdwg.mxu0
        %1303 = vrot.lane.b32.xlu0 %v1195, 96
        %v1304 = vpop.permute.xlu0 %1303
        %v1306 = vsel %vm1204, %v1187, 0
        %v1309 = vsel %vm1204, %v1304, 0
        %1311 = vmatprep.subr.bf16.mxu0 0
        %1312 = vmatpush1.bf16.xpose.msra.mxu0 %v1309
        %1313 = vmatprep.subr.bf16.mxu0 0
        %1314 = vmatpush1.bf16.xpose.msra.mxu0 0
        %1315 = vmatprep.subr.bf16.mxu0 0
        %1316 = vmatpush1.bf16.xpose.msra.mxu0 0
        %1317 = vmatprep.subr.bf16.mxu0 0
        %1318 = vmatpush1.bf16.xpose.msra.mxu0 0
        %1319 = vmatprep.subr.bf16.mxu0 0
        %1320 = vmatpush1.bf16.xpose.msra.mxu0 0
        %1321 = vmatprep.subr.bf16.mxu0 0
        %1322 = vmatpush1.bf16.xpose.msra.mxu0 0
        %1323 = vmatprep.subr.bf16.mxu0 0
        %1324 = vmatpush1.bf16.xpose.msra.mxu0 0
        %1325 = vmatprep.subr.bf16.mxu0 0
        %1326 = vmatpush1.bf16.xpose.msra.mxu0 0
        %1327 = vmatprep.subr.bf16.mxu0 0
        %1328 = vmatpush1.bf16.xpose.msra.mxu0 0
        %1329 = vmatprep.subr.bf16.mxu0 0
        %1330 = vmatpush1.bf16.xpose.msra.mxu0 0
        %1331 = vmatprep.subr.bf16.mxu0 0
        %1332 = vmatpush1.bf16.xpose.msra.mxu0 0
        %1333 = vmatprep.subr.bf16.mxu0 0
        %1334 = vmatpush1.bf16.xpose.msra.mxu0 0
        %1335 = vmatprep.subr.bf16.mxu0 0
        %1336 = vmatpush1.bf16.xpose.msra.mxu0 0
        %1337 = vmatprep.subr.bf16.mxu0 0
        %1338 = vmatpush1.bf16.xpose.msra.mxu0 0
        %1339 = vmatprep.subr.bf16.mxu0 0
        %1340 = vmatpush1.bf16.xpose.msra.mxu0 0
        %1341 = vmatprep.subr.bf16.mxu0 0
        %1342 = vmatpush1.bf16.xpose.msra.mxu0 0
        %1343 = vmatprep.mubr.bf16.mxu0 0
        %1344 = vmatmul.mubr.bf16.gmra.mrb[0].mxu0 %v1306
        %v1345 = vpop.f32.mrb[0].mxu0
        %v1346 = vadd.f32 0.0, %v1345
        %v1347 = vpop.f32.mrb[0].mxu0
        %v1348 = vpop.f32.mrb[0].mxu0
        %v1349 = vadd.f32 0.0, %v1348
        %v1350 = vpop.f32.mrb[0].mxu0
        %1351 = vdwg.mxu0
        %1353 = vrot.lane.b32.xlu0 %v1196, 96
        %v1354 = vpop.permute.xlu0 %1353
        %v1356 = vsel %vm1204, %v1188, 0
        %v1359 = vsel %vm1204, %v1354, 0
        %1361 = vmatprep.subr.bf16.mxu0 0
        %1362 = vmatpush1.bf16.xpose.msra.mxu0 %v1359
        %1363 = vmatprep.subr.bf16.mxu0 0
        %1364 = vmatpush1.bf16.xpose.msra.mxu0 0
        %1365 = vmatprep.subr.bf16.mxu0 0
        %1366 = vmatpush1.bf16.xpose.msra.mxu0 0
        %1367 = vmatprep.subr.bf16.mxu0 0
        %1368 = vmatpush1.bf16.xpose.msra.mxu0 0
        %1369 = vmatprep.subr.bf16.mxu0 0
        %1370 = vmatpush1.bf16.xpose.msra.mxu0 0
        %1371 = vmatprep.subr.bf16.mxu0 0
        %1372 = vmatpush1.bf16.xpose.msra.mxu0 0
        %1373 = vmatprep.subr.bf16.mxu0 0
        %1374 = vmatpush1.bf16.xpose.msra.mxu0 0
        %1375 = vmatprep.subr.bf16.mxu0 0
        %1376 = vmatpush1.bf16.xpose.msra.mxu0 0
        %1377 = vmatprep.subr.bf16.mxu0 0
        %1378 = vmatpush1.bf16.xpose.msra.mxu0 0
        %1379 = vmatprep.subr.bf16.mxu0 0
        %1380 = vmatpush1.bf16.xpose.msra.mxu0 0
        %1381 = vmatprep.subr.bf16.mxu0 0
        %1382 = vmatpush1.bf16.xpose.msra.mxu0 0
        %1383 = vmatprep.subr.bf16.mxu0 0
        %1384 = vmatpush1.bf16.xpose.msra.mxu0 0
        %1385 = vmatprep.subr.bf16.mxu0 0
        %1386 = vmatpush1.bf16.xpose.msra.mxu0 0
        %1387 = vmatprep.subr.bf16.mxu0 0
        %1388 = vmatpush1.bf16.xpose.msra.mxu0 0
        %1389 = vmatprep.subr.bf16.mxu0 0
        %1390 = vmatpush1.bf16.xpose.msra.mxu0 0
        %1391 = vmatprep.subr.bf16.mxu0 0
        %1392 = vmatpush1.bf16.xpose.msra.mxu0 0
        %1393 = vmatprep.mubr.bf16.mxu0 0
        %1394 = vmatmul.mubr.bf16.gmra.mrb[0].mxu0 %v1356
        %v1395 = vpop.f32.mrb[0].mxu0
        %v1396 = vadd.f32 0.0, %v1395
        %v1397 = vpop.f32.mrb[0].mxu0
        %v1398 = vpop.f32.mrb[0].mxu0
        %v1399 = vadd.f32 0.0, %v1398
        %v1400 = vpop.f32.mrb[0].mxu0
        %1401 = vdwg.mxu0
        %1403 = vrot.lane.b32.xlu0 %v1197, 96
        %v1404 = vpop.permute.xlu0 %1403
        %v1406 = vsel %vm1204, %v1189, 0
        %v1409 = vsel %vm1204, %v1404, 0
        %1411 = vmatprep.subr.bf16.mxu0 0
        %1412 = vmatpush1.bf16.xpose.msra.mxu0 %v1409
        %1413 = vmatprep.subr.bf16.mxu0 0
        %1414 = vmatpush1.bf16.xpose.msra.mxu0 0
        %1415 = vmatprep.subr.bf16.mxu0 0
        %1416 = vmatpush1.bf16.xpose.msra.mxu0 0
        %1417 = vmatprep.subr.bf16.mxu0 0
        %1418 = vmatpush1.bf16.xpose.msra.mxu0 0
        %1419 = vmatprep.subr.bf16.mxu0 0
        %1420 = vmatpush1.bf16.xpose.msra.mxu0 0
        %1421 = vmatprep.subr.bf16.mxu0 0
        %1422 = vmatpush1.bf16.xpose.msra.mxu0 0
        %1423 = vmatprep.subr.bf16.mxu0 0
        %1424 = vmatpush1.bf16.xpose.msra.mxu0 0
        %1425 = vmatprep.subr.bf16.mxu0 0
        %1426 = vmatpush1.bf16.xpose.msra.mxu0 0
        %1427 = vmatprep.subr.bf16.mxu0 0
        %1428 = vmatpush1.bf16.xpose.msra.mxu0 0
        %1429 = vmatprep.subr.bf16.mxu0 0
        %1430 = vmatpush1.bf16.xpose.msra.mxu0 0
        %1431 = vmatprep.subr.bf16.mxu0 0
        %1432 = vmatpush1.bf16.xpose.msra.mxu0 0
        %1433 = vmatprep.subr.bf16.mxu0 0
        %1434 = vmatpush1.bf16.xpose.msra.mxu0 0
        %1435 = vmatprep.subr.bf16.mxu0 0
        %1436 = vmatpush1.bf16.xpose.msra.mxu0 0
        %1437 = vmatprep.subr.bf16.mxu0 0
        %1438 = vmatpush1.bf16.xpose.msra.mxu0 0
        %1439 = vmatprep.subr.bf16.mxu0 0
        %1440 = vmatpush1.bf16.xpose.msra.mxu0 0
        %1441 = vmatprep.subr.bf16.mxu0 0
        %1442 = vmatpush1.bf16.xpose.msra.mxu0 0
        %1443 = vmatprep.mubr.bf16.mxu0 0
        %1444 = vmatmul.mubr.bf16.gmra.mrb[0].mxu0 %v1406
        %v1445 = vpop.f32.mrb[0].mxu0
        %v1446 = vadd.f32 0.0, %v1445
        %v1447 = vpop.f32.mrb[0].mxu0
        %v1448 = vpop.f32.mrb[0].mxu0
        %v1449 = vadd.f32 0.0, %v1448
        %v1450 = vpop.f32.mrb[0].mxu0
        %1451 = vdwg.mxu0
        %1453 = vrot.lane.b32.xlu0 %v1198, 96
        %v1454 = vpop.permute.xlu0 %1453
        %v1456 = vsel %vm1204, %v1190, 0
        %v1459 = vsel %vm1204, %v1454, 0
        %1461 = vmatprep.subr.bf16.mxu0 0
        %1462 = vmatpush1.bf16.xpose.msra.mxu0 %v1459
        %1463 = vmatprep.subr.bf16.mxu0 0
        %1464 = vmatpush1.bf16.xpose.msra.mxu0 0
        %1465 = vmatprep.subr.bf16.mxu0 0
        %1466 = vmatpush1.bf16.xpose.msra.mxu0 0
        %1467 = vmatprep.subr.bf16.mxu0 0
        %1468 = vmatpush1.bf16.xpose.msra.mxu0 0
        %1469 = vmatprep.subr.bf16.mxu0 0
        %1470 = vmatpush1.bf16.xpose.msra.mxu0 0
        %1471 = vmatprep.subr.bf16.mxu0 0
        %1472 = vmatpush1.bf16.xpose.msra.mxu0 0
        %1473 = vmatprep.subr.bf16.mxu0 0
        %1474 = vmatpush1.bf16.xpose.msra.mxu0 0
        %1475 = vmatprep.subr.bf16.mxu0 0
        %1476 = vmatpush1.bf16.xpose.msra.mxu0 0
        %1477 = vmatprep.subr.bf16.mxu0 0
        %1478 = vmatpush1.bf16.xpose.msra.mxu0 0
        %1479 = vmatprep.subr.bf16.mxu0 0
        %1480 = vmatpush1.bf16.xpose.msra.mxu0 0
        %1481 = vmatprep.subr.bf16.mxu0 0
        %1482 = vmatpush1.bf16.xpose.msra.mxu0 0
        %1483 = vmatprep.subr.bf16.mxu0 0
        %1484 = vmatpush1.bf16.xpose.msra.mxu0 0
        %1485 = vmatprep.subr.bf16.mxu0 0
        %1486 = vmatpush1.bf16.xpose.msra.mxu0 0
        %1487 = vmatprep.subr.bf16.mxu0 0
        %1488 = vmatpush1.bf16.xpose.msra.mxu0 0
        %1489 = vmatprep.subr.bf16.mxu0 0
        %1490 = vmatpush1.bf16.xpose.msra.mxu0 0
        %1491 = vmatprep.subr.bf16.mxu0 0
        %1492 = vmatpush1.bf16.xpose.msra.mxu0 0
        %1493 = vmatprep.mubr.bf16.mxu0 0
        %1494 = vmatmul.mubr.bf16.gmra.mrb[0].mxu0 %v1456
        %v1495 = vpop.f32.mrb[0].mxu0
        %v1496 = vadd.f32 0.0, %v1495
        %v1497 = vpop.f32.mrb[0].mxu0
        %v1498 = vpop.f32.mrb[0].mxu0
        %v1499 = vadd.f32 0.0, %v1498
        %v1500 = vpop.f32.mrb[0].mxu0
        %1501 = vdwg.mxu0
        %1503 = vrot.lane.b32.xlu0 %v1199, 96
        %v1504 = vpop.permute.xlu0 %1503
        %v1506 = vsel %vm1204, %v1191, 0
        %v1509 = vsel %vm1204, %v1504, 0
        %1511 = vmatprep.subr.bf16.mxu0 0
        %1512 = vmatpush1.bf16.xpose.msra.mxu0 %v1509
        %1513 = vmatprep.subr.bf16.mxu0 0
        %1514 = vmatpush1.bf16.xpose.msra.mxu0 0
        %1515 = vmatprep.subr.bf16.mxu0 0
        %1516 = vmatpush1.bf16.xpose.msra.mxu0 0
        %1517 = vmatprep.subr.bf16.mxu0 0
        %1518 = vmatpush1.bf16.xpose.msra.mxu0 0
        %1519 = vmatprep.subr.bf16.mxu0 0
        %1520 = vmatpush1.bf16.xpose.msra.mxu0 0
        %1521 = vmatprep.subr.bf16.mxu0 0
        %1522 = vmatpush1.bf16.xpose.msra.mxu0 0
        %1523 = vmatprep.subr.bf16.mxu0 0
        %1524 = vmatpush1.bf16.xpose.msra.mxu0 0
        %1525 = vmatprep.subr.bf16.mxu0 0
        %1526 = vmatpush1.bf16.xpose.msra.mxu0 0
        %1527 = vmatprep.subr.bf16.mxu0 0
        %1528 = vmatpush1.bf16.xpose.msra.mxu0 0
        %1529 = vmatprep.subr.bf16.mxu0 0
        %1530 = vmatpush1.bf16.xpose.msra.mxu0 0
        %1531 = vmatprep.subr.bf16.mxu0 0
        %1532 = vmatpush1.bf16.xpose.msra.mxu0 0
        %1533 = vmatprep.subr.bf16.mxu0 0
        %1534 = vmatpush1.bf16.xpose.msra.mxu0 0
        %1535 = vmatprep.subr.bf16.mxu0 0
        %1536 = vmatpush1.bf16.xpose.msra.mxu0 0
        %1537 = vmatprep.subr.bf16.mxu0 0
        %1538 = vmatpush1.bf16.xpose.msra.mxu0 0
        %1539 = vmatprep.subr.bf16.mxu0 0
        %1540 = vmatpush1.bf16.xpose.msra.mxu0 0
        %1541 = vmatprep.subr.bf16.mxu0 0
        %1542 = vmatpush1.bf16.xpose.msra.mxu0 0
        %1543 = vmatprep.mubr.bf16.mxu0 0
        %1544 = vmatmul.mubr.bf16.gmra.mrb[0].mxu0 %v1506
        %v1545 = vpop.f32.mrb[0].mxu0
        %v1546 = vadd.f32 0.0, %v1545
        %v1547 = vpop.f32.mrb[0].mxu0
        %v1548 = vpop.f32.mrb[0].mxu0
        %v1549 = vadd.f32 0.0, %v1548
        %v1550 = vpop.f32.mrb[0].mxu0
        %1551 = vdwg.mxu0
        %1553 = vrot.lane.b32.xlu0 %v1200, 96
        %v1554 = vpop.permute.xlu0 %1553
        %v1556 = vsel %vm1204, %v1192, 0
        %v1559 = vsel %vm1204, %v1554, 0
        %1561 = vmatprep.subr.bf16.mxu0 0
        %1562 = vmatpush1.bf16.xpose.msra.mxu0 %v1559
        %1563 = vmatprep.subr.bf16.mxu0 0
        %1564 = vmatpush1.bf16.xpose.msra.mxu0 0
        %1565 = vmatprep.subr.bf16.mxu0 0
        %1566 = vmatpush1.bf16.xpose.msra.mxu0 0
        %1567 = vmatprep.subr.bf16.mxu0 0
        %1568 = vmatpush1.bf16.xpose.msra.mxu0 0
        %1569 = vmatprep.subr.bf16.mxu0 0
        %1570 = vmatpush1.bf16.xpose.msra.mxu0 0
        %1571 = vmatprep.subr.bf16.mxu0 0
        %1572 = vmatpush1.bf16.xpose.msra.mxu0 0
        %1573 = vmatprep.subr.bf16.mxu0 0
        %1574 = vmatpush1.bf16.xpose.msra.mxu0 0
        %1575 = vmatprep.subr.bf16.mxu0 0
        %1576 = vmatpush1.bf16.xpose.msra.mxu0 0
        %1577 = vmatprep.subr.bf16.mxu0 0
        %1578 = vmatpush1.bf16.xpose.msra.mxu0 0
        %1579 = vmatprep.subr.bf16.mxu0 0
        %1580 = vmatpush1.bf16.xpose.msra.mxu0 0
        %1581 = vmatprep.subr.bf16.mxu0 0
        %1582 = vmatpush1.bf16.xpose.msra.mxu0 0
        %1583 = vmatprep.subr.bf16.mxu0 0
        %1584 = vmatpush1.bf16.xpose.msra.mxu0 0
        %1585 = vmatprep.subr.bf16.mxu0 0
        %1586 = vmatpush1.bf16.xpose.msra.mxu0 0
        %1587 = vmatprep.subr.bf16.mxu0 0
        %1588 = vmatpush1.bf16.xpose.msra.mxu0 0
        %1589 = vmatprep.subr.bf16.mxu0 0
        %1590 = vmatpush1.bf16.xpose.msra.mxu0 0
        %1591 = vmatprep.subr.bf16.mxu0 0
        %1592 = vmatpush1.bf16.xpose.msra.mxu0 0
        %1593 = vmatprep.mubr.bf16.mxu0 0
        %1594 = vmatmul.mubr.bf16.gmra.mrb[0].mxu0 %v1556
        %v1595 = vpop.f32.mrb[0].mxu0
        %v1596 = vadd.f32 0.0, %v1595
        %v1597 = vpop.f32.mrb[0].mxu0
        %v1598 = vpop.f32.mrb[0].mxu0
        %v1599 = vadd.f32 0.0, %v1598
        %v1600 = vpop.f32.mrb[0].mxu0
        %1601 = vdwg.mxu0
        %vm1602 = vcmask 130048
        %v1603 = vsel %vm1602, %v1246, -inf
        %1604 = vmax.xlane.f32.xlu0 %v1603
        %v1605 = vpop.xlane.xlu0 %1604
        %v1606 = vsel %vm1602, %v1249, -inf
        %1607 = vmax.xlane.f32.xlu0 %v1606
        %v1608 = vpop.xlane.xlu0 %1607
        %v1609 = vsel %vm1602, %v1296, -inf
        %1610 = vmax.xlane.f32.xlu0 %v1609
        %v1611 = vpop.xlane.xlu0 %1610
        %v1612 = vsel %vm1602, %v1299, -inf
        %1613 = vmax.xlane.f32.xlu0 %v1612
        %v1614 = vpop.xlane.xlu0 %1613
        %v1615 = vsel %vm1602, %v1346, -inf
        %1616 = vmax.xlane.f32.xlu0 %v1615
        %v1617 = vpop.xlane.xlu0 %1616
        %v1618 = vsel %vm1602, %v1349, -inf
        %1619 = vmax.xlane.f32.xlu0 %v1618
        %v1620 = vpop.xlane.xlu0 %1619
        %v1621 = vsel %vm1602, %v1396, -inf
        %1622 = vmax.xlane.f32.xlu0 %v1621
        %v1623 = vpop.xlane.xlu0 %1622
        %v1624 = vsel %vm1602, %v1399, -inf
        %1625 = vmax.xlane.f32.xlu0 %v1624
        %v1626 = vpop.xlane.xlu0 %1625
        %v1627 = vsel %vm1602, %v1446, -inf
        %1628 = vmax.xlane.f32.xlu0 %v1627
        %v1629 = vpop.xlane.xlu0 %1628
        %v1630 = vsel %vm1602, %v1449, -inf
        %1631 = vmax.xlane.f32.xlu0 %v1630
        %v1632 = vpop.xlane.xlu0 %1631
        %v1633 = vsel %vm1602, %v1496, -inf
        %1634 = vmax.xlane.f32.xlu0 %v1633
        %v1635 = vpop.xlane.xlu0 %1634
        %v1636 = vsel %vm1602, %v1499, -inf
        %1637 = vmax.xlane.f32.xlu0 %v1636
        %v1638 = vpop.xlane.xlu0 %1637
        %v1639 = vsel %vm1602, %v1546, -inf
        %1640 = vmax.xlane.f32.xlu0 %v1639
        %v1641 = vpop.xlane.xlu0 %1640
        %v1642 = vsel %vm1602, %v1549, -inf
        %1643 = vmax.xlane.f32.xlu0 %v1642
        %v1644 = vpop.xlane.xlu0 %1643
        %v1645 = vsel %vm1602, %v1596, -inf
        %1646 = vmax.xlane.f32.xlu0 %v1645
        %v1647 = vpop.xlane.xlu0 %1646
        %v1648 = vsel %vm1602, %v1599, -inf
        %1649 = vmax.xlane.f32.xlu0 %v1648
        %v1650 = vpop.xlane.xlu0 %1649
        %v1651 = vsub.f32 %v1246, %v1605
        %v1652 = vsub.f32 %v1249, %v1608
        %v1653 = vsub.f32 %v1296, %v1611
        %v1654 = vsub.f32 %v1299, %v1614
        %v1655 = vsub.f32 %v1346, %v1617
        %v1656 = vsub.f32 %v1349, %v1620
        %v1657 = vsub.f32 %v1396, %v1623
        %v1658 = vsub.f32 %v1399, %v1626
        %v1659 = vsub.f32 %v1446, %v1629
        %v1660 = vsub.f32 %v1449, %v1632
        %v1661 = vsub.f32 %v1496, %v1635
        %v1662 = vsub.f32 %v1499, %v1638
        %v1663 = vsub.f32 %v1546, %v1641
        %v1664 = vsub.f32 %v1549, %v1644
        %v1665 = vsub.f32 %v1596, %v1647
        %v1666 = vsub.f32 %v1599, %v1650
        %v1667 = vmul.f32 %v1651, 1.442695
        %v1668 = vpow.pop %v1667
        %v1669 = vmul.f32 %v1652, 1.442695
        %v1670 = vpow.pop %v1669
        %v1671 = vmul.f32 %v1653, 1.442695
        %v1672 = vpow.pop %v1671
        %v1673 = vmul.f32 %v1654, 1.442695
        %v1674 = vpow.pop %v1673
        %v1675 = vmul.f32 %v1655, 1.442695
        %v1676 = vpow.pop %v1675
        %v1677 = vmul.f32 %v1656, 1.442695
        %v1678 = vpow.pop %v1677
        %v1679 = vmul.f32 %v1657, 1.442695
        %v1680 = vpow.pop %v1679
        %v1681 = vmul.f32 %v1658, 1.442695
        %v1682 = vpow.pop %v1681
        %v1683 = vmul.f32 %v1659, 1.442695
        %v1684 = vpow.pop %v1683
        %v1685 = vmul.f32 %v1660, 1.442695
        %v1686 = vpow.pop %v1685
        %v1687 = vmul.f32 %v1661, 1.442695
        %v1688 = vpow.pop %v1687
        %v1689 = vmul.f32 %v1662, 1.442695
        %v1690 = vpow.pop %v1689
        %v1691 = vmul.f32 %v1663, 1.442695
        %v1692 = vpow.pop %v1691
        %v1693 = vmul.f32 %v1664, 1.442695
        %v1694 = vpow.pop %v1693
        %v1695 = vmul.f32 %v1665, 1.442695
        %v1696 = vpow.pop %v1695
        %v1697 = vmul.f32 %v1666, 1.442695
        %v1698 = vpow.pop %v1697
        %v1699 = vsel %vm1602, %v1668, 0.0
        %1700 = vadd.xlane.f32.xlu0 %v1699
        %v1701 = vpop.xlane.xlu0 %1700
        %v1702 = vsel %vm1602, %v1670, 0.0
        %1703 = vadd.xlane.f32.xlu0 %v1702
        %v1704 = vpop.xlane.xlu0 %1703
        %v1705 = vsel %vm1602, %v1672, 0.0
        %1706 = vadd.xlane.f32.xlu0 %v1705
        %v1707 = vpop.xlane.xlu0 %1706
        %v1708 = vsel %vm1602, %v1674, 0.0
        %1709 = vadd.xlane.f32.xlu0 %v1708
        %v1710 = vpop.xlane.xlu0 %1709
        %v1711 = vsel %vm1602, %v1676, 0.0
        %1712 = vadd.xlane.f32.xlu0 %v1711
        %v1713 = vpop.xlane.xlu0 %1712
        %v1714 = vsel %vm1602, %v1678, 0.0
        %1715 = vadd.xlane.f32.xlu0 %v1714
        %v1716 = vpop.xlane.xlu0 %1715
        %v1717 = vsel %vm1602, %v1680, 0.0
        %1718 = vadd.xlane.f32.xlu0 %v1717
        %v1719 = vpop.xlane.xlu0 %1718
        %v1720 = vsel %vm1602, %v1682, 0.0
        %1721 = vadd.xlane.f32.xlu0 %v1720
        %v1722 = vpop.xlane.xlu0 %1721
        %v1723 = vsel %vm1602, %v1684, 0.0
        %1724 = vadd.xlane.f32.xlu0 %v1723
        %v1725 = vpop.xlane.xlu0 %1724
        %v1726 = vsel %vm1602, %v1686, 0.0
        %1727 = vadd.xlane.f32.xlu0 %v1726
        %v1728 = vpop.xlane.xlu0 %1727
        %v1729 = vsel %vm1602, %v1688, 0.0
        %1730 = vadd.xlane.f32.xlu0 %v1729
        %v1731 = vpop.xlane.xlu0 %1730
        %v1732 = vsel %vm1602, %v1690, 0.0
        %1733 = vadd.xlane.f32.xlu0 %v1732
        %v1734 = vpop.xlane.xlu0 %1733
        %v1735 = vsel %vm1602, %v1692, 0.0
        %1736 = vadd.xlane.f32.xlu0 %v1735
        %v1737 = vpop.xlane.xlu0 %1736
        %v1738 = vsel %vm1602, %v1694, 0.0
        %1739 = vadd.xlane.f32.xlu0 %v1738
        %v1740 = vpop.xlane.xlu0 %1739
        %v1741 = vsel %vm1602, %v1696, 0.0
        %1742 = vadd.xlane.f32.xlu0 %v1741
        %v1743 = vpop.xlane.xlu0 %1742
        %v1744 = vsel %vm1602, %v1698, 0.0
        %1745 = vadd.xlane.f32.xlu0 %v1744
        %v1746 = vpop.xlane.xlu0 %1745
        %v1747 = vrcp.pop %v1701
        %v1748 = vrcp.pop %v1704
        %v1749 = vrcp.pop %v1707
        %v1750 = vrcp.pop %v1710
        %v1751 = vrcp.pop %v1713
        %v1752 = vrcp.pop %v1716
        %v1753 = vrcp.pop %v1719
        %v1754 = vrcp.pop %v1722
        %v1755 = vrcp.pop %v1725
        %v1756 = vrcp.pop %v1728
        %v1757 = vrcp.pop %v1731
        %v1758 = vrcp.pop %v1734
        %v1759 = vrcp.pop %v1737
        %v1760 = vrcp.pop %v1740
        %v1761 = vrcp.pop %v1743
        %v1762 = vrcp.pop %v1746
        %v1763 = vmul.f32 %v1668, %v1747
        %v1764 = vmul.f32 %v1670, %v1748
        %v1765 = vmul.f32 %v1672, %v1749
        %v1766 = vmul.f32 %v1674, %v1750
        %v1767 = vmul.f32 %v1676, %v1751
        %v1768 = vmul.f32 %v1678, %v1752
        %v1769 = vmul.f32 %v1680, %v1753
        %v1770 = vmul.f32 %v1682, %v1754
        %v1771 = vmul.f32 %v1684, %v1755
        %v1772 = vmul.f32 %v1686, %v1756
        %v1773 = vmul.f32 %v1688, %v1757
        %v1774 = vmul.f32 %v1690, %v1758
        %v1775 = vmul.f32 %v1692, %v1759
        %v1776 = vmul.f32 %v1694, %v1760
        %v1777 = vmul.f32 %v1696, %v1761
        %v1778 = vmul.f32 %v1698, %v1762
        %v1779 = vpack.c.bf16 %v1764, %v1763
        %v1780 = vpack.c.bf16 %v1766, %v1765
        %v1781 = vpack.c.bf16 %v1768, %v1767
        %v1782 = vpack.c.bf16 %v1770, %v1769
        %v1783 = vpack.c.bf16 %v1772, %v1771
        %v1784 = vpack.c.bf16 %v1774, %v1773
        %v1785 = vpack.c.bf16 %v1776, %v1775
        %v1786 = vpack.c.bf16 %v1778, %v1777
        %1787 = vrot.lane.b32.xlu0 %v1193, 64
        %v1788 = vpop.permute.xlu0 %1787
        %v1791 = vsel %vm1602, %v1779, 0
        %1793 = vmatprep.subr.bf16.mxu0 0
        %1794 = vmatpush1.bf16.msra.mxu0 %v1788
        %1795 = vmatprep.subr.bf16.mxu0 0
        %1796 = vmatpush1.bf16.msra.mxu0 0
        %1797 = vmatprep.subr.bf16.mxu0 0
        %1798 = vmatpush1.bf16.msra.mxu0 0
        %1799 = vmatprep.subr.bf16.mxu0 0
        %1800 = vmatpush1.bf16.msra.mxu0 0
        %1801 = vmatprep.subr.bf16.mxu0 0
        %1802 = vmatpush1.bf16.msra.mxu0 0
        %1803 = vmatprep.subr.bf16.mxu0 0
        %1804 = vmatpush1.bf16.msra.mxu0 0
        %1805 = vmatprep.subr.bf16.mxu0 0
        %1806 = vmatpush1.bf16.msra.mxu0 0
        %1807 = vmatprep.subr.bf16.mxu0 0
        %1808 = vmatpush1.bf16.msra.mxu0 0
        %1809 = vmatprep.subr.bf16.mxu0 0
        %1810 = vmatpush1.bf16.msra.mxu0 0
        %1811 = vmatprep.subr.bf16.mxu0 0
        %1812 = vmatpush1.bf16.msra.mxu0 0
        %1813 = vmatprep.subr.bf16.mxu0 0
        %1814 = vmatpush1.bf16.msra.mxu0 0
        %1815 = vmatprep.subr.bf16.mxu0 0
        %1816 = vmatpush1.bf16.msra.mxu0 0
        %1817 = vmatprep.subr.bf16.mxu0 0
        %1818 = vmatpush1.bf16.msra.mxu0 0
        %1819 = vmatprep.subr.bf16.mxu0 0
        %1820 = vmatpush1.bf16.msra.mxu0 0
        %1821 = vmatprep.subr.bf16.mxu0 0
        %1822 = vmatpush1.bf16.msra.mxu0 0
        %1823 = vmatprep.subr.bf16.mxu0 0
        %1824 = vmatpush1.bf16.msra.mxu0 0
        %1825 = vmatprep.mubr.bf16.mxu0 0
        %1826 = vmatmul.mubr.bf16.gmra.mrb[0].mxu0 %v1791
        %v1827 = vpop.f32.mrb[0].mxu0
        %v1828 = vadd.f32 0.0, %v1827
        %v1829 = vpop.f32.mrb[0].mxu0
        %v1830 = vpop.f32.mrb[0].mxu0
        %v1831 = vadd.f32 0.0, %v1830
        %v1832 = vpop.f32.mrb[0].mxu0
        %1833 = vdwg.mxu0
        %1834 = vrot.lane.b32.xlu0 %v1194, 64
        %v1835 = vpop.permute.xlu0 %1834
        %v1838 = vsel %vm1602, %v1780, 0
        %1840 = vmatprep.subr.bf16.mxu0 0
        %1841 = vmatpush1.bf16.msra.mxu0 %v1835
        %1842 = vmatprep.subr.bf16.mxu0 0
        %1843 = vmatpush1.bf16.msra.mxu0 0
        %1844 = vmatprep.subr.bf16.mxu0 0
        %1845 = vmatpush1.bf16.msra.mxu0 0
        %1846 = vmatprep.subr.bf16.mxu0 0
        %1847 = vmatpush1.bf16.msra.mxu0 0
        %1848 = vmatprep.subr.bf16.mxu0 0
        %1849 = vmatpush1.bf16.msra.mxu0 0
        %1850 = vmatprep.subr.bf16.mxu0 0
        %1851 = vmatpush1.bf16.msra.mxu0 0
        %1852 = vmatprep.subr.bf16.mxu0 0
        %1853 = vmatpush1.bf16.msra.mxu0 0
        %1854 = vmatprep.subr.bf16.mxu0 0
        %1855 = vmatpush1.bf16.msra.mxu0 0
        %1856 = vmatprep.subr.bf16.mxu0 0
        %1857 = vmatpush1.bf16.msra.mxu0 0
        %1858 = vmatprep.subr.bf16.mxu0 0
        %1859 = vmatpush1.bf16.msra.mxu0 0
        %1860 = vmatprep.subr.bf16.mxu0 0
        %1861 = vmatpush1.bf16.msra.mxu0 0
        %1862 = vmatprep.subr.bf16.mxu0 0
        %1863 = vmatpush1.bf16.msra.mxu0 0
        %1864 = vmatprep.subr.bf16.mxu0 0
        %1865 = vmatpush1.bf16.msra.mxu0 0
        %1866 = vmatprep.subr.bf16.mxu0 0
        %1867 = vmatpush1.bf16.msra.mxu0 0
        %1868 = vmatprep.subr.bf16.mxu0 0
        %1869 = vmatpush1.bf16.msra.mxu0 0
        %1870 = vmatprep.subr.bf16.mxu0 0
        %1871 = vmatpush1.bf16.msra.mxu0 0
        %1872 = vmatprep.mubr.bf16.mxu0 0
        %1873 = vmatmul.mubr.bf16.gmra.mrb[0].mxu0 %v1838
        %v1874 = vpop.f32.mrb[0].mxu0
        %v1875 = vadd.f32 0.0, %v1874
        %v1876 = vpop.f32.mrb[0].mxu0
        %v1877 = vpop.f32.mrb[0].mxu0
        %v1878 = vadd.f32 0.0, %v1877
        %v1879 = vpop.f32.mrb[0].mxu0
        %1880 = vdwg.mxu0
        %1881 = vrot.lane.b32.xlu0 %v1195, 64
        %v1882 = vpop.permute.xlu0 %1881
        %v1885 = vsel %vm1602, %v1781, 0
        %1887 = vmatprep.subr.bf16.mxu0 0
        %1888 = vmatpush1.bf16.msra.mxu0 %v1882
        %1889 = vmatprep.subr.bf16.mxu0 0
        %1890 = vmatpush1.bf16.msra.mxu0 0
        %1891 = vmatprep.subr.bf16.mxu0 0
        %1892 = vmatpush1.bf16.msra.mxu0 0
        %1893 = vmatprep.subr.bf16.mxu0 0
        %1894 = vmatpush1.bf16.msra.mxu0 0
        %1895 = vmatprep.subr.bf16.mxu0 0
        %1896 = vmatpush1.bf16.msra.mxu0 0
        %1897 = vmatprep.subr.bf16.mxu0 0
        %1898 = vmatpush1.bf16.msra.mxu0 0
        %1899 = vmatprep.subr.bf16.mxu0 0
        %1900 = vmatpush1.bf16.msra.mxu0 0
        %1901 = vmatprep.subr.bf16.mxu0 0
        %1902 = vmatpush1.bf16.msra.mxu0 0
        %1903 = vmatprep.subr.bf16.mxu0 0
        %1904 = vmatpush1.bf16.msra.mxu0 0
        %1905 = vmatprep.subr.bf16.mxu0 0
        %1906 = vmatpush1.bf16.msra.mxu0 0
        %1907 = vmatprep.subr.bf16.mxu0 0
        %1908 = vmatpush1.bf16.msra.mxu0 0
        %1909 = vmatprep.subr.bf16.mxu0 0
        %1910 = vmatpush1.bf16.msra.mxu0 0
        %1911 = vmatprep.subr.bf16.mxu0 0
        %1912 = vmatpush1.bf16.msra.mxu0 0
        %1913 = vmatprep.subr.bf16.mxu0 0
        %1914 = vmatpush1.bf16.msra.mxu0 0
        %1915 = vmatprep.subr.bf16.mxu0 0
        %1916 = vmatpush1.bf16.msra.mxu0 0
        %1917 = vmatprep.subr.bf16.mxu0 0
        %1918 = vmatpush1.bf16.msra.mxu0 0
        %1919 = vmatprep.mubr.bf16.mxu0 0
        %1920 = vmatmul.mubr.bf16.gmra.mrb[0].mxu0 %v1885
        %v1921 = vpop.f32.mrb[0].mxu0
        %v1922 = vadd.f32 0.0, %v1921
        %v1923 = vpop.f32.mrb[0].mxu0
        %v1924 = vpop.f32.mrb[0].mxu0
        %v1925 = vadd.f32 0.0, %v1924
        %v1926 = vpop.f32.mrb[0].mxu0
        %1927 = vdwg.mxu0
        %1928 = vrot.lane.b32.xlu0 %v1196, 64
        %v1929 = vpop.permute.xlu0 %1928
        %v1932 = vsel %vm1602, %v1782, 0
        %1934 = vmatprep.subr.bf16.mxu0 0
        %1935 = vmatpush1.bf16.msra.mxu0 %v1929
        %1936 = vmatprep.subr.bf16.mxu0 0
        %1937 = vmatpush1.bf16.msra.mxu0 0
        %1938 = vmatprep.subr.bf16.mxu0 0
        %1939 = vmatpush1.bf16.msra.mxu0 0
        %1940 = vmatprep.subr.bf16.mxu0 0
        %1941 = vmatpush1.bf16.msra.mxu0 0
        %1942 = vmatprep.subr.bf16.mxu0 0
        %1943 = vmatpush1.bf16.msra.mxu0 0
        %1944 = vmatprep.subr.bf16.mxu0 0
        %1945 = vmatpush1.bf16.msra.mxu0 0
        %1946 = vmatprep.subr.bf16.mxu0 0
        %1947 = vmatpush1.bf16.msra.mxu0 0
        %1948 = vmatprep.subr.bf16.mxu0 0
        %1949 = vmatpush1.bf16.msra.mxu0 0
        %1950 = vmatprep.subr.bf16.mxu0 0
        %1951 = vmatpush1.bf16.msra.mxu0 0
        %1952 = vmatprep.subr.bf16.mxu0 0
        %1953 = vmatpush1.bf16.msra.mxu0 0
        %1954 = vmatprep.subr.bf16.mxu0 0
        %1955 = vmatpush1.bf16.msra.mxu0 0
        %1956 = vmatprep.subr.bf16.mxu0 0
        %1957 = vmatpush1.bf16.msra.mxu0 0
        %1958 = vmatprep.subr.bf16.mxu0 0
        %1959 = vmatpush1.bf16.msra.mxu0 0
        %1960 = vmatprep.subr.bf16.mxu0 0
        %1961 = vmatpush1.bf16.msra.mxu0 0
        %1962 = vmatprep.subr.bf16.mxu0 0
        %1963 = vmatpush1.bf16.msra.mxu0 0
        %1964 = vmatprep.subr.bf16.mxu0 0
        %1965 = vmatpush1.bf16.msra.mxu0 0
        %1966 = vmatprep.mubr.bf16.mxu0 0
        %1967 = vmatmul.mubr.bf16.gmra.mrb[0].mxu0 %v1932
        %v1968 = vpop.f32.mrb[0].mxu0
        %v1969 = vadd.f32 0.0, %v1968
        %v1970 = vpop.f32.mrb[0].mxu0
        %v1971 = vpop.f32.mrb[0].mxu0
        %v1972 = vadd.f32 0.0, %v1971
        %v1973 = vpop.f32.mrb[0].mxu0
        %1974 = vdwg.mxu0
        %1975 = vrot.lane.b32.xlu0 %v1197, 64
        %v1976 = vpop.permute.xlu0 %1975
        %v1979 = vsel %vm1602, %v1783, 0
        %1981 = vmatprep.subr.bf16.mxu0 0
        %1982 = vmatpush1.bf16.msra.mxu0 %v1976
        %1983 = vmatprep.subr.bf16.mxu0 0
        %1984 = vmatpush1.bf16.msra.mxu0 0
        %1985 = vmatprep.subr.bf16.mxu0 0
        %1986 = vmatpush1.bf16.msra.mxu0 0
        %1987 = vmatprep.subr.bf16.mxu0 0
        %1988 = vmatpush1.bf16.msra.mxu0 0
        %1989 = vmatprep.subr.bf16.mxu0 0
        %1990 = vmatpush1.bf16.msra.mxu0 0
        %1991 = vmatprep.subr.bf16.mxu0 0
        %1992 = vmatpush1.bf16.msra.mxu0 0
        %1993 = vmatprep.subr.bf16.mxu0 0
        %1994 = vmatpush1.bf16.msra.mxu0 0
        %1995 = vmatprep.subr.bf16.mxu0 0
        %1996 = vmatpush1.bf16.msra.mxu0 0
        %1997 = vmatprep.subr.bf16.mxu0 0
        %1998 = vmatpush1.bf16.msra.mxu0 0
        %1999 = vmatprep.subr.bf16.mxu0 0
        %2000 = vmatpush1.bf16.msra.mxu0 0
        %2001 = vmatprep.subr.bf16.mxu0 0
        %2002 = vmatpush1.bf16.msra.mxu0 0
        %2003 = vmatprep.subr.bf16.mxu0 0
        %2004 = vmatpush1.bf16.msra.mxu0 0
        %2005 = vmatprep.subr.bf16.mxu0 0
        %2006 = vmatpush1.bf16.msra.mxu0 0
        %2007 = vmatprep.subr.bf16.mxu0 0
        %2008 = vmatpush1.bf16.msra.mxu0 0
        %2009 = vmatprep.subr.bf16.mxu0 0
        %2010 = vmatpush1.bf16.msra.mxu0 0
        %2011 = vmatprep.subr.bf16.mxu0 0
        %2012 = vmatpush1.bf16.msra.mxu0 0
        %2013 = vmatprep.mubr.bf16.mxu0 0
        %2014 = vmatmul.mubr.bf16.gmra.mrb[0].mxu0 %v1979
        %v2015 = vpop.f32.mrb[0].mxu0
        %v2016 = vadd.f32 0.0, %v2015
        %v2017 = vpop.f32.mrb[0].mxu0
        %v2018 = vpop.f32.mrb[0].mxu0
        %v2019 = vadd.f32 0.0, %v2018
        %v2020 = vpop.f32.mrb[0].mxu0
        %2021 = vdwg.mxu0
        %2022 = vrot.lane.b32.xlu0 %v1198, 64
        %v2023 = vpop.permute.xlu0 %2022
        %v2026 = vsel %vm1602, %v1784, 0
        %2028 = vmatprep.subr.bf16.mxu0 0
        %2029 = vmatpush1.bf16.msra.mxu0 %v2023
        %2030 = vmatprep.subr.bf16.mxu0 0
        %2031 = vmatpush1.bf16.msra.mxu0 0
        %2032 = vmatprep.subr.bf16.mxu0 0
        %2033 = vmatpush1.bf16.msra.mxu0 0
        %2034 = vmatprep.subr.bf16.mxu0 0
        %2035 = vmatpush1.bf16.msra.mxu0 0
        %2036 = vmatprep.subr.bf16.mxu0 0
        %2037 = vmatpush1.bf16.msra.mxu0 0
        %2038 = vmatprep.subr.bf16.mxu0 0
        %2039 = vmatpush1.bf16.msra.mxu0 0
        %2040 = vmatprep.subr.bf16.mxu0 0
        %2041 = vmatpush1.bf16.msra.mxu0 0
        %2042 = vmatprep.subr.bf16.mxu0 0
        %2043 = vmatpush1.bf16.msra.mxu0 0
        %2044 = vmatprep.subr.bf16.mxu0 0
        %2045 = vmatpush1.bf16.msra.mxu0 0
        %2046 = vmatprep.subr.bf16.mxu0 0
        %2047 = vmatpush1.bf16.msra.mxu0 0
        %2048 = vmatprep.subr.bf16.mxu0 0
        %2049 = vmatpush1.bf16.msra.mxu0 0
        %2050 = vmatprep.subr.bf16.mxu0 0
        %2051 = vmatpush1.bf16.msra.mxu0 0
        %2052 = vmatprep.subr.bf16.mxu0 0
        %2053 = vmatpush1.bf16.msra.mxu0 0
        %2054 = vmatprep.subr.bf16.mxu0 0
        %2055 = vmatpush1.bf16.msra.mxu0 0
        %2056 = vmatprep.subr.bf16.mxu0 0
        %2057 = vmatpush1.bf16.msra.mxu0 0
        %2058 = vmatprep.subr.bf16.mxu0 0
        %2059 = vmatpush1.bf16.msra.mxu0 0
        %2060 = vmatprep.mubr.bf16.mxu0 0
        %2061 = vmatmul.mubr.bf16.gmra.mrb[0].mxu0 %v2026
        %v2062 = vpop.f32.mrb[0].mxu0
        %v2063 = vadd.f32 0.0, %v2062
        %v2064 = vpop.f32.mrb[0].mxu0
        %v2065 = vpop.f32.mrb[0].mxu0
        %v2066 = vadd.f32 0.0, %v2065
        %v2067 = vpop.f32.mrb[0].mxu0
        %2068 = vdwg.mxu0
        %2069 = vrot.lane.b32.xlu0 %v1199, 64
        %v2070 = vpop.permute.xlu0 %2069
        %v2073 = vsel %vm1602, %v1785, 0
        %2075 = vmatprep.subr.bf16.mxu0 0
        %2076 = vmatpush1.bf16.msra.mxu0 %v2070
        %2077 = vmatprep.subr.bf16.mxu0 0
        %2078 = vmatpush1.bf16.msra.mxu0 0
        %2079 = vmatprep.subr.bf16.mxu0 0
        %2080 = vmatpush1.bf16.msra.mxu0 0
        %2081 = vmatprep.subr.bf16.mxu0 0
        %2082 = vmatpush1.bf16.msra.mxu0 0
        %2083 = vmatprep.subr.bf16.mxu0 0
        %2084 = vmatpush1.bf16.msra.mxu0 0
        %2085 = vmatprep.subr.bf16.mxu0 0
        %2086 = vmatpush1.bf16.msra.mxu0 0
        %2087 = vmatprep.subr.bf16.mxu0 0
        %2088 = vmatpush1.bf16.msra.mxu0 0
        %2089 = vmatprep.subr.bf16.mxu0 0
        %2090 = vmatpush1.bf16.msra.mxu0 0
        %2091 = vmatprep.subr.bf16.mxu0 0
        %2092 = vmatpush1.bf16.msra.mxu0 0
        %2093 = vmatprep.subr.bf16.mxu0 0
        %2094 = vmatpush1.bf16.msra.mxu0 0
        %2095 = vmatprep.subr.bf16.mxu0 0
        %2096 = vmatpush1.bf16.msra.mxu0 0
        %2097 = vmatprep.subr.bf16.mxu0 0
        %2098 = vmatpush1.bf16.msra.mxu0 0
        %2099 = vmatprep.subr.bf16.mxu0 0
        %2100 = vmatpush1.bf16.msra.mxu0 0
        %2101 = vmatprep.subr.bf16.mxu0 0
        %2102 = vmatpush1.bf16.msra.mxu0 0
        %2103 = vmatprep.subr.bf16.mxu0 0
        %2104 = vmatpush1.bf16.msra.mxu0 0
        %2105 = vmatprep.subr.bf16.mxu0 0
        %2106 = vmatpush1.bf16.msra.mxu0 0
        %2107 = vmatprep.mubr.bf16.mxu0 0
        %2108 = vmatmul.mubr.bf16.gmra.mrb[0].mxu0 %v2073
        %v2109 = vpop.f32.mrb[0].mxu0
        %v2110 = vadd.f32 0.0, %v2109
        %v2111 = vpop.f32.mrb[0].mxu0
        %v2112 = vpop.f32.mrb[0].mxu0
        %v2113 = vadd.f32 0.0, %v2112
        %v2114 = vpop.f32.mrb[0].mxu0
        %2115 = vdwg.mxu0
        %2116 = vrot.lane.b32.xlu0 %v1200, 64
        %v2117 = vpop.permute.xlu0 %2116
        %v2120 = vsel %vm1602, %v1786, 0
        %2122 = vmatprep.subr.bf16.mxu0 0
        %2123 = vmatpush1.bf16.msra.mxu0 %v2117
        %2124 = vmatprep.subr.bf16.mxu0 0
        %2125 = vmatpush1.bf16.msra.mxu0 0
        %2126 = vmatprep.subr.bf16.mxu0 0
        %2127 = vmatpush1.bf16.msra.mxu0 0
        %2128 = vmatprep.subr.bf16.mxu0 0
        %2129 = vmatpush1.bf16.msra.mxu0 0
        %2130 = vmatprep.subr.bf16.mxu0 0
        %2131 = vmatpush1.bf16.msra.mxu0 0
        %2132 = vmatprep.subr.bf16.mxu0 0
        %2133 = vmatpush1.bf16.msra.mxu0 0
        %2134 = vmatprep.subr.bf16.mxu0 0
        %2135 = vmatpush1.bf16.msra.mxu0 0
        %2136 = vmatprep.subr.bf16.mxu0 0
        %2137 = vmatpush1.bf16.msra.mxu0 0
        %2138 = vmatprep.subr.bf16.mxu0 0
        %2139 = vmatpush1.bf16.msra.mxu0 0
        %2140 = vmatprep.subr.bf16.mxu0 0
        %2141 = vmatpush1.bf16.msra.mxu0 0
        %2142 = vmatprep.subr.bf16.mxu0 0
        %2143 = vmatpush1.bf16.msra.mxu0 0
        %2144 = vmatprep.subr.bf16.mxu0 0
        %2145 = vmatpush1.bf16.msra.mxu0 0
        %2146 = vmatprep.subr.bf16.mxu0 0
        %2147 = vmatpush1.bf16.msra.mxu0 0
        %2148 = vmatprep.subr.bf16.mxu0 0
        %2149 = vmatpush1.bf16.msra.mxu0 0
        %2150 = vmatprep.subr.bf16.mxu0 0
        %2151 = vmatpush1.bf16.msra.mxu0 0
        %2152 = vmatprep.subr.bf16.mxu0 0
        %2153 = vmatpush1.bf16.msra.mxu0 0
        %2154 = vmatprep.mubr.bf16.mxu0 0
        %2155 = vmatmul.mubr.bf16.gmra.mrb[0].mxu0 %v2120
        %v2156 = vpop.f32.mrb[0].mxu0
        %v2157 = vadd.f32 0.0, %v2156
        %v2158 = vpop.f32.mrb[0].mxu0
        %v2159 = vpop.f32.mrb[0].mxu0
        %v2160 = vadd.f32 0.0, %v2159
        %v2161 = vpop.f32.mrb[0].mxu0
        %2162 = vdwg.mxu0
        %2165 = vrot.lane.b32.xlu0 %v1875, 4
        %v2166 = vpop.permute.xlu0 %2165
        %2167 = vrot.lane.b32.xlu0 %v1878, 4
        %v2168 = vpop.permute.xlu0 %2167
        %2173 = vrot.lane.b32.xlu0 %v1922, 8
        %v2174 = vpop.permute.xlu0 %2173
        %2175 = vrot.lane.b32.xlu0 %v1925, 8
        %v2176 = vpop.permute.xlu0 %2175
        %2181 = vrot.lane.b32.xlu0 %v1969, 12
        %v2182 = vpop.permute.xlu0 %2181
        %2183 = vrot.lane.b32.xlu0 %v1972, 12
        %v2184 = vpop.permute.xlu0 %2183
        %2189 = vrot.lane.b32.xlu0 %v2016, 16
        %v2190 = vpop.permute.xlu0 %2189
        %2191 = vrot.lane.b32.xlu0 %v2019, 16
        %v2192 = vpop.permute.xlu0 %2191
        %2197 = vrot.lane.b32.xlu0 %v2063, 20
        %v2198 = vpop.permute.xlu0 %2197
        %2199 = vrot.lane.b32.xlu0 %v2066, 20
        %v2200 = vpop.permute.xlu0 %2199
        %2205 = vrot.lane.b32.xlu0 %v2110, 24
        %v2206 = vpop.permute.xlu0 %2205
        %2207 = vrot.lane.b32.xlu0 %v2113, 24
        %v2208 = vpop.permute.xlu0 %2207
        %2213 = vrot.lane.b32.xlu0 %v2157, 28
        %v2214 = vpop.permute.xlu0 %2213
        %2215 = vrot.lane.b32.xlu0 %v2160, 28
        %v2216 = vpop.permute.xlu0 %2215
        %v2219 = vsel %vm1204, %v1828, %v2166
        %v2220 = vsel %vm1204, %v1831, %v2168
        %vm2221 = vcmask 64512
        %v2222 = vsel %vm2221, %v2219, %v2174
        %v2223 = vsel %vm2221, %v2220, %v2176
        %vm2224 = vcmask 97280
        %v2225 = vsel %vm2224, %v2222, %v2182
        %v2226 = vsel %vm2224, %v2223, %v2184
        %v2227 = vsel %vm1602, %v2225, %v2190
        %v2228 = vsel %vm1602, %v2226, %v2192
        %vm2229 = vcmask 162816
        %v2230 = vsel %vm2229, %v2227, %v2198
        %v2231 = vsel %vm2229, %v2228, %v2200
        %vm2232 = vcmask 195584
        %v2233 = vsel %vm2232, %v2230, %v2206
        %v2234 = vsel %vm2232, %v2231, %v2208
        %vm2235 = vcmask 228352
        %v2236 = vsel %vm2235, %v2233, %v2214
        %v2237 = vsel %vm2235, %v2234, %v2216
        %v2238 = vpack.c.bf16 %v2237, %v2236
        %v2239 = vld [vmem:[%s687] sm:$0xf]
        %v2240 = vld [vmem:[%s687 + $0x4] sm:$0xf]
        %v2241 = vld [vmem:[%s687 + $0x8] sm:$0xf]
        %v2242 = vld [vmem:[%s687 + $0xc] sm:$0xf]
        %v2243 = vld [vmem:[%s806] sm:$0x1]
        %v2245 = vlaneseq
        %v2246 = vshrl.u32 %v2245, 7
        %v2247 = vsub.s32 0, %v2246
        %v2248 = vrot.slane %v2243, %v2247
        %v2254 = vunpack.c.l.b16 %v2239
        %v2255 = vunpack.c.l.b16 %v2240
        %v2256 = vunpack.c.l.b16 %v2241
        %v2257 = vunpack.c.l.b16 %v2242
        %v2258 = vpack.c.b16 %v2255, %v2254
        %v2259 = vpack.c.b16 %v2257, %v2256
        %v2263 = vsel %vm1080, %v2238, 0
        %2265 = vmatprep.subr.bf16.mxu0 0
        %2266 = vmatpush1.bf16.msra.mxu0 %v2258
        %2267 = vmatprep.subr.bf16.mxu0 0
        %2268 = vmatpush1.bf16.msra.mxu0 %v2259
        %2269 = vmatprep.subr.bf16.mxu0 0
        %2270 = vmatpush1.bf16.msra.mxu0 0
        %2271 = vmatprep.subr.bf16.mxu0 0
        %2272 = vmatpush1.bf16.msra.mxu0 0
        %2273 = vmatprep.subr.bf16.mxu0 0
        %2274 = vmatpush1.bf16.msra.mxu0 0
        %2275 = vmatprep.subr.bf16.mxu0 0
        %2276 = vmatpush1.bf16.msra.mxu0 0
        %2277 = vmatprep.subr.bf16.mxu0 0
        %2278 = vmatpush1.bf16.msra.mxu0 0
        %2279 = vmatprep.subr.bf16.mxu0 0
        %2280 = vmatpush1.bf16.msra.mxu0 0
        %2281 = vmatprep.subr.bf16.mxu0 0
        %2282 = vmatpush1.bf16.msra.mxu0 0
        %2283 = vmatprep.subr.bf16.mxu0 0
        %2284 = vmatpush1.bf16.msra.mxu0 0
        %2285 = vmatprep.subr.bf16.mxu0 0
        %2286 = vmatpush1.bf16.msra.mxu0 0
        %2287 = vmatprep.subr.bf16.mxu0 0
        %2288 = vmatpush1.bf16.msra.mxu0 0
        %2289 = vmatprep.subr.bf16.mxu0 0
        %2290 = vmatpush1.bf16.msra.mxu0 0
        %2291 = vmatprep.subr.bf16.mxu0 0
        %2292 = vmatpush1.bf16.msra.mxu0 0
        %2293 = vmatprep.subr.bf16.mxu0 0
        %2294 = vmatpush1.bf16.msra.mxu0 0
        %2295 = vmatprep.subr.bf16.mxu0 0
        %2296 = vmatpush1.bf16.msra.mxu0 0
        %2297 = vmatprep.mubr.bf16.mxu0 0
        %2298 = vmatmul.mubr.bf16.gmra.mrb[0].mxu0 %v2263
        %v2299 = vpop.f32.mrb[0].mxu0
        %v2300 = vadd.f32 %v2248, %v2299
        %v2301 = vpop.f32.mrb[0].mxu0
        %v2302 = vpop.f32.mrb[0].mxu0
        %v2303 = vadd.f32 %v2248, %v2302
        %v2304 = vpop.f32.mrb[0].mxu0
        %2305 = vdwg.mxu0
        %v2306 = vadd.f32 %v1054, %v2300
        %v2307 = vadd.f32 %v1055, %v2303
        %v2308 = vld [vmem:[%s809] sm:$0x1]
        %v2309 = vld [vmem:[%s812] sm:$0x1]
        %v2310 = vsel %vm1080, %v2306, 0.0
        %2311 = vadd.xlane.f32.xlu0 %v2310
        %v2312 = vpop.xlane.xlu0 %2311
        %v2313 = vsel %vm1080, %v2307, 0.0
        %2314 = vadd.xlane.f32.xlu0 %v2313
        %v2315 = vpop.xlane.xlu0 %2314
        %v2316 = vrcp.pop 32.0
        %v2317 = vmul.f32 %v2312, %v2316
        %v2318 = vmul.f32 %v2315, %v2316
        %v2319 = vsub.f32 %v2306, %v2317
        %v2320 = vsub.f32 %v2307, %v2318
        %v2321 = vmul.f32 %v2319, %v2319
        %v2322 = vmul.f32 %v2320, %v2320
        %v2323 = vsel %vm1080, %v2321, 0.0
        %2324 = vadd.xlane.f32.xlu0 %v2323
        %v2325 = vpop.xlane.xlu0 %2324
        %v2326 = vsel %vm1080, %v2322, 0.0
        %2327 = vadd.xlane.f32.xlu0 %v2326
        %v2328 = vpop.xlane.xlu0 %2327
        %v2329 = vmul.f32 %v2325, %v2316
        %v2330 = vmul.f32 %v2328, %v2316
        %v2331 = vadd.f32 %v2329, 1e-05
        %v2332 = vadd.f32 %v2330, 1e-05
        %v2333 = vrsqrt.pop %v2331
        %v2334 = vrsqrt.pop %v2332
        %v2335 = vmul.f32 %v2319, %v2333
        %v2336 = vmul.f32 %v2320, %v2334
        %v2338 = vlaneseq
        %v2339 = vshrl.u32 %v2338, 7
        %v2340 = vsub.s32 0, %v2339
        %v2341 = vrot.slane %v2308, %v2340
        %v2343 = vmul.f32 %v2335, %v2341
        %v2344 = vmul.f32 %v2336, %v2341
        %v2346 = vlaneseq
        %v2347 = vshrl.u32 %v2346, 7
        %v2348 = vsub.s32 0, %v2347
        %v2349 = vrot.slane %v2309, %v2348
        %v2351 = vadd.f32 %v2343, %v2349
        %v2352 = vadd.f32 %v2344, %v2349
        %v2353 = vpack.c.bf16 %v2352, %v2351
        %v2354 = vld [vmem:[%s696] sm:$0xff]
        %v2355 = vld [vmem:[%s696 + $0x8] sm:$0xff]
        %v2356 = vld [vmem:[%s696 + $0x10] sm:$0xff]
        %v2357 = vld [vmem:[%s696 + $0x18] sm:$0xff]
        %v2358 = vld [vmem:[%s696 + $0x20] sm:$0xff]
        %v2359 = vld [vmem:[%s696 + $0x28] sm:$0xff]
        %v2360 = vld [vmem:[%s696 + $0x30] sm:$0xff]
        %v2361 = vld [vmem:[%s696 + $0x38] sm:$0xff]
        %v2362 = vld [vmem:[%s696 + $0x40] sm:$0xff]
        %v2363 = vld [vmem:[%s696 + $0x48] sm:$0xff]
        %v2364 = vld [vmem:[%s696 + $0x50] sm:$0xff]
        %v2365 = vld [vmem:[%s696 + $0x58] sm:$0xff]
        %v2366 = vld [vmem:[%s696 + $0x60] sm:$0xff]
        %v2367 = vld [vmem:[%s696 + $0x68] sm:$0xff]
        %v2368 = vld [vmem:[%s696 + $0x70] sm:$0xff]
        %v2369 = vld [vmem:[%s696 + $0x78] sm:$0xff]
        %v2370 = vld [vmem:[%s696 + $0x80] sm:$0xff]
        %v2371 = vld [vmem:[%s696 + $0x88] sm:$0xff]
        %v2372 = vld [vmem:[%s696 + $0x90] sm:$0xff]
        %v2373 = vld [vmem:[%s696 + $0x98] sm:$0xff]
        %v2374 = vld [vmem:[%s696 + $0xa0] sm:$0xff]
        %v2375 = vld [vmem:[%s696 + $0xa8] sm:$0xff]
        %v2376 = vld [vmem:[%s696 + $0xb0] sm:$0xff]
        %v2377 = vld [vmem:[%s696 + $0xb8] sm:$0xff]
        %v2378 = vld [vmem:[%s696 + $0xc0] sm:$0xff]
        %v2379 = vld [vmem:[%s696 + $0xc8] sm:$0xff]
        %v2380 = vld [vmem:[%s696 + $0xd0] sm:$0xff]
        %v2381 = vld [vmem:[%s696 + $0xd8] sm:$0xff]
        %v2382 = vld [vmem:[%s696 + $0xe0] sm:$0xff]
        %v2383 = vld [vmem:[%s696 + $0xe8] sm:$0xff]
        %v2384 = vld [vmem:[%s696 + $0xf0] sm:$0xff]
        %v2385 = vld [vmem:[%s696 + $0xf8] sm:$0xff]
        %v2386 = vld [vmem:[%s705] sm:$0xff]
        %v2387 = vld [vmem:[%s705 + $0x8] sm:$0xff]
        %v2390 = vlaneseq
        %v2391 = vshrl.u32 %v2390, 7
        %v2392 = vsub.s32 0, %v2391
        %v2393 = vrot.slane %v2386, %v2392
        %v2394 = vlaneseq
        %v2395 = vshrl.u32 %v2394, 7
        %v2396 = vsub.s32 1, %v2395
        %v2397 = vrot.slane %v2386, %v2396
        %v2398 = vlaneseq
        %v2399 = vshrl.u32 %v2398, 7
        %v2400 = vsub.s32 2, %v2399
        %v2401 = vrot.slane %v2386, %v2400
        %v2402 = vlaneseq
        %v2403 = vshrl.u32 %v2402, 7
        %v2404 = vsub.s32 3, %v2403
        %v2405 = vrot.slane %v2386, %v2404
        %v2406 = vlaneseq
        %v2407 = vshrl.u32 %v2406, 7
        %v2408 = vsub.s32 4, %v2407
        %v2409 = vrot.slane %v2386, %v2408
        %v2410 = vlaneseq
        %v2411 = vshrl.u32 %v2410, 7
        %v2412 = vsub.s32 5, %v2411
        %v2413 = vrot.slane %v2386, %v2412
        %v2414 = vlaneseq
        %v2415 = vshrl.u32 %v2414, 7
        %v2416 = vsub.s32 6, %v2415
        %v2417 = vrot.slane %v2386, %v2416
        %v2418 = vlaneseq
        %v2419 = vshrl.u32 %v2418, 7
        %v2420 = vsub.s32 7, %v2419
        %v2421 = vrot.slane %v2386, %v2420
        %v2422 = vlaneseq
        %v2423 = vshrl.u32 %v2422, 7
        %v2424 = vsub.s32 0, %v2423
        %v2425 = vrot.slane %v2387, %v2424
        %v2426 = vlaneseq
        %v2427 = vshrl.u32 %v2426, 7
        %v2428 = vsub.s32 1, %v2427
        %v2429 = vrot.slane %v2387, %v2428
        %v2430 = vlaneseq
        %v2431 = vshrl.u32 %v2430, 7
        %v2432 = vsub.s32 2, %v2431
        %v2433 = vrot.slane %v2387, %v2432
        %v2434 = vlaneseq
        %v2435 = vshrl.u32 %v2434, 7
        %v2436 = vsub.s32 3, %v2435
        %v2437 = vrot.slane %v2387, %v2436
        %v2438 = vlaneseq
        %v2439 = vshrl.u32 %v2438, 7
        %v2440 = vsub.s32 4, %v2439
        %v2441 = vrot.slane %v2387, %v2440
        %v2442 = vlaneseq
        %v2443 = vshrl.u32 %v2442, 7
        %v2444 = vsub.s32 5, %v2443
        %v2445 = vrot.slane %v2387, %v2444
        %v2446 = vlaneseq
        %v2447 = vshrl.u32 %v2446, 7
        %v2448 = vsub.s32 6, %v2447
        %v2449 = vrot.slane %v2387, %v2448
        %v2450 = vlaneseq
        %v2451 = vshrl.u32 %v2450, 7
        %v2452 = vsub.s32 7, %v2451
        %v2453 = vrot.slane %v2387, %v2452
        %v2502 = vunpack.c.l.b16 %v2354
        %v2503 = vunpack.c.h.b16 %v2354
        %v2504 = vunpack.c.l.b16 %v2355
        %v2505 = vunpack.c.h.b16 %v2355
        %v2506 = vunpack.c.l.b16 %v2356
        %v2507 = vunpack.c.h.b16 %v2356
        %v2508 = vunpack.c.l.b16 %v2357
        %v2509 = vunpack.c.h.b16 %v2357
        %v2510 = vunpack.c.l.b16 %v2358
        %v2511 = vunpack.c.h.b16 %v2358
        %v2512 = vunpack.c.l.b16 %v2359
        %v2513 = vunpack.c.h.b16 %v2359
        %v2514 = vunpack.c.l.b16 %v2360
        %v2515 = vunpack.c.h.b16 %v2360
        %v2516 = vunpack.c.l.b16 %v2361
        %v2517 = vunpack.c.h.b16 %v2361
        %v2518 = vunpack.c.l.b16 %v2362
        %v2519 = vunpack.c.h.b16 %v2362
        %v2520 = vunpack.c.l.b16 %v2363
        %v2521 = vunpack.c.h.b16 %v2363
        %v2522 = vunpack.c.l.b16 %v2364
        %v2523 = vunpack.c.h.b16 %v2364
        %v2524 = vunpack.c.l.b16 %v2365
        %v2525 = vunpack.c.h.b16 %v2365
        %v2526 = vunpack.c.l.b16 %v2366
        %v2527 = vunpack.c.h.b16 %v2366
        %v2528 = vunpack.c.l.b16 %v2367
        %v2529 = vunpack.c.h.b16 %v2367
        %v2530 = vunpack.c.l.b16 %v2368
        %v2531 = vunpack.c.h.b16 %v2368
        %v2532 = vunpack.c.l.b16 %v2369
        %v2533 = vunpack.c.h.b16 %v2369
        %v2534 = vunpack.c.l.b16 %v2370
        %v2535 = vunpack.c.h.b16 %v2370
        %v2536 = vunpack.c.l.b16 %v2371
        %v2537 = vunpack.c.h.b16 %v2371
        %v2538 = vunpack.c.l.b16 %v2372
        %v2539 = vunpack.c.h.b16 %v2372
        %v2540 = vunpack.c.l.b16 %v2373
        %v2541 = vunpack.c.h.b16 %v2373
        %v2542 = vunpack.c.l.b16 %v2374
        %v2543 = vunpack.c.h.b16 %v2374
        %v2544 = vunpack.c.l.b16 %v2375
        %v2545 = vunpack.c.h.b16 %v2375
        %v2546 = vunpack.c.l.b16 %v2376
        %v2547 = vunpack.c.h.b16 %v2376
        %v2548 = vunpack.c.l.b16 %v2377
        %v2549 = vunpack.c.h.b16 %v2377
        %v2550 = vunpack.c.l.b16 %v2378
        %v2551 = vunpack.c.h.b16 %v2378
        %v2552 = vunpack.c.l.b16 %v2379
        %v2553 = vunpack.c.h.b16 %v2379
        %v2554 = vunpack.c.l.b16 %v2380
        %v2555 = vunpack.c.h.b16 %v2380
        %v2556 = vunpack.c.l.b16 %v2381
        %v2557 = vunpack.c.h.b16 %v2381
        %v2558 = vunpack.c.l.b16 %v2382
        %v2559 = vunpack.c.h.b16 %v2382
        %v2560 = vunpack.c.l.b16 %v2383
        %v2561 = vunpack.c.h.b16 %v2383
        %v2562 = vunpack.c.l.b16 %v2384
        %v2563 = vunpack.c.h.b16 %v2384
        %v2564 = vunpack.c.l.b16 %v2385
        %v2565 = vunpack.c.h.b16 %v2385
        %v2566 = vpack.c.b16 %v2518, %v2502
        %v2567 = vpack.c.b16 %v2519, %v2503
        %v2568 = vpack.c.b16 %v2520, %v2504
        %v2569 = vpack.c.b16 %v2521, %v2505
        %v2570 = vpack.c.b16 %v2522, %v2506
        %v2571 = vpack.c.b16 %v2523, %v2507
        %v2572 = vpack.c.b16 %v2524, %v2508
        %v2573 = vpack.c.b16 %v2525, %v2509
        %v2574 = vpack.c.b16 %v2526, %v2510
        %v2575 = vpack.c.b16 %v2527, %v2511
        %v2576 = vpack.c.b16 %v2528, %v2512
        %v2577 = vpack.c.b16 %v2529, %v2513
        %v2578 = vpack.c.b16 %v2530, %v2514
        %v2579 = vpack.c.b16 %v2531, %v2515
        %v2580 = vpack.c.b16 %v2532, %v2516
        %v2581 = vpack.c.b16 %v2533, %v2517
        %v2582 = vpack.c.b16 %v2550, %v2534
        %v2583 = vpack.c.b16 %v2551, %v2535
        %v2584 = vpack.c.b16 %v2552, %v2536
        %v2585 = vpack.c.b16 %v2553, %v2537
        %v2586 = vpack.c.b16 %v2554, %v2538
        %v2587 = vpack.c.b16 %v2555, %v2539
        %v2588 = vpack.c.b16 %v2556, %v2540
        %v2589 = vpack.c.b16 %v2557, %v2541
        %v2590 = vpack.c.b16 %v2558, %v2542
        %v2591 = vpack.c.b16 %v2559, %v2543
        %v2592 = vpack.c.b16 %v2560, %v2544
        %v2593 = vpack.c.b16 %v2561, %v2545
        %v2594 = vpack.c.b16 %v2562, %v2546
        %v2595 = vpack.c.b16 %v2563, %v2547
        %v2596 = vpack.c.b16 %v2564, %v2548
        %v2597 = vpack.c.b16 %v2565, %v2549
        %v2631 = vsel %vm1080, %v2353, 0
        %2633 = vmatprep.subr.bf16.mxu0 %v2567
        %2634 = vmatpush1.bf16.msra.mxu0 %v2566
        %2635 = vmatprep.subr.bf16.mxu0 %v2583
        %2636 = vmatpush1.bf16.msra.mxu0 %v2582
        %2637 = vmatprep.subr.bf16.mxu0 0
        %2638 = vmatpush1.bf16.msra.mxu0 0
        %2639 = vmatprep.subr.bf16.mxu0 0
        %2640 = vmatpush1.bf16.msra.mxu0 0
        %2641 = vmatprep.subr.bf16.mxu0 0
        %2642 = vmatpush1.bf16.msra.mxu0 0
        %2643 = vmatprep.subr.bf16.mxu0 0
        %2644 = vmatpush1.bf16.msra.mxu0 0
        %2645 = vmatprep.subr.bf16.mxu0 0
        %2646 = vmatpush1.bf16.msra.mxu0 0
        %2647 = vmatprep.subr.bf16.mxu0 0
        %2648 = vmatpush1.bf16.msra.mxu0 0
        %2649 = vmatprep.subr.bf16.mxu0 0
        %2650 = vmatpush1.bf16.msra.mxu0 0
        %2651 = vmatprep.subr.bf16.mxu0 0
        %2652 = vmatpush1.bf16.msra.mxu0 0
        %2653 = vmatprep.subr.bf16.mxu0 0
        %2654 = vmatpush1.bf16.msra.mxu0 0
        %2655 = vmatprep.subr.bf16.mxu0 0
        %2656 = vmatpush1.bf16.msra.mxu0 0
        %2657 = vmatprep.subr.bf16.mxu0 0
        %2658 = vmatpush1.bf16.msra.mxu0 0
        %2659 = vmatprep.subr.bf16.mxu0 0
        %2660 = vmatpush1.bf16.msra.mxu0 0
        %2661 = vmatprep.subr.bf16.mxu0 0
        %2662 = vmatpush1.bf16.msra.mxu0 0
        %2663 = vmatprep.subr.bf16.mxu0 0
        %2664 = vmatpush1.bf16.msra.mxu0 0
        %2665 = vmatprep.mubr.bf16.mxu0 0
        %2666 = vmatmul.mubr.bf16.gmra.mrb[0].mxu0 %v2631
        %v2667 = vpop.f32.mrb[0].mxu0
        %v2668 = vadd.f32 %v2393, %v2667
        %v2669 = vpop.f32.mrb[0].mxu0
        %v2670 = vadd.f32 %v2397, %v2669
        %v2671 = vpop.f32.mrb[0].mxu0
        %v2672 = vadd.f32 %v2393, %v2671
        %v2673 = vpop.f32.mrb[0].mxu0
        %v2674 = vadd.f32 %v2397, %v2673
        %2675 = vdwg.mxu0
        %2676 = vmatprep.subr.bf16.mxu0 %v2569
        %2677 = vmatpush1.bf16.msra.mxu0 %v2568
        %2678 = vmatprep.subr.bf16.mxu0 %v2585
        %2679 = vmatpush1.bf16.msra.mxu0 %v2584
        %2680 = vmatprep.subr.bf16.mxu0 0
        %2681 = vmatpush1.bf16.msra.mxu0 0
        %2682 = vmatprep.subr.bf16.mxu0 0
        %2683 = vmatpush1.bf16.msra.mxu0 0
        %2684 = vmatprep.subr.bf16.mxu0 0
        %2685 = vmatpush1.bf16.msra.mxu0 0
        %2686 = vmatprep.subr.bf16.mxu0 0
        %2687 = vmatpush1.bf16.msra.mxu0 0
        %2688 = vmatprep.subr.bf16.mxu0 0
        %2689 = vmatpush1.bf16.msra.mxu0 0
        %2690 = vmatprep.subr.bf16.mxu0 0
        %2691 = vmatpush1.bf16.msra.mxu0 0
        %2692 = vmatprep.subr.bf16.mxu0 0
        %2693 = vmatpush1.bf16.msra.mxu0 0
        %2694 = vmatprep.subr.bf16.mxu0 0
        %2695 = vmatpush1.bf16.msra.mxu0 0
        %2696 = vmatprep.subr.bf16.mxu0 0
        %2697 = vmatpush1.bf16.msra.mxu0 0
        %2698 = vmatprep.subr.bf16.mxu0 0
        %2699 = vmatpush1.bf16.msra.mxu0 0
        %2700 = vmatprep.subr.bf16.mxu0 0
        %2701 = vmatpush1.bf16.msra.mxu0 0
        %2702 = vmatprep.subr.bf16.mxu0 0
        %2703 = vmatpush1.bf16.msra.mxu0 0
        %2704 = vmatprep.subr.bf16.mxu0 0
        %2705 = vmatpush1.bf16.msra.mxu0 0
        %2706 = vmatprep.subr.bf16.mxu0 0
        %2707 = vmatpush1.bf16.msra.mxu0 0
        %2708 = vmatprep.mubr.bf16.mxu0 0
        %2709 = vmatmul.mubr.bf16.gmra.mrb[0].mxu0 %v2631
        %v2710 = vpop.f32.mrb[0].mxu0
        %v2711 = vadd.f32 %v2401, %v2710
        %v2712 = vpop.f32.mrb[0].mxu0
        %v2713 = vadd.f32 %v2405, %v2712
        %v2714 = vpop.f32.mrb[0].mxu0
        %v2715 = vadd.f32 %v2401, %v2714
        %v2716 = vpop.f32.mrb[0].mxu0
        %v2717 = vadd.f32 %v2405, %v2716
        %2718 = vdwg.mxu0
        %2719 = vmatprep.subr.bf16.mxu0 %v2571
        %2720 = vmatpush1.bf16.msra.mxu0 %v2570
        %2721 = vmatprep.subr.bf16.mxu0 %v2587
        %2722 = vmatpush1.bf16.msra.mxu0 %v2586
        %2723 = vmatprep.subr.bf16.mxu0 0
        %2724 = vmatpush1.bf16.msra.mxu0 0
        %2725 = vmatprep.subr.bf16.mxu0 0
        %2726 = vmatpush1.bf16.msra.mxu0 0
        %2727 = vmatprep.subr.bf16.mxu0 0
        %2728 = vmatpush1.bf16.msra.mxu0 0
        %2729 = vmatprep.subr.bf16.mxu0 0
        %2730 = vmatpush1.bf16.msra.mxu0 0
        %2731 = vmatprep.subr.bf16.mxu0 0
        %2732 = vmatpush1.bf16.msra.mxu0 0
        %2733 = vmatprep.subr.bf16.mxu0 0
        %2734 = vmatpush1.bf16.msra.mxu0 0
        %2735 = vmatprep.subr.bf16.mxu0 0
        %2736 = vmatpush1.bf16.msra.mxu0 0
        %2737 = vmatprep.subr.bf16.mxu0 0
        %2738 = vmatpush1.bf16.msra.mxu0 0
        %2739 = vmatprep.subr.bf16.mxu0 0
        %2740 = vmatpush1.bf16.msra.mxu0 0
        %2741 = vmatprep.subr.bf16.mxu0 0
        %2742 = vmatpush1.bf16.msra.mxu0 0
        %2743 = vmatprep.subr.bf16.mxu0 0
        %2744 = vmatpush1.bf16.msra.mxu0 0
        %2745 = vmatprep.subr.bf16.mxu0 0
        %2746 = vmatpush1.bf16.msra.mxu0 0
        %2747 = vmatprep.subr.bf16.mxu0 0
        %2748 = vmatpush1.bf16.msra.mxu0 0
        %2749 = vmatprep.subr.bf16.mxu0 0
        %2750 = vmatpush1.bf16.msra.mxu0 0
        %2751 = vmatprep.mubr.bf16.mxu0 0
        %2752 = vmatmul.mubr.bf16.gmra.mrb[0].mxu0 %v2631
        %v2753 = vpop.f32.mrb[0].mxu0
        %v2754 = vadd.f32 %v2409, %v2753
        %v2755 = vpop.f32.mrb[0].mxu0
        %v2756 = vadd.f32 %v2413, %v2755
        %v2757 = vpop.f32.mrb[0].mxu0
        %v2758 = vadd.f32 %v2409, %v2757
        %v2759 = vpop.f32.mrb[0].mxu0
        %v2760 = vadd.f32 %v2413, %v2759
        %2761 = vdwg.mxu0
        %2762 = vmatprep.subr.bf16.mxu0 %v2573
        %2763 = vmatpush1.bf16.msra.mxu0 %v2572
        %2764 = vmatprep.subr.bf16.mxu0 %v2589
        %2765 = vmatpush1.bf16.msra.mxu0 %v2588
        %2766 = vmatprep.subr.bf16.mxu0 0
        %2767 = vmatpush1.bf16.msra.mxu0 0
        %2768 = vmatprep.subr.bf16.mxu0 0
        %2769 = vmatpush1.bf16.msra.mxu0 0
        %2770 = vmatprep.subr.bf16.mxu0 0
        %2771 = vmatpush1.bf16.msra.mxu0 0
        %2772 = vmatprep.subr.bf16.mxu0 0
        %2773 = vmatpush1.bf16.msra.mxu0 0
        %2774 = vmatprep.subr.bf16.mxu0 0
        %2775 = vmatpush1.bf16.msra.mxu0 0
        %2776 = vmatprep.subr.bf16.mxu0 0
        %2777 = vmatpush1.bf16.msra.mxu0 0
        %2778 = vmatprep.subr.bf16.mxu0 0
        %2779 = vmatpush1.bf16.msra.mxu0 0
        %2780 = vmatprep.subr.bf16.mxu0 0
        %2781 = vmatpush1.bf16.msra.mxu0 0
        %2782 = vmatprep.subr.bf16.mxu0 0
        %2783 = vmatpush1.bf16.msra.mxu0 0
        %2784 = vmatprep.subr.bf16.mxu0 0
        %2785 = vmatpush1.bf16.msra.mxu0 0
        %2786 = vmatprep.subr.bf16.mxu0 0
        %2787 = vmatpush1.bf16.msra.mxu0 0
        %2788 = vmatprep.subr.bf16.mxu0 0
        %2789 = vmatpush1.bf16.msra.mxu0 0
        %2790 = vmatprep.subr.bf16.mxu0 0
        %2791 = vmatpush1.bf16.msra.mxu0 0
        %2792 = vmatprep.subr.bf16.mxu0 0
        %2793 = vmatpush1.bf16.msra.mxu0 0
        %2794 = vmatprep.mubr.bf16.mxu0 0
        %2795 = vmatmul.mubr.bf16.gmra.mrb[0].mxu0 %v2631
        %v2796 = vpop.f32.mrb[0].mxu0
        %v2797 = vadd.f32 %v2417, %v2796
        %v2798 = vpop.f32.mrb[0].mxu0
        %v2799 = vadd.f32 %v2421, %v2798
        %v2800 = vpop.f32.mrb[0].mxu0
        %v2801 = vadd.f32 %v2417, %v2800
        %v2802 = vpop.f32.mrb[0].mxu0
        %v2803 = vadd.f32 %v2421, %v2802
        %2804 = vdwg.mxu0
        %2805 = vmatprep.subr.bf16.mxu0 %v2575
        %2806 = vmatpush1.bf16.msra.mxu0 %v2574
        %2807 = vmatprep.subr.bf16.mxu0 %v2591
        %2808 = vmatpush1.bf16.msra.mxu0 %v2590
        %2809 = vmatprep.subr.bf16.mxu0 0
        %2810 = vmatpush1.bf16.msra.mxu0 0
        %2811 = vmatprep.subr.bf16.mxu0 0
        %2812 = vmatpush1.bf16.msra.mxu0 0
        %2813 = vmatprep.subr.bf16.mxu0 0
        %2814 = vmatpush1.bf16.msra.mxu0 0
        %2815 = vmatprep.subr.bf16.mxu0 0
        %2816 = vmatpush1.bf16.msra.mxu0 0
        %2817 = vmatprep.subr.bf16.mxu0 0
        %2818 = vmatpush1.bf16.msra.mxu0 0
        %2819 = vmatprep.subr.bf16.mxu0 0
        %2820 = vmatpush1.bf16.msra.mxu0 0
        %2821 = vmatprep.subr.bf16.mxu0 0
        %2822 = vmatpush1.bf16.msra.mxu0 0
        %2823 = vmatprep.subr.bf16.mxu0 0
        %2824 = vmatpush1.bf16.msra.mxu0 0
        %2825 = vmatprep.subr.bf16.mxu0 0
        %2826 = vmatpush1.bf16.msra.mxu0 0
        %2827 = vmatprep.subr.bf16.mxu0 0
        %2828 = vmatpush1.bf16.msra.mxu0 0
        %2829 = vmatprep.subr.bf16.mxu0 0
        %2830 = vmatpush1.bf16.msra.mxu0 0
        %2831 = vmatprep.subr.bf16.mxu0 0
        %2832 = vmatpush1.bf16.msra.mxu0 0
        %2833 = vmatprep.subr.bf16.mxu0 0
        %2834 = vmatpush1.bf16.msra.mxu0 0
        %2835 = vmatprep.subr.bf16.mxu0 0
        %2836 = vmatpush1.bf16.msra.mxu0 0
        %2837 = vmatprep.mubr.bf16.mxu0 0
        %2838 = vmatmul.mubr.bf16.gmra.mrb[0].mxu0 %v2631
        %v2839 = vpop.f32.mrb[0].mxu0
        %v2840 = vadd.f32 %v2425, %v2839
        %v2841 = vpop.f32.mrb[0].mxu0
        %v2842 = vadd.f32 %v2429, %v2841
        %v2843 = vpop.f32.mrb[0].mxu0
        %v2844 = vadd.f32 %v2425, %v2843
        %v2845 = vpop.f32.mrb[0].mxu0
        %v2846 = vadd.f32 %v2429, %v2845
        %2847 = vdwg.mxu0
        %2848 = vmatprep.subr.bf16.mxu0 %v2577
        %2849 = vmatpush1.bf16.msra.mxu0 %v2576
        %2850 = vmatprep.subr.bf16.mxu0 %v2593
        %2851 = vmatpush1.bf16.msra.mxu0 %v2592
        %2852 = vmatprep.subr.bf16.mxu0 0
        %2853 = vmatpush1.bf16.msra.mxu0 0
        %2854 = vmatprep.subr.bf16.mxu0 0
        %2855 = vmatpush1.bf16.msra.mxu0 0
        %2856 = vmatprep.subr.bf16.mxu0 0
        %2857 = vmatpush1.bf16.msra.mxu0 0
        %2858 = vmatprep.subr.bf16.mxu0 0
        %2859 = vmatpush1.bf16.msra.mxu0 0
        %2860 = vmatprep.subr.bf16.mxu0 0
        %2861 = vmatpush1.bf16.msra.mxu0 0
        %2862 = vmatprep.subr.bf16.mxu0 0
        %2863 = vmatpush1.bf16.msra.mxu0 0
        %2864 = vmatprep.subr.bf16.mxu0 0
        %2865 = vmatpush1.bf16.msra.mxu0 0
        %2866 = vmatprep.subr.bf16.mxu0 0
        %2867 = vmatpush1.bf16.msra.mxu0 0
        %2868 = vmatprep.subr.bf16.mxu0 0
        %2869 = vmatpush1.bf16.msra.mxu0 0
        %2870 = vmatprep.subr.bf16.mxu0 0
        %2871 = vmatpush1.bf16.msra.mxu0 0
        %2872 = vmatprep.subr.bf16.mxu0 0
        %2873 = vmatpush1.bf16.msra.mxu0 0
        %2874 = vmatprep.subr.bf16.mxu0 0
        %2875 = vmatpush1.bf16.msra.mxu0 0
        %2876 = vmatprep.subr.bf16.mxu0 0
        %2877 = vmatpush1.bf16.msra.mxu0 0
        %2878 = vmatprep.subr.bf16.mxu0 0
        %2879 = vmatpush1.bf16.msra.mxu0 0
        %2880 = vmatprep.mubr.bf16.mxu0 0
        %2881 = vmatmul.mubr.bf16.gmra.mrb[0].mxu0 %v2631
        %v2882 = vpop.f32.mrb[0].mxu0
        %v2883 = vadd.f32 %v2433, %v2882
        %v2884 = vpop.f32.mrb[0].mxu0
        %v2885 = vadd.f32 %v2437, %v2884
        %v2886 = vpop.f32.mrb[0].mxu0
        %v2887 = vadd.f32 %v2433, %v2886
        %v2888 = vpop.f32.mrb[0].mxu0
        %v2889 = vadd.f32 %v2437, %v2888
        %2890 = vdwg.mxu0
        %2891 = vmatprep.subr.bf16.mxu0 %v2579
        %2892 = vmatpush1.bf16.msra.mxu0 %v2578
        %2893 = vmatprep.subr.bf16.mxu0 %v2595
        %2894 = vmatpush1.bf16.msra.mxu0 %v2594
        %2895 = vmatprep.subr.bf16.mxu0 0
        %2896 = vmatpush1.bf16.msra.mxu0 0
        %2897 = vmatprep.subr.bf16.mxu0 0
        %2898 = vmatpush1.bf16.msra.mxu0 0
        %2899 = vmatprep.subr.bf16.mxu0 0
        %2900 = vmatpush1.bf16.msra.mxu0 0
        %2901 = vmatprep.subr.bf16.mxu0 0
        %2902 = vmatpush1.bf16.msra.mxu0 0
        %2903 = vmatprep.subr.bf16.mxu0 0
        %2904 = vmatpush1.bf16.msra.mxu0 0
        %2905 = vmatprep.subr.bf16.mxu0 0
        %2906 = vmatpush1.bf16.msra.mxu0 0
        %2907 = vmatprep.subr.bf16.mxu0 0
        %2908 = vmatpush1.bf16.msra.mxu0 0
        %2909 = vmatprep.subr.bf16.mxu0 0
        %2910 = vmatpush1.bf16.msra.mxu0 0
        %2911 = vmatprep.subr.bf16.mxu0 0
        %2912 = vmatpush1.bf16.msra.mxu0 0
        %2913 = vmatprep.subr.bf16.mxu0 0
        %2914 = vmatpush1.bf16.msra.mxu0 0
        %2915 = vmatprep.subr.bf16.mxu0 0
        %2916 = vmatpush1.bf16.msra.mxu0 0
        %2917 = vmatprep.subr.bf16.mxu0 0
        %2918 = vmatpush1.bf16.msra.mxu0 0
        %2919 = vmatprep.subr.bf16.mxu0 0
        %2920 = vmatpush1.bf16.msra.mxu0 0
        %2921 = vmatprep.subr.bf16.mxu0 0
        %2922 = vmatpush1.bf16.msra.mxu0 0
        %2923 = vmatprep.mubr.bf16.mxu0 0
        %2924 = vmatmul.mubr.bf16.gmra.mrb[0].mxu0 %v2631
        %v2925 = vpop.f32.mrb[0].mxu0
        %v2926 = vadd.f32 %v2441, %v2925
        %v2927 = vpop.f32.mrb[0].mxu0
        %v2928 = vadd.f32 %v2445, %v2927
        %v2929 = vpop.f32.mrb[0].mxu0
        %v2930 = vadd.f32 %v2441, %v2929
        %v2931 = vpop.f32.mrb[0].mxu0
        %v2932 = vadd.f32 %v2445, %v2931
        %2933 = vdwg.mxu0
        %2934 = vmatprep.subr.bf16.mxu0 %v2581
        %2935 = vmatpush1.bf16.msra.mxu0 %v2580
        %2936 = vmatprep.subr.bf16.mxu0 %v2597
        %2937 = vmatpush1.bf16.msra.mxu0 %v2596
        %2938 = vmatprep.subr.bf16.mxu0 0
        %2939 = vmatpush1.bf16.msra.mxu0 0
        %2940 = vmatprep.subr.bf16.mxu0 0
        %2941 = vmatpush1.bf16.msra.mxu0 0
        %2942 = vmatprep.subr.bf16.mxu0 0
        %2943 = vmatpush1.bf16.msra.mxu0 0
        %2944 = vmatprep.subr.bf16.mxu0 0
        %2945 = vmatpush1.bf16.msra.mxu0 0
        %2946 = vmatprep.subr.bf16.mxu0 0
        %2947 = vmatpush1.bf16.msra.mxu0 0
        %2948 = vmatprep.subr.bf16.mxu0 0
        %2949 = vmatpush1.bf16.msra.mxu0 0
        %2950 = vmatprep.subr.bf16.mxu0 0
        %2951 = vmatpush1.bf16.msra.mxu0 0
        %2952 = vmatprep.subr.bf16.mxu0 0
        %2953 = vmatpush1.bf16.msra.mxu0 0
        %2954 = vmatprep.subr.bf16.mxu0 0
        %2955 = vmatpush1.bf16.msra.mxu0 0
        %2956 = vmatprep.subr.bf16.mxu0 0
        %2957 = vmatpush1.bf16.msra.mxu0 0
        %2958 = vmatprep.subr.bf16.mxu0 0
        %2959 = vmatpush1.bf16.msra.mxu0 0
        %2960 = vmatprep.subr.bf16.mxu0 0
        %2961 = vmatpush1.bf16.msra.mxu0 0
        %2962 = vmatprep.subr.bf16.mxu0 0
        %2963 = vmatpush1.bf16.msra.mxu0 0
        %2964 = vmatprep.subr.bf16.mxu0 0
        %2965 = vmatpush1.bf16.msra.mxu0 0
        %2966 = vmatprep.mubr.bf16.mxu0 0
        %2967 = vmatmul.mubr.bf16.gmra.mrb[0].mxu0 %v2631
        %v2968 = vpop.f32.mrb[0].mxu0
        %v2969 = vadd.f32 %v2449, %v2968
        %v2970 = vpop.f32.mrb[0].mxu0
        %v2971 = vadd.f32 %v2453, %v2970
        %v2972 = vpop.f32.mrb[0].mxu0
        %v2973 = vadd.f32 %v2449, %v2972
        %v2974 = vpop.f32.mrb[0].mxu0
        %v2975 = vadd.f32 %v2453, %v2974
        %2976 = vdwg.mxu0
        %v2977 = vmax.f32 %v2668, 0.0
        %v2978 = vmax.f32 %v2670, 0.0
        %v2979 = vmax.f32 %v2711, 0.0
        %v2980 = vmax.f32 %v2713, 0.0
        %v2981 = vmax.f32 %v2754, 0.0
        %v2982 = vmax.f32 %v2756, 0.0
        %v2983 = vmax.f32 %v2797, 0.0
        %v2984 = vmax.f32 %v2799, 0.0
        %v2985 = vmax.f32 %v2840, 0.0
        %v2986 = vmax.f32 %v2842, 0.0
        %v2987 = vmax.f32 %v2883, 0.0
        %v2988 = vmax.f32 %v2885, 0.0
        %v2989 = vmax.f32 %v2926, 0.0
        %v2990 = vmax.f32 %v2928, 0.0
        %v2991 = vmax.f32 %v2969, 0.0
        %v2992 = vmax.f32 %v2971, 0.0
        %v2993 = vmax.f32 %v2672, 0.0
        %v2994 = vmax.f32 %v2674, 0.0
        %v2995 = vmax.f32 %v2715, 0.0
        %v2996 = vmax.f32 %v2717, 0.0
        %v2997 = vmax.f32 %v2758, 0.0
        %v2998 = vmax.f32 %v2760, 0.0
        %v2999 = vmax.f32 %v2801, 0.0
        %v3000 = vmax.f32 %v2803, 0.0
        %v3001 = vmax.f32 %v2844, 0.0
        %v3002 = vmax.f32 %v2846, 0.0
        %v3003 = vmax.f32 %v2887, 0.0
        %v3004 = vmax.f32 %v2889, 0.0
        %v3005 = vmax.f32 %v2930, 0.0
        %v3006 = vmax.f32 %v2932, 0.0
        %v3007 = vmax.f32 %v2973, 0.0
        %v3008 = vmax.f32 %v2975, 0.0
        %v3009 = vpack.c.bf16 %v2993, %v2977
        %v3010 = vpack.c.bf16 %v2994, %v2978
        %v3011 = vpack.c.bf16 %v2995, %v2979
        %v3012 = vpack.c.bf16 %v2996, %v2980
        %v3013 = vpack.c.bf16 %v2997, %v2981
        %v3014 = vpack.c.bf16 %v2998, %v2982
        %v3015 = vpack.c.bf16 %v2999, %v2983
        %v3016 = vpack.c.bf16 %v3000, %v2984
        %v3017 = vpack.c.bf16 %v3001, %v2985
        %v3018 = vpack.c.bf16 %v3002, %v2986
        %v3019 = vpack.c.bf16 %v3003, %v2987
        %v3020 = vpack.c.bf16 %v3004, %v2988
        %v3021 = vpack.c.bf16 %v3005, %v2989
        %v3022 = vpack.c.bf16 %v3006, %v2990
        %v3023 = vpack.c.bf16 %v3007, %v2991
        %v3024 = vpack.c.bf16 %v3008, %v2992
        %v3025 = vld [vmem:[%s714] sm:$0xff]
        %v3026 = vld [vmem:[%s714 + $0x8] sm:$0xff]
        %v3027 = vld [vmem:[%s714 + $0x10] sm:$0xff]
        %v3028 = vld [vmem:[%s714 + $0x18] sm:$0xff]
        %v3029 = vld [vmem:[%s714 + $0x20] sm:$0xff]
        %v3030 = vld [vmem:[%s714 + $0x28] sm:$0xff]
        %v3031 = vld [vmem:[%s714 + $0x30] sm:$0xff]
        %v3032 = vld [vmem:[%s714 + $0x38] sm:$0xff]
        %v3033 = vld [vmem:[%s714 + $0x40] sm:$0xff]
        %v3034 = vld [vmem:[%s714 + $0x48] sm:$0xff]
        %v3035 = vld [vmem:[%s714 + $0x50] sm:$0xff]
        %v3036 = vld [vmem:[%s714 + $0x58] sm:$0xff]
        %v3037 = vld [vmem:[%s714 + $0x60] sm:$0xff]
        %v3038 = vld [vmem:[%s714 + $0x68] sm:$0xff]
        %v3039 = vld [vmem:[%s714 + $0x70] sm:$0xff]
        %v3040 = vld [vmem:[%s714 + $0x78] sm:$0xff]
        %v3041 = vld [vmem:[%s714 + $0x80] sm:$0xff]
        %v3042 = vld [vmem:[%s714 + $0x88] sm:$0xff]
        %v3043 = vld [vmem:[%s714 + $0x90] sm:$0xff]
        %v3044 = vld [vmem:[%s714 + $0x98] sm:$0xff]
        %v3045 = vld [vmem:[%s714 + $0xa0] sm:$0xff]
        %v3046 = vld [vmem:[%s714 + $0xa8] sm:$0xff]
        %v3047 = vld [vmem:[%s714 + $0xb0] sm:$0xff]
        %v3048 = vld [vmem:[%s714 + $0xb8] sm:$0xff]
        %v3049 = vld [vmem:[%s714 + $0xc0] sm:$0xff]
        %v3050 = vld [vmem:[%s714 + $0xc8] sm:$0xff]
        %v3051 = vld [vmem:[%s714 + $0xd0] sm:$0xff]
        %v3052 = vld [vmem:[%s714 + $0xd8] sm:$0xff]
        %v3053 = vld [vmem:[%s714 + $0xe0] sm:$0xff]
        %v3054 = vld [vmem:[%s714 + $0xe8] sm:$0xff]
        %v3055 = vld [vmem:[%s714 + $0xf0] sm:$0xff]
        %v3056 = vld [vmem:[%s714 + $0xf8] sm:$0xff]
        %v3057 = vld [vmem:[%s815] sm:$0x1]
        %v3059 = vlaneseq
        %v3060 = vshrl.u32 %v3059, 7
        %v3061 = vsub.s32 0, %v3060
        %v3062 = vrot.slane %v3057, %v3061
        %v3096 = vunpack.c.l.b16 %v3025
        %v3097 = vunpack.c.h.b16 %v3025
        %v3098 = vunpack.c.l.b16 %v3026
        %v3099 = vunpack.c.h.b16 %v3026
        %v3100 = vunpack.c.l.b16 %v3027
        %v3101 = vunpack.c.h.b16 %v3027
        %v3102 = vunpack.c.l.b16 %v3028
        %v3103 = vunpack.c.h.b16 %v3028
        %v3104 = vunpack.c.l.b16 %v3029
        %v3105 = vunpack.c.h.b16 %v3029
        %v3106 = vunpack.c.l.b16 %v3030
        %v3107 = vunpack.c.h.b16 %v3030
        %v3108 = vunpack.c.l.b16 %v3031
        %v3109 = vunpack.c.h.b16 %v3031
        %v3110 = vunpack.c.l.b16 %v3032
        %v3111 = vunpack.c.h.b16 %v3032
        %v3112 = vunpack.c.l.b16 %v3033
        %v3113 = vunpack.c.h.b16 %v3033
        %v3114 = vunpack.c.l.b16 %v3034
        %v3115 = vunpack.c.h.b16 %v3034
        %v3116 = vunpack.c.l.b16 %v3035
        %v3117 = vunpack.c.h.b16 %v3035
        %v3118 = vunpack.c.l.b16 %v3036
        %v3119 = vunpack.c.h.b16 %v3036
        %v3120 = vunpack.c.l.b16 %v3037
        %v3121 = vunpack.c.h.b16 %v3037
        %v3122 = vunpack.c.l.b16 %v3038
        %v3123 = vunpack.c.h.b16 %v3038
        %v3124 = vunpack.c.l.b16 %v3039
        %v3125 = vunpack.c.h.b16 %v3039
        %v3126 = vunpack.c.l.b16 %v3040
        %v3127 = vunpack.c.h.b16 %v3040
        %v3128 = vunpack.c.l.b16 %v3041
        %v3129 = vunpack.c.h.b16 %v3041
        %v3130 = vunpack.c.l.b16 %v3042
        %v3131 = vunpack.c.h.b16 %v3042
        %v3132 = vunpack.c.l.b16 %v3043
        %v3133 = vunpack.c.h.b16 %v3043
        %v3134 = vunpack.c.l.b16 %v3044
        %v3135 = vunpack.c.h.b16 %v3044
        %v3136 = vunpack.c.l.b16 %v3045
        %v3137 = vunpack.c.h.b16 %v3045
        %v3138 = vunpack.c.l.b16 %v3046
        %v3139 = vunpack.c.h.b16 %v3046
        %v3140 = vunpack.c.l.b16 %v3047
        %v3141 = vunpack.c.h.b16 %v3047
        %v3142 = vunpack.c.l.b16 %v3048
        %v3143 = vunpack.c.h.b16 %v3048
        %v3144 = vunpack.c.l.b16 %v3049
        %v3145 = vunpack.c.h.b16 %v3049
        %v3146 = vunpack.c.l.b16 %v3050
        %v3147 = vunpack.c.h.b16 %v3050
        %v3148 = vunpack.c.l.b16 %v3051
        %v3149 = vunpack.c.h.b16 %v3051
        %v3150 = vunpack.c.l.b16 %v3052
        %v3151 = vunpack.c.h.b16 %v3052
        %v3152 = vunpack.c.l.b16 %v3053
        %v3153 = vunpack.c.h.b16 %v3053
        %v3154 = vunpack.c.l.b16 %v3054
        %v3155 = vunpack.c.h.b16 %v3054
        %v3156 = vunpack.c.l.b16 %v3055
        %v3157 = vunpack.c.h.b16 %v3055
        %v3158 = vunpack.c.l.b16 %v3056
        %v3159 = vunpack.c.h.b16 %v3056
        %v3160 = vpack.c.b16 %v3112, %v3096
        %v3161 = vpack.c.b16 %v3113, %v3097
        %v3162 = vpack.c.b16 %v3114, %v3098
        %v3163 = vpack.c.b16 %v3115, %v3099
        %v3164 = vpack.c.b16 %v3116, %v3100
        %v3165 = vpack.c.b16 %v3117, %v3101
        %v3166 = vpack.c.b16 %v3118, %v3102
        %v3167 = vpack.c.b16 %v3119, %v3103
        %v3168 = vpack.c.b16 %v3120, %v3104
        %v3169 = vpack.c.b16 %v3121, %v3105
        %v3170 = vpack.c.b16 %v3122, %v3106
        %v3171 = vpack.c.b16 %v3123, %v3107
        %v3172 = vpack.c.b16 %v3124, %v3108
        %v3173 = vpack.c.b16 %v3125, %v3109
        %v3174 = vpack.c.b16 %v3126, %v3110
        %v3175 = vpack.c.b16 %v3127, %v3111
        %v3176 = vpack.c.b16 %v3144, %v3128
        %v3177 = vpack.c.b16 %v3145, %v3129
        %v3178 = vpack.c.b16 %v3146, %v3130
        %v3179 = vpack.c.b16 %v3147, %v3131
        %v3180 = vpack.c.b16 %v3148, %v3132
        %v3181 = vpack.c.b16 %v3149, %v3133
        %v3182 = vpack.c.b16 %v3150, %v3134
        %v3183 = vpack.c.b16 %v3151, %v3135
        %v3184 = vpack.c.b16 %v3152, %v3136
        %v3185 = vpack.c.b16 %v3153, %v3137
        %v3186 = vpack.c.b16 %v3154, %v3138
        %v3187 = vpack.c.b16 %v3155, %v3139
        %v3188 = vpack.c.b16 %v3156, %v3140
        %v3189 = vpack.c.b16 %v3157, %v3141
        %v3190 = vpack.c.b16 %v3158, %v3142
        %v3191 = vpack.c.b16 %v3159, %v3143
        %3224 = vmatprep.subr.bf16.mxu0 %v3161
        %3225 = vmatpush1.bf16.xpose.msra.mxu0 %v3160
        %3226 = vmatprep.subr.bf16.mxu0 %v3177
        %3227 = vmatpush1.bf16.xpose.msra.mxu0 %v3176
        %3228 = vmatprep.subr.bf16.mxu0 0
        %3229 = vmatpush1.bf16.xpose.msra.mxu0 0
        %3230 = vmatprep.subr.bf16.mxu0 0
        %3231 = vmatpush1.bf16.xpose.msra.mxu0 0
        %3232 = vmatprep.subr.bf16.mxu0 0
        %3233 = vmatpush1.bf16.xpose.msra.mxu0 0
        %3234 = vmatprep.subr.bf16.mxu0 0
        %3235 = vmatpush1.bf16.xpose.msra.mxu0 0
        %3236 = vmatprep.subr.bf16.mxu0 0
        %3237 = vmatpush1.bf16.xpose.msra.mxu0 0
        %3238 = vmatprep.subr.bf16.mxu0 0
        %3239 = vmatpush1.bf16.xpose.msra.mxu0 0
        %3240 = vmatprep.subr.bf16.mxu0 0
        %3241 = vmatpush1.bf16.xpose.msra.mxu0 0
        %3242 = vmatprep.subr.bf16.mxu0 0
        %3243 = vmatpush1.bf16.xpose.msra.mxu0 0
        %3244 = vmatprep.subr.bf16.mxu0 0
        %3245 = vmatpush1.bf16.xpose.msra.mxu0 0
        %3246 = vmatprep.subr.bf16.mxu0 0
        %3247 = vmatpush1.bf16.xpose.msra.mxu0 0
        %3248 = vmatprep.subr.bf16.mxu0 0
        %3249 = vmatpush1.bf16.xpose.msra.mxu0 0
        %3250 = vmatprep.subr.bf16.mxu0 0
        %3251 = vmatpush1.bf16.xpose.msra.mxu0 0
        %3252 = vmatprep.subr.bf16.mxu0 0
        %3253 = vmatpush1.bf16.xpose.msra.mxu0 0
        %3254 = vmatprep.subr.bf16.mxu0 0
        %3255 = vmatpush1.bf16.xpose.msra.mxu0 0
        %3256 = vmatprep.mubr.bf16.mxu0 %v3010
        %3257 = vmatmul.mubr.bf16.gmra.mrb[0].mxu0 %v3009
        %v3258 = vpop.f32.mrb[0].mxu0
        %v3259 = vadd.f32 %v3062, %v3258
        %v3260 = vpop.f32.mrb[0].mxu0
        %v3261 = vpop.f32.mrb[0].mxu0
        %v3262 = vadd.f32 %v3062, %v3261
        %v3263 = vpop.f32.mrb[0].mxu0
        %3264 = vdwg.mxu0
        %3265 = vmatprep.subr.bf16.mxu0 %v3163
        %3266 = vmatpush1.bf16.xpose.msra.mxu0 %v3162
        %3267 = vmatprep.subr.bf16.mxu0 %v3179
        %3268 = vmatpush1.bf16.xpose.msra.mxu0 %v3178
        %3269 = vmatprep.subr.bf16.mxu0 0
        %3270 = vmatpush1.bf16.xpose.msra.mxu0 0
        %3271 = vmatprep.subr.bf16.mxu0 0
        %3272 = vmatpush1.bf16.xpose.msra.mxu0 0
        %3273 = vmatprep.subr.bf16.mxu0 0
        %3274 = vmatpush1.bf16.xpose.msra.mxu0 0
        %3275 = vmatprep.subr.bf16.mxu0 0
        %3276 = vmatpush1.bf16.xpose.msra.mxu0 0
        %3277 = vmatprep.subr.bf16.mxu0 0
        %3278 = vmatpush1.bf16.xpose.msra.mxu0 0
        %3279 = vmatprep.subr.bf16.mxu0 0
        %3280 = vmatpush1.bf16.xpose.msra.mxu0 0
        %3281 = vmatprep.subr.bf16.mxu0 0
        %3282 = vmatpush1.bf16.xpose.msra.mxu0 0
        %3283 = vmatprep.subr.bf16.mxu0 0
        %3284 = vmatpush1.bf16.xpose.msra.mxu0 0
        %3285 = vmatprep.subr.bf16.mxu0 0
        %3286 = vmatpush1.bf16.xpose.msra.mxu0 0
        %3287 = vmatprep.subr.bf16.mxu0 0
        %3288 = vmatpush1.bf16.xpose.msra.mxu0 0
        %3289 = vmatprep.subr.bf16.mxu0 0
        %3290 = vmatpush1.bf16.xpose.msra.mxu0 0
        %3291 = vmatprep.subr.bf16.mxu0 0
        %3292 = vmatpush1.bf16.xpose.msra.mxu0 0
        %3293 = vmatprep.subr.bf16.mxu0 0
        %3294 = vmatpush1.bf16.xpose.msra.mxu0 0
        %3295 = vmatprep.subr.bf16.mxu0 0
        %3296 = vmatpush1.bf16.xpose.msra.mxu0 0
        %3297 = vmatprep.mubr.bf16.mxu0 %v3012
        %3298 = vmatmul.mubr.bf16.gmra.mrb[0].mxu0 %v3011
        %v3299 = vpop.f32.mrb[0].mxu0
        %v3300 = vadd.f32 %v3259, %v3299
        %v3301 = vpop.f32.mrb[0].mxu0
        %v3302 = vpop.f32.mrb[0].mxu0
        %v3303 = vadd.f32 %v3262, %v3302
        %v3304 = vpop.f32.mrb[0].mxu0
        %3305 = vdwg.mxu0
        %3306 = vmatprep.subr.bf16.mxu0 %v3165
        %3307 = vmatpush1.bf16.xpose.msra.mxu0 %v3164
        %3308 = vmatprep.subr.bf16.mxu0 %v3181
        %3309 = vmatpush1.bf16.xpose.msra.mxu0 %v3180
        %3310 = vmatprep.subr.bf16.mxu0 0
        %3311 = vmatpush1.bf16.xpose.msra.mxu0 0
        %3312 = vmatprep.subr.bf16.mxu0 0
        %3313 = vmatpush1.bf16.xpose.msra.mxu0 0
        %3314 = vmatprep.subr.bf16.mxu0 0
        %3315 = vmatpush1.bf16.xpose.msra.mxu0 0
        %3316 = vmatprep.subr.bf16.mxu0 0
        %3317 = vmatpush1.bf16.xpose.msra.mxu0 0
        %3318 = vmatprep.subr.bf16.mxu0 0
        %3319 = vmatpush1.bf16.xpose.msra.mxu0 0
        %3320 = vmatprep.subr.bf16.mxu0 0
        %3321 = vmatpush1.bf16.xpose.msra.mxu0 0
        %3322 = vmatprep.subr.bf16.mxu0 0
        %3323 = vmatpush1.bf16.xpose.msra.mxu0 0
        %3324 = vmatprep.subr.bf16.mxu0 0
        %3325 = vmatpush1.bf16.xpose.msra.mxu0 0
        %3326 = vmatprep.subr.bf16.mxu0 0
        %3327 = vmatpush1.bf16.xpose.msra.mxu0 0
        %3328 = vmatprep.subr.bf16.mxu0 0
        %3329 = vmatpush1.bf16.xpose.msra.mxu0 0
        %3330 = vmatprep.subr.bf16.mxu0 0
        %3331 = vmatpush1.bf16.xpose.msra.mxu0 0
        %3332 = vmatprep.subr.bf16.mxu0 0
        %3333 = vmatpush1.bf16.xpose.msra.mxu0 0
        %3334 = vmatprep.subr.bf16.mxu0 0
        %3335 = vmatpush1.bf16.xpose.msra.mxu0 0
        %3336 = vmatprep.subr.bf16.mxu0 0
        %3337 = vmatpush1.bf16.xpose.msra.mxu0 0
        %3338 = vmatprep.mubr.bf16.mxu0 %v3014
        %3339 = vmatmul.mubr.bf16.gmra.mrb[0].mxu0 %v3013
        %v3340 = vpop.f32.mrb[0].mxu0
        %v3341 = vadd.f32 %v3300, %v3340
        %v3342 = vpop.f32.mrb[0].mxu0
        %v3343 = vpop.f32.mrb[0].mxu0
        %v3344 = vadd.f32 %v3303, %v3343
        %v3345 = vpop.f32.mrb[0].mxu0
        %3346 = vdwg.mxu0
        %3347 = vmatprep.subr.bf16.mxu0 %v3167
        %3348 = vmatpush1.bf16.xpose.msra.mxu0 %v3166
        %3349 = vmatprep.subr.bf16.mxu0 %v3183
        %3350 = vmatpush1.bf16.xpose.msra.mxu0 %v3182
        %3351 = vmatprep.subr.bf16.mxu0 0
        %3352 = vmatpush1.bf16.xpose.msra.mxu0 0
        %3353 = vmatprep.subr.bf16.mxu0 0
        %3354 = vmatpush1.bf16.xpose.msra.mxu0 0
        %3355 = vmatprep.subr.bf16.mxu0 0
        %3356 = vmatpush1.bf16.xpose.msra.mxu0 0
        %3357 = vmatprep.subr.bf16.mxu0 0
        %3358 = vmatpush1.bf16.xpose.msra.mxu0 0
        %3359 = vmatprep.subr.bf16.mxu0 0
        %3360 = vmatpush1.bf16.xpose.msra.mxu0 0
        %3361 = vmatprep.subr.bf16.mxu0 0
        %3362 = vmatpush1.bf16.xpose.msra.mxu0 0
        %3363 = vmatprep.subr.bf16.mxu0 0
        %3364 = vmatpush1.bf16.xpose.msra.mxu0 0
        %3365 = vmatprep.subr.bf16.mxu0 0
        %3366 = vmatpush1.bf16.xpose.msra.mxu0 0
        %3367 = vmatprep.subr.bf16.mxu0 0
        %3368 = vmatpush1.bf16.xpose.msra.mxu0 0
        %3369 = vmatprep.subr.bf16.mxu0 0
        %3370 = vmatpush1.bf16.xpose.msra.mxu0 0
        %3371 = vmatprep.subr.bf16.mxu0 0
        %3372 = vmatpush1.bf16.xpose.msra.mxu0 0
        %3373 = vmatprep.subr.bf16.mxu0 0
        %3374 = vmatpush1.bf16.xpose.msra.mxu0 0
        %3375 = vmatprep.subr.bf16.mxu0 0
        %3376 = vmatpush1.bf16.xpose.msra.mxu0 0
        %3377 = vmatprep.subr.bf16.mxu0 0
        %3378 = vmatpush1.bf16.xpose.msra.mxu0 0
        %3379 = vmatprep.mubr.bf16.mxu0 %v3016
        %3380 = vmatmul.mubr.bf16.gmra.mrb[0].mxu0 %v3015
        %v3381 = vpop.f32.mrb[0].mxu0
        %v3382 = vadd.f32 %v3341, %v3381
        %v3383 = vpop.f32.mrb[0].mxu0
        %v3384 = vpop.f32.mrb[0].mxu0
        %v3385 = vadd.f32 %v3344, %v3384
        %v3386 = vpop.f32.mrb[0].mxu0
        %3387 = vdwg.mxu0
        %3388 = vmatprep.subr.bf16.mxu0 %v3169
        %3389 = vmatpush1.bf16.xpose.msra.mxu0 %v3168
        %3390 = vmatprep.subr.bf16.mxu0 %v3185
        %3391 = vmatpush1.bf16.xpose.msra.mxu0 %v3184
        %3392 = vmatprep.subr.bf16.mxu0 0
        %3393 = vmatpush1.bf16.xpose.msra.mxu0 0
        %3394 = vmatprep.subr.bf16.mxu0 0
        %3395 = vmatpush1.bf16.xpose.msra.mxu0 0
        %3396 = vmatprep.subr.bf16.mxu0 0
        %3397 = vmatpush1.bf16.xpose.msra.mxu0 0
        %3398 = vmatprep.subr.bf16.mxu0 0
        %3399 = vmatpush1.bf16.xpose.msra.mxu0 0
        %3400 = vmatprep.subr.bf16.mxu0 0
        %3401 = vmatpush1.bf16.xpose.msra.mxu0 0
        %3402 = vmatprep.subr.bf16.mxu0 0
        %3403 = vmatpush1.bf16.xpose.msra.mxu0 0
        %3404 = vmatprep.subr.bf16.mxu0 0
        %3405 = vmatpush1.bf16.xpose.msra.mxu0 0
        %3406 = vmatprep.subr.bf16.mxu0 0
        %3407 = vmatpush1.bf16.xpose.msra.mxu0 0
        %3408 = vmatprep.subr.bf16.mxu0 0
        %3409 = vmatpush1.bf16.xpose.msra.mxu0 0
        %3410 = vmatprep.subr.bf16.mxu0 0
        %3411 = vmatpush1.bf16.xpose.msra.mxu0 0
        %3412 = vmatprep.subr.bf16.mxu0 0
        %3413 = vmatpush1.bf16.xpose.msra.mxu0 0
        %3414 = vmatprep.subr.bf16.mxu0 0
        %3415 = vmatpush1.bf16.xpose.msra.mxu0 0
        %3416 = vmatprep.subr.bf16.mxu0 0
        %3417 = vmatpush1.bf16.xpose.msra.mxu0 0
        %3418 = vmatprep.subr.bf16.mxu0 0
        %3419 = vmatpush1.bf16.xpose.msra.mxu0 0
        %3420 = vmatprep.mubr.bf16.mxu0 %v3018
        %3421 = vmatmul.mubr.bf16.gmra.mrb[0].mxu0 %v3017
        %v3422 = vpop.f32.mrb[0].mxu0
        %v3423 = vadd.f32 %v3382, %v3422
        %v3424 = vpop.f32.mrb[0].mxu0
        %v3425 = vpop.f32.mrb[0].mxu0
        %v3426 = vadd.f32 %v3385, %v3425
        %v3427 = vpop.f32.mrb[0].mxu0
        %3428 = vdwg.mxu0
        %3429 = vmatprep.subr.bf16.mxu0 %v3171
        %3430 = vmatpush1.bf16.xpose.msra.mxu0 %v3170
        %3431 = vmatprep.subr.bf16.mxu0 %v3187
        %3432 = vmatpush1.bf16.xpose.msra.mxu0 %v3186
        %3433 = vmatprep.subr.bf16.mxu0 0
        %3434 = vmatpush1.bf16.xpose.msra.mxu0 0
        %3435 = vmatprep.subr.bf16.mxu0 0
        %3436 = vmatpush1.bf16.xpose.msra.mxu0 0
        %3437 = vmatprep.subr.bf16.mxu0 0
        %3438 = vmatpush1.bf16.xpose.msra.mxu0 0
        %3439 = vmatprep.subr.bf16.mxu0 0
        %3440 = vmatpush1.bf16.xpose.msra.mxu0 0
        %3441 = vmatprep.subr.bf16.mxu0 0
        %3442 = vmatpush1.bf16.xpose.msra.mxu0 0
        %3443 = vmatprep.subr.bf16.mxu0 0
        %3444 = vmatpush1.bf16.xpose.msra.mxu0 0
        %3445 = vmatprep.subr.bf16.mxu0 0
        %3446 = vmatpush1.bf16.xpose.msra.mxu0 0
        %3447 = vmatprep.subr.bf16.mxu0 0
        %3448 = vmatpush1.bf16.xpose.msra.mxu0 0
        %3449 = vmatprep.subr.bf16.mxu0 0
        %3450 = vmatpush1.bf16.xpose.msra.mxu0 0
        %3451 = vmatprep.subr.bf16.mxu0 0
        %3452 = vmatpush1.bf16.xpose.msra.mxu0 0
        %3453 = vmatprep.subr.bf16.mxu0 0
        %3454 = vmatpush1.bf16.xpose.msra.mxu0 0
        %3455 = vmatprep.subr.bf16.mxu0 0
        %3456 = vmatpush1.bf16.xpose.msra.mxu0 0
        %3457 = vmatprep.subr.bf16.mxu0 0
        %3458 = vmatpush1.bf16.xpose.msra.mxu0 0
        %3459 = vmatprep.subr.bf16.mxu0 0
        %3460 = vmatpush1.bf16.xpose.msra.mxu0 0
        %3461 = vmatprep.mubr.bf16.mxu0 %v3020
        %3462 = vmatmul.mubr.bf16.gmra.mrb[0].mxu0 %v3019
        %v3463 = vpop.f32.mrb[0].mxu0
        %v3464 = vadd.f32 %v3423, %v3463
        %v3465 = vpop.f32.mrb[0].mxu0
        %v3466 = vpop.f32.mrb[0].mxu0
        %v3467 = vadd.f32 %v3426, %v3466
        %v3468 = vpop.f32.mrb[0].mxu0
        %3469 = vdwg.mxu0
        %3470 = vmatprep.subr.bf16.mxu0 %v3173
        %3471 = vmatpush1.bf16.xpose.msra.mxu0 %v3172
        %3472 = vmatprep.subr.bf16.mxu0 %v3189
        %3473 = vmatpush1.bf16.xpose.msra.mxu0 %v3188
        %3474 = vmatprep.subr.bf16.mxu0 0
        %3475 = vmatpush1.bf16.xpose.msra.mxu0 0
        %3476 = vmatprep.subr.bf16.mxu0 0
        %3477 = vmatpush1.bf16.xpose.msra.mxu0 0
        %3478 = vmatprep.subr.bf16.mxu0 0
        %3479 = vmatpush1.bf16.xpose.msra.mxu0 0
        %3480 = vmatprep.subr.bf16.mxu0 0
        %3481 = vmatpush1.bf16.xpose.msra.mxu0 0
        %3482 = vmatprep.subr.bf16.mxu0 0
        %3483 = vmatpush1.bf16.xpose.msra.mxu0 0
        %3484 = vmatprep.subr.bf16.mxu0 0
        %3485 = vmatpush1.bf16.xpose.msra.mxu0 0
        %3486 = vmatprep.subr.bf16.mxu0 0
        %3487 = vmatpush1.bf16.xpose.msra.mxu0 0
        %3488 = vmatprep.subr.bf16.mxu0 0
        %3489 = vmatpush1.bf16.xpose.msra.mxu0 0
        %3490 = vmatprep.subr.bf16.mxu0 0
        %3491 = vmatpush1.bf16.xpose.msra.mxu0 0
        %3492 = vmatprep.subr.bf16.mxu0 0
        %3493 = vmatpush1.bf16.xpose.msra.mxu0 0
        %3494 = vmatprep.subr.bf16.mxu0 0
        %3495 = vmatpush1.bf16.xpose.msra.mxu0 0
        %3496 = vmatprep.subr.bf16.mxu0 0
        %3497 = vmatpush1.bf16.xpose.msra.mxu0 0
        %3498 = vmatprep.subr.bf16.mxu0 0
        %3499 = vmatpush1.bf16.xpose.msra.mxu0 0
        %3500 = vmatprep.subr.bf16.mxu0 0
        %3501 = vmatpush1.bf16.xpose.msra.mxu0 0
        %3502 = vmatprep.mubr.bf16.mxu0 %v3022
        %3503 = vmatmul.mubr.bf16.gmra.mrb[0].mxu0 %v3021
        %v3504 = vpop.f32.mrb[0].mxu0
        %v3505 = vadd.f32 %v3464, %v3504
        %v3506 = vpop.f32.mrb[0].mxu0
        %v3507 = vpop.f32.mrb[0].mxu0
        %v3508 = vadd.f32 %v3467, %v3507
        %v3509 = vpop.f32.mrb[0].mxu0
        %3510 = vdwg.mxu0
        %3511 = vmatprep.subr.bf16.mxu0 %v3175
        %3512 = vmatpush1.bf16.xpose.msra.mxu0 %v3174
        %3513 = vmatprep.subr.bf16.mxu0 %v3191
        %3514 = vmatpush1.bf16.xpose.msra.mxu0 %v3190
        %3515 = vmatprep.subr.bf16.mxu0 0
        %3516 = vmatpush1.bf16.xpose.msra.mxu0 0
        %3517 = vmatprep.subr.bf16.mxu0 0
        %3518 = vmatpush1.bf16.xpose.msra.mxu0 0
        %3519 = vmatprep.subr.bf16.mxu0 0
        %3520 = vmatpush1.bf16.xpose.msra.mxu0 0
        %3521 = vmatprep.subr.bf16.mxu0 0
        %3522 = vmatpush1.bf16.xpose.msra.mxu0 0
        %3523 = vmatprep.subr.bf16.mxu0 0
        %3524 = vmatpush1.bf16.xpose.msra.mxu0 0
        %3525 = vmatprep.subr.bf16.mxu0 0
        %3526 = vmatpush1.bf16.xpose.msra.mxu0 0
        %3527 = vmatprep.subr.bf16.mxu0 0
        %3528 = vmatpush1.bf16.xpose.msra.mxu0 0
        %3529 = vmatprep.subr.bf16.mxu0 0
        %3530 = vmatpush1.bf16.xpose.msra.mxu0 0
        %3531 = vmatprep.subr.bf16.mxu0 0
        %3532 = vmatpush1.bf16.xpose.msra.mxu0 0
        %3533 = vmatprep.subr.bf16.mxu0 0
        %3534 = vmatpush1.bf16.xpose.msra.mxu0 0
        %3535 = vmatprep.subr.bf16.mxu0 0
        %3536 = vmatpush1.bf16.xpose.msra.mxu0 0
        %3537 = vmatprep.subr.bf16.mxu0 0
        %3538 = vmatpush1.bf16.xpose.msra.mxu0 0
        %3539 = vmatprep.subr.bf16.mxu0 0
        %3540 = vmatpush1.bf16.xpose.msra.mxu0 0
        %3541 = vmatprep.subr.bf16.mxu0 0
        %3542 = vmatpush1.bf16.xpose.msra.mxu0 0
        %3543 = vmatprep.mubr.bf16.mxu0 %v3024
        %3544 = vmatmul.mubr.bf16.gmra.mrb[0].mxu0 %v3023
        %v3545 = vpop.f32.mrb[0].mxu0
        %v3546 = vadd.f32 %v3505, %v3545
        %v3547 = vpop.f32.mrb[0].mxu0
        %v3548 = vpop.f32.mrb[0].mxu0
        %v3549 = vadd.f32 %v3508, %v3548
        %v3550 = vpop.f32.mrb[0].mxu0
        %3551 = vdwg.mxu0
        %v3552 = vadd.f32 %v2351, %v3546
        %v3553 = vadd.f32 %v2352, %v3549
        %v3554 = vld [vmem:[%s818] sm:$0x1]
        %v3555 = vld [vmem:[%s821] sm:$0x1]
        %v3556 = vsel %vm1080, %v3552, 0.0
        %3557 = vadd.xlane.f32.xlu0 %v3556
        %v3558 = vpop.xlane.xlu0 %3557
        %v3559 = vsel %vm1080, %v3553, 0.0
        %3560 = vadd.xlane.f32.xlu0 %v3559
        %v3561 = vpop.xlane.xlu0 %3560
        %v3562 = vmul.f32 %v3558, %v2316
        %v3563 = vmul.f32 %v3561, %v2316
        %v3564 = vsub.f32 %v3552, %v3562
        %v3565 = vsub.f32 %v3553, %v3563
        %v3566 = vmul.f32 %v3564, %v3564
        %v3567 = vmul.f32 %v3565, %v3565
        %v3568 = vsel %vm1080, %v3566, 0.0
        %3569 = vadd.xlane.f32.xlu0 %v3568
        %v3570 = vpop.xlane.xlu0 %3569
        %v3571 = vsel %vm1080, %v3567, 0.0
        %3572 = vadd.xlane.f32.xlu0 %v3571
        %v3573 = vpop.xlane.xlu0 %3572
        %v3574 = vmul.f32 %v3570, %v2316
        %v3575 = vmul.f32 %v3573, %v2316
        %v3576 = vadd.f32 %v3574, 1e-05
        %v3577 = vadd.f32 %v3575, 1e-05
        %v3578 = vrsqrt.pop %v3576
        %v3579 = vrsqrt.pop %v3577
        %v3580 = vmul.f32 %v3564, %v3578
        %v3581 = vmul.f32 %v3565, %v3579
        %v3583 = vlaneseq
        %v3584 = vshrl.u32 %v3583, 7
        %v3585 = vsub.s32 0, %v3584
        %v3586 = vrot.slane %v3554, %v3585
        %v3588 = vmul.f32 %v3580, %v3586
        %v3589 = vmul.f32 %v3581, %v3586
        %v3591 = vlaneseq
        %v3592 = vshrl.u32 %v3591, 7
        %v3593 = vsub.s32 0, %v3592
        %v3594 = vrot.slane %v3555, %v3593
        %v3596 = vadd.f32 %v3588, %v3594
        %v3597 = vadd.f32 %v3589, %v3594
        %3598 = vst.msk [vmem:[#allocation2] sm:$0xff] %vm1080, %v3596
        %3599 = vst.msk [vmem:[#allocation2 + $0x8] sm:$0xff] %vm1080, %v3597
        %p3600 = scmp.eq.s32.totalorder %s31, 5
        // Predicated region
        $region121: #{tpu_custom_call.1} parent=87 // pred_check
          %p3601 = pneg %p3600
        $region122: #{tpu_custom_call.1} parent=87 // pred_check_branch
          %3603 = sbr.rel (%p3601) target = $region124
        $region123: #{tpu_custom_call.1} parent=87 // pred_region
          %v3604 = vmax.f32 %v3596, 0.0
          %v3605 = vmax.f32 %v3597, 0.0
          %3606 = vst.msk [vmem:[#allocation13] sm:$0xff] %vm1080, %v3604
          %3607 = vst.msk [vmem:[#allocation13 + $0x8] sm:$0xff] %vm1080, %v3605
        $region124: #{tpu_custom_call.1} parent=87 // pred_fallthru
          _
        // Predicated region
        $region125: #{tpu_custom_call.1} parent=87 // pred_check
          %p3608 = pneg %p461
        $region126: #{tpu_custom_call.1} parent=87 // pred_check_branch
          %3610 = sbr.rel (%p3608) target = $region128
        $region127: #{tpu_custom_call.1} parent=87 // pred_region
          %s3612 = ssub.s32 256, 256
          %3613 = vsyncadd [#allocation5], %s3612
          %s3614 = sshll.u32 [#allocation13], 4
          %s3615 = int_to_ptr.vmem [resolvable:$true] %s3614
          %3620 = dma.vmem_to_hbm [thread:$0]  %s3615, 256, %s17, [#allocation5], 128, 128, 8
        $region128: #{tpu_custom_call.1} parent=87 // pred_fallthru
          _
        // Predicated region
        $region129: #{tpu_custom_call.1} parent=87 // pred_check
          %p3621 = pneg %p461
        $region130: #{tpu_custom_call.1} parent=87 // pred_check_branch
          %3623 = sbr.rel (%p3621) target = $region132
        $region131: #{tpu_custom_call.1} parent=87 // pred_region
          %3624 = dma.done [#allocation5], 256
        $region132: #{tpu_custom_call.1} parent=87 // pred_fallthru
          _
      $region88: #{tpu_custom_call.1} parent=5 // pred_fallthru
        _
      %p3625 = scmp.le.s32.totalorder 2, %s26
      // Predicated region
      $region133: #{tpu_custom_call.1} parent=5 // pred_check
        %p3626 = pneg %p3625
      $region134: #{tpu_custom_call.1} parent=5 // pred_check_branch
        %3628 = sbr.rel (%p3626) target = $region136
      $region135: #{tpu_custom_call.1} parent=5 // pred_region
        %s3629 = ssub.s32 %s26, 2
      $region136: #{tpu_custom_call.1} parent=5 // pred_fallthru
        _
    $region6: #{tpu_custom_call.1} parent=1 // loop_footer
      %s30 = sadd.s32 1, %s26
    $region7: #{tpu_custom_call.1} parent=1 // loop_footer_branch
      %25 = sbr.rel target = $region3
    $region8: #{tpu_custom_call.1} parent=1 // loop_exit
      _
    %3630 = vsyncpa [#allocation4], 1
    %s3631 = scalar_lea.sflag [#allocation4], 1
    %3632 = vsyncpa %s3631, 1
    %3633 = vsyncpa [#allocation7], 1
    %3634 = vsyncpa [#allocation5], 1
    %s3635 = scalar_lea.sflag [#allocation5], 1
    %3636 = vsyncpa %s3635, 1

</llo_original>
